<compile_context>
chip_gen: v7x
topology: tpu7x:2x2x1
jax: 0.10.0
libtpu: 0.0.40
codegen_flags: <defaults>
</compile_context>

<pallas_src>
import functools

import jax
import jax.numpy as jnp
from jax.experimental import pallas as pl
from jax.experimental.pallas import tpu as pltpu


def _round_up(x, m):
    return ((x + m - 1) // m) * m


def lstm_forward_pallas(x_tbi, h0, c0, w_ih_t, w_hh_t, b_gates,
                        w_fc_t_pad, b_fc_pad, *, max_unroll=32):
    """x_tbi: (T, B, I) time-major f32. h0/c0: (B, H) f32.
    w_ih_t:(I,4H) bf16, w_hh_t:(H,4H) bf16, b_gates:(1,4H) f32,
    w_fc_t_pad:(H,O_pad) bf16, b_fc_pad:(1,O_pad) f32 (O_pad multiple of 128).
    Returns y2d:(T_pad*B, O_pad) f32 (time-major rows), hN:(B,H), cN:(B,H)."""
    T, B, I = x_tbi.shape
    H = h0.shape[-1]
    O_pad = w_fc_t_pad.shape[-1]
    f32 = jnp.float32
    bf16 = jnp.bfloat16

    # U = unrolled time steps per grid block: a multiple of 8 (keeps the
    # (U*B, ...) block second-minor dim 8-sublane aligned), capped by max_unroll.
    max_unroll = max(8, (max_unroll // 8) * 8)
    U = min(max_unroll, _round_up(T, 8))
    n_blk = pl.cdiv(T, U)
    T_pad = n_blk * U

    # Zero-pad the time axis so the grid covers it evenly; padded steps are
    # masked inside the kernel so h/c carry is exact.
    if T_pad != T:
        x_tbi = jnp.pad(x_tbi, ((0, T_pad - T), (0, 0), (0, 0)))
    x2d = x_tbi.reshape(T_pad * B, I)          # rows ordered [t0 b0..bB-1, t1 ...]

    def kernel(x_ref, h0_ref, c0_ref, wih_ref, whh_ref, bg_ref,
               wfc_ref, bfc_ref, y_ref, hN_ref, cN_ref, h_sc, c_sc):
        blk = pl.program_id(0)

        @pl.when(blk == 0)
        def _():
            h_sc[...] = h0_ref[...]
            c_sc[...] = c0_ref[...]

        # Fused input projection for the whole block: (U*B, I) @ (I, 4H) + b.
        gx = jnp.dot(x_ref[...].astype(bf16), wih_ref[...],
                     preferred_element_type=f32) + bg_ref[...]        # (U*B, 4H)

        whh = whh_ref[...]                 # (H, 4H) bf16, VMEM resident
        h = h_sc[...]                      # (B, H) f32, lives in vregs in-block
        c = c_sc[...]

        rem = T % U                        # static; padded steps only in last blk
        hs = []
        for t in range(U):
            gates = gx[t * B:(t + 1) * B, :] + jnp.dot(
                h.astype(bf16), whh, preferred_element_type=f32)      # (B, 4H)
            i_g = jax.nn.sigmoid(gates[:, 0 * H:1 * H])
            f_g = jax.nn.sigmoid(gates[:, 1 * H:2 * H])
            g_g = jnp.tanh(gates[:, 2 * H:3 * H])
            o_g = jax.nn.sigmoid(gates[:, 3 * H:4 * H])
            c_new = f_g * c + i_g * g_g
            h_new = o_g * jnp.tanh(c_new)
            if rem != 0 and t >= rem:
                # This (static) step index may fall past the real sequence end
                # in the last block: keep h/c frozen there.
                valid = (blk * U + t) < T
                c = jnp.where(valid, c_new, c)
                h = jnp.where(valid, h_new, h)
            else:
                c = c_new
                h = h_new
            hs.append(h)

        h_sc[...] = h
        c_sc[...] = c
        hN_ref[...] = h.astype(hN_ref.dtype)
        cN_ref[...] = c.astype(cN_ref.dtype)

        # Hoisted fc: one (U*B, H) @ (H, O_pad) matmul, one lane-dense store.
        h_blk = jnp.concatenate(hs, axis=0)                           # (U*B, H) f32
        y_ref[...] = (jnp.dot(h_blk.astype(bf16), wfc_ref[...],
                              preferred_element_type=f32)
                      + bfc_ref[...]).astype(y_ref.dtype)

    grid_spec = pltpu.PrefetchScalarGridSpec(
        num_scalar_prefetch=0,
        grid=(n_blk,),
        in_specs=[
            pl.BlockSpec((U * B, I), lambda b: (b, 0)),       # x rows for block
            pl.BlockSpec((B, H), lambda b: (0, 0)),           # h0
            pl.BlockSpec((B, H), lambda b: (0, 0)),           # c0
            pl.BlockSpec((I, 4 * H), lambda b: (0, 0)),       # W_ih^T (bf16)
            pl.BlockSpec((H, 4 * H), lambda b: (0, 0)),       # W_hh^T (bf16)
            pl.BlockSpec((1, 4 * H), lambda b: (0, 0)),       # b_ih + b_hh
            pl.BlockSpec((H, O_pad), lambda b: (0, 0)),       # W_fc^T padded (bf16)
            pl.BlockSpec((1, O_pad), lambda b: (0, 0)),       # b_fc padded
        ],
        out_specs=[
            pl.BlockSpec((U * B, O_pad), lambda b: (b, 0)),   # lane-dense y block
            pl.BlockSpec((B, H), lambda b: (0, 0)),           # final hidden
            pl.BlockSpec((B, H), lambda b: (0, 0)),           # final cell
        ],
        scratch_shapes=[
            pltpu.VMEM((B, H), f32),    # h carry across grid blocks
            pltpu.VMEM((B, H), f32),    # c carry across grid blocks
        ],
    )

    y2d, hN, cN = pl.pallas_call(
        kernel,
        grid_spec=grid_spec,
        out_shape=[
            jax.ShapeDtypeStruct((T_pad * B, O_pad), f32),
            jax.ShapeDtypeStruct((B, H), f32),
            jax.ShapeDtypeStruct((B, H), f32),
        ],
        compiler_params=pltpu.CompilerParams(
            dimension_semantics=("arbitrary",),      # time recurrence -> sequential
            vmem_limit_bytes=32 * 1024 * 1024),
    )(x2d, h0, c0, w_ih_t, w_hh_t, b_gates, w_fc_t_pad, b_fc_pad)

    return y2d.reshape(T_pad, B, O_pad), hN, cN


class IdentityGeneratorPallas:
    """JAX/Pallas port of the PyTorch IdentityGenerator (num_layers=1)."""

    def __init__(self, input_size, hidden_size, output_size, num_layers=1, key=None):
        assert num_layers == 1, "kernel implements a single LSTM layer (module default)"
        self.num_layers = num_layers
        self.hidden_size = hidden_size
        self.input_size = input_size
        self.output_size = output_size
        self.output_pad = max(128, _round_up(output_size, 128))

        key = jax.random.PRNGKey(0) if key is None else key
        k = jax.random.split(key, 6)
        bound = 1.0 / jnp.sqrt(hidden_size)
        u = lambda kk, shape: jax.random.uniform(kk, shape, jnp.float32, -bound, bound)

        # PyTorch LSTM params: weight_ih (4H, I), weight_hh (4H, H), biases (4H,)
        w_ih = u(k[0], (4 * hidden_size, input_size))
        w_hh = u(k[1], (4 * hidden_size, hidden_size))
        b_ih = u(k[2], (4 * hidden_size,))
        b_hh = u(k[3], (4 * hidden_size,))
        # PyTorch Linear: weight (O, H), bias (O,)
        w_fc = u(k[4], (output_size, hidden_size))
        b_fc = u(k[5], (output_size,))

        # Pre-transpose for the (row-vector @ matrix) convention; bf16 for the MXU.
        self.w_ih_t = w_ih.T.astype(jnp.bfloat16)          # (I, 4H)
        self.w_hh_t = w_hh.T.astype(jnp.bfloat16)          # (H, 4H)
        self.b_gates = (b_ih + b_hh)[None, :]               # (1, 4H) f32
        self.w_fc_t = w_fc.T.astype(jnp.bfloat16)           # (H, O)   (reference)
        self.b_fc = b_fc[None, :]                            # (1, O)  (reference)
        # Lane-dense (128-padded) fc params for the kernel's unmasked output store.
        opad = self.output_pad
        self.w_fc_t_pad = jnp.zeros((hidden_size, opad), jnp.bfloat16
                                    ).at[:, :output_size].set(self.w_fc_t)
        self.b_fc_pad = jnp.zeros((1, opad), jnp.float32
                                  ).at[:, :output_size].set(self.b_fc)

    def init_hidden(self, batch_size):
        shape = (self.num_layers, batch_size, self.hidden_size)
        return jnp.zeros(shape, jnp.float32), jnp.zeros(shape, jnp.float32)

    def __call__(self, x, hidden, cell):
        if x.ndim == 2:                  # matches `if x.dim() == 2: x = x.unsqueeze(1)`
            x = x[:, None, :]
        B, T, _ = x.shape
        x_tbi = jnp.transpose(x, (1, 0, 2)).astype(jnp.float32)      # (T, B, I)
        h0 = hidden[0].astype(jnp.float32)                           # (B, H)
        c0 = cell[0].astype(jnp.float32)

        y_tbo, h_n, c_n = lstm_forward_pallas(
            x_tbi, h0, c0, self.w_ih_t, self.w_hh_t, self.b_gates,
            self.w_fc_t_pad, self.b_fc_pad)

        # Drop padded time steps / padded output lanes, back to batch_first.
        y_tbo = y_tbo[:T, :, :self.output_size]
        out = jnp.transpose(y_tbo, (1, 0, 2))                         # (B, T, O)
        return out, h_n[None, :, :], c_n[None, :, :]


def _reference_forward(model, x, hidden, cell):
    """Pure-JAX lax.scan reference mirroring the kernel's bf16-matmul/f32-accum math."""
    if x.ndim == 2:
        x = x[:, None, :]
    H = model.hidden_size
    bf16 = jnp.bfloat16
    f32 = jnp.float32

    x_tbi = jnp.transpose(x, (1, 0, 2)).astype(f32)
    gx = jnp.dot(x_tbi.astype(bf16), model.w_ih_t,
                 preferred_element_type=f32) + model.b_gates          # (T, B, 4H)

    def step(carry, gx_t):
        h, c = carry
        gates = gx_t + jnp.dot(h.astype(bf16), model.w_hh_t,
                               preferred_element_type=f32)
        i = jax.nn.sigmoid(gates[:, 0 * H:1 * H])
        f = jax.nn.sigmoid(gates[:, 1 * H:2 * H])
        g = jnp.tanh(gates[:, 2 * H:3 * H])
        o = jax.nn.sigmoid(gates[:, 3 * H:4 * H])
        c = f * c + i * g
        h = o * jnp.tanh(c)
        y = jnp.dot(h.astype(bf16), model.w_fc_t,
                    preferred_element_type=f32) + model.b_fc
        return (h, c), y

    (h_n, c_n), ys = jax.lax.scan(step, (hidden[0].astype(f32), cell[0].astype(f32)), gx)
    return jnp.transpose(ys, (1, 0, 2)), h_n[None], c_n[None]


if __name__ == "__main__":
    # Small shapes consistent with the module (hidden_size=256 per the spec).
    batch, seq, input_size, hidden_size = 2, 8, 16, 256
    output_size = input_size

    model = IdentityGeneratorPallas(input_size, hidden_size, output_size,
                                    num_layers=1, key=jax.random.PRNGKey(0))

    key = jax.random.PRNGKey(0)
    x = jax.random.normal(key, (batch, seq, input_size), jnp.float32)
    hidden, cell = model.init_hidden(batch)

    out, h_n, c_n = model(x, hidden, cell)
    out, h_n, c_n = jax.block_until_ready((out, h_n, c_n))

    # Sanity: shapes and match vs pure-JAX reference (same mixed-precision recipe).
    assert out.shape == (batch, seq, output_size)
    assert h_n.shape == (1, batch, hidden_size) and c_n.shape == (1, batch, hidden_size)
    ref_out, ref_h, ref_c = _reference_forward(model, x, hidden, cell)
    assert jnp.allclose(out, ref_out, atol=1e-3, rtol=1e-3)
    assert jnp.allclose(h_n, ref_h, atol=1e-3, rtol=1e-3)
    assert jnp.allclose(c_n, ref_c, atol=1e-3, rtol=1e-3)

    # Also exercise the padded-T path (T=5, not a multiple of U=8).
    x2 = jax.random.normal(jax.random.PRNGKey(1), (batch, 5, input_size), jnp.float32)
    out2, h2, c2 = model(x2, hidden, cell)
    ref_out2, ref_h2, ref_c2 = _reference_forward(model, x2, hidden, cell)
    assert jnp.allclose(out2, ref_out2, atol=1e-3, rtol=1e-3)
    assert jnp.allclose(h2, ref_h2, atol=1e-3, rtol=1e-3)
    assert jnp.allclose(c2, ref_c2, atol=1e-3, rtol=1e-3)

    print("KERNEL_OK")
</pallas_src>

<mosaic_0001>
module attributes {stable_mosaic.version = 11 : i64} {
  func.func @kernel(%arg0: i32, %arg1: memref<16x16xf32, #tpu.memory_space<vmem>>, %arg2: memref<2x256xf32, #tpu.memory_space<vmem>>, %arg3: memref<2x256xf32, #tpu.memory_space<vmem>>, %arg4: memref<16x1024xbf16, #tpu.memory_space<vmem>>, %arg5: memref<256x1024xbf16, #tpu.memory_space<vmem>>, %arg6: memref<1x1024xf32, #tpu.memory_space<vmem>>, %arg7: memref<256x128xbf16, #tpu.memory_space<vmem>>, %arg8: memref<1x128xf32, #tpu.memory_space<vmem>>, %arg9: memref<16x128xf32, #tpu.memory_space<vmem>>, %arg10: memref<2x256xf32, #tpu.memory_space<vmem>>, %arg11: memref<2x256xf32, #tpu.memory_space<vmem>>, %arg12: memref<2x256xf32, #tpu.memory_space<vmem>>, %arg13: memref<2x256xf32, #tpu.memory_space<vmem>>) attributes {dimension_semantics = [#tpu.dimension_semantics<arbitrary>], iteration_bounds = array<i64: 1>, scalar_prefetch = 0 : i64, scratch_operands = 2 : i64, tpu.core_type = #tpu.core_type<tc>, window_params = [{transform_indices = @transform_0, window_bounds = array<i64: 16, 16>}, {pipeline_mode = #tpu.pipeline_mode<synchronous>, transform_indices = @transform_1, window_bounds = array<i64: 2, 256>}, {pipeline_mode = #tpu.pipeline_mode<synchronous>, transform_indices = @transform_2, window_bounds = array<i64: 2, 256>}, {pipeline_mode = #tpu.pipeline_mode<synchronous>, transform_indices = @transform_3, window_bounds = array<i64: 16, 1024>}, {pipeline_mode = #tpu.pipeline_mode<synchronous>, transform_indices = @transform_4, window_bounds = array<i64: 256, 1024>}, {pipeline_mode = #tpu.pipeline_mode<synchronous>, transform_indices = @transform_5, window_bounds = array<i64: 1, 1024>}, {pipeline_mode = #tpu.pipeline_mode<synchronous>, transform_indices = @transform_6, window_bounds = array<i64: 256, 128>}, {pipeline_mode = #tpu.pipeline_mode<synchronous>, transform_indices = @transform_7, window_bounds = array<i64: 1, 128>}, {transform_indices = @transform_8, window_bounds = array<i64: 16, 128>}, {pipeline_mode = #tpu.pipeline_mode<synchronous>, transform_indices = @transform_9, window_bounds = array<i64: 2, 256>}, {pipeline_mode = #tpu.pipeline_mode<synchronous>, transform_indices = @transform_10, window_bounds = array<i64: 2, 256>}]} {
    %c0_i32 = arith.constant 0 : i32
    %0 = arith.cmpi eq, %arg0, %c0_i32 : i32
    %1 = arith.extui %0 : i1 to i32
    %c0_i32_0 = arith.constant 0 : i32
    %2 = arith.cmpi ne, %1, %c0_i32_0 : i32
    scf.if %2 {
      %c0_59 = arith.constant 0 : index
      %c0_60 = arith.constant 0 : index
      %257 = vector.load %arg2[%c0_59, %c0_60] : memref<2x256xf32, #tpu.memory_space<vmem>>, vector<2x256xf32>
      %c0_61 = arith.constant 0 : index
      %c0_62 = arith.constant 0 : index
      %258 = vector.load %arg12[%c0_61, %c0_62] : memref<2x256xf32, #tpu.memory_space<vmem>>, vector<2x256xf32>
      tpu.vector_store %arg12[%c0_61, %c0_62], %257 {strides = array<i32>} : memref<2x256xf32, #tpu.memory_space<vmem>>, vector<2x256xf32>,
      %c0_63 = arith.constant 0 : index
      %c0_64 = arith.constant 0 : index
      %259 = vector.load %arg3[%c0_63, %c0_64] : memref<2x256xf32, #tpu.memory_space<vmem>>, vector<2x256xf32>
      %c0_65 = arith.constant 0 : index
      %c0_66 = arith.constant 0 : index
      %260 = vector.load %arg13[%c0_65, %c0_66] : memref<2x256xf32, #tpu.memory_space<vmem>>, vector<2x256xf32>
      tpu.vector_store %arg13[%c0_65, %c0_66], %259 {strides = array<i32>} : memref<2x256xf32, #tpu.memory_space<vmem>>, vector<2x256xf32>,
    } else {
    }
    %c0 = arith.constant 0 : index
    %c0_1 = arith.constant 0 : index
    %3 = vector.load %arg1[%c0, %c0_1] : memref<16x16xf32, #tpu.memory_space<vmem>>, vector<16x16xf32>
    %4 = arith.truncf %3 : vector<16x16xf32> to vector<16x16xbf16>
    %c0_2 = arith.constant 0 : index
    %c0_3 = arith.constant 0 : index
    %5 = vector.load %arg4[%c0_2, %c0_3] : memref<16x1024xbf16, #tpu.memory_space<vmem>>, vector<16x1024xbf16>
    %cst = arith.constant dense<0.000000e+00> : vector<16x1024xf32>
    %6 = tpu.matmul %4, %5, %cst {dimension_numbers = #tpu.dot_dimension_numbers<[1], [0], [0], [1], [0, 0, 1, 1], [], []>} : vector<16x16xbf16>, vector<16x1024xbf16>, vector<16x1024xf32> -> vector<16x1024xf32>
    %c0_4 = arith.constant 0 : index
    %c0_5 = arith.constant 0 : index
    %7 = vector.load %arg6[%c0_4, %c0_5] : memref<1x1024xf32, #tpu.memory_space<vmem>>, vector<1x1024xf32>
    %8 = vector.broadcast %7 : vector<1x1024xf32> to vector<16x1024xf32>
    %9 = arith.addf %6, %8 : vector<16x1024xf32>
    %c0_6 = arith.constant 0 : index
    %c0_7 = arith.constant 0 : index
    %10 = vector.load %arg5[%c0_6, %c0_7] : memref<256x1024xbf16, #tpu.memory_space<vmem>>, vector<256x1024xbf16>
    %c0_8 = arith.constant 0 : index
    %c0_9 = arith.constant 0 : index
    %11 = vector.load %arg12[%c0_8, %c0_9] : memref<2x256xf32, #tpu.memory_space<vmem>>, vector<2x256xf32>
    %c0_10 = arith.constant 0 : index
    %c0_11 = arith.constant 0 : index
    %12 = vector.load %arg13[%c0_10, %c0_11] : memref<2x256xf32, #tpu.memory_space<vmem>>, vector<2x256xf32>
    %13 = vector.extract_strided_slice %9 {offsets = [0, 0], sizes = [2, 1024], strides = [1, 1]} : vector<16x1024xf32> to vector<2x1024xf32>
    %14 = arith.truncf %11 : vector<2x256xf32> to vector<2x256xbf16>
    %cst_12 = arith.constant dense<0.000000e+00> : vector<2x1024xf32>
    %15 = tpu.matmul %14, %10, %cst_12 {dimension_numbers = #tpu.dot_dimension_numbers<[1], [0], [0], [1], [0, 0, 1, 1], [], []>} : vector<2x256xbf16>, vector<256x1024xbf16>, vector<2x1024xf32> -> vector<2x1024xf32>
    %16 = arith.addf %13, %15 : vector<2x1024xf32>
    %17 = vector.extract_strided_slice %16 {offsets = [0, 0], sizes = [2, 256], strides = [1, 1]} : vector<2x1024xf32> to vector<2x256xf32>
    %18 = arith.negf %17 : vector<2x256xf32>
    %19 = math.exp %18 : vector<2x256xf32>
    %cst_13 = arith.constant 1.000000e+00 : f32
    %20 = vector.broadcast %cst_13 : f32 to vector<2x256xf32>
    %21 = arith.addf %20, %19 : vector<2x256xf32>
    %22 = arith.divf %20, %21 : vector<2x256xf32>
    %23 = vector.extract_strided_slice %16 {offsets = [0, 256], sizes = [2, 256], strides = [1, 1]} : vector<2x1024xf32> to vector<2x256xf32>
    %24 = arith.negf %23 : vector<2x256xf32>
    %25 = math.exp %24 : vector<2x256xf32>
    %cst_14 = arith.constant 1.000000e+00 : f32
    %26 = vector.broadcast %cst_14 : f32 to vector<2x256xf32>
    %27 = arith.addf %26, %25 : vector<2x256xf32>
    %28 = arith.divf %26, %27 : vector<2x256xf32>
    %29 = vector.extract_strided_slice %16 {offsets = [0, 512], sizes = [2, 256], strides = [1, 1]} : vector<2x1024xf32> to vector<2x256xf32>
    %30 = math.tanh %29 : vector<2x256xf32>
    %31 = vector.extract_strided_slice %16 {offsets = [0, 768], sizes = [2, 256], strides = [1, 1]} : vector<2x1024xf32> to vector<2x256xf32>
    %32 = arith.negf %31 : vector<2x256xf32>
    %33 = math.exp %32 : vector<2x256xf32>
    %cst_15 = arith.constant 1.000000e+00 : f32
    %34 = vector.broadcast %cst_15 : f32 to vector<2x256xf32>
    %35 = arith.addf %34, %33 : vector<2x256xf32>
    %36 = arith.divf %34, %35 : vector<2x256xf32>
    %37 = arith.mulf %28, %12 : vector<2x256xf32>
    %38 = arith.mulf %22, %30 : vector<2x256xf32>
    %39 = arith.addf %37, %38 : vector<2x256xf32>
    %40 = math.tanh %39 : vector<2x256xf32>
    %41 = arith.mulf %36, %40 : vector<2x256xf32>
    %42 = vector.extract_strided_slice %9 {offsets = [2, 0], sizes = [2, 1024], strides = [1, 1]} : vector<16x1024xf32> to vector<2x1024xf32>
    %43 = arith.truncf %41 : vector<2x256xf32> to vector<2x256xbf16>
    %cst_16 = arith.constant dense<0.000000e+00> : vector<2x1024xf32>
    %44 = tpu.matmul %43, %10, %cst_16 {dimension_numbers = #tpu.dot_dimension_numbers<[1], [0], [0], [1], [0, 0, 1, 1], [], []>} : vector<2x256xbf16>, vector<256x1024xbf16>, vector<2x1024xf32> -> vector<2x1024xf32>
    %45 = arith.addf %42, %44 : vector<2x1024xf32>
    %46 = vector.extract_strided_slice %45 {offsets = [0, 0], sizes = [2, 256], strides = [1, 1]} : vector<2x1024xf32> to vector<2x256xf32>
    %47 = arith.negf %46 : vector<2x256xf32>
    %48 = math.exp %47 : vector<2x256xf32>
    %cst_17 = arith.constant 1.000000e+00 : f32
    %49 = vector.broadcast %cst_17 : f32 to vector<2x256xf32>
    %50 = arith.addf %49, %48 : vector<2x256xf32>
    %51 = arith.divf %49, %50 : vector<2x256xf32>
    %52 = vector.extract_strided_slice %45 {offsets = [0, 256], sizes = [2, 256], strides = [1, 1]} : vector<2x1024xf32> to vector<2x256xf32>
    %53 = arith.negf %52 : vector<2x256xf32>
    %54 = math.exp %53 : vector<2x256xf32>
    %cst_18 = arith.constant 1.000000e+00 : f32
    %55 = vector.broadcast %cst_18 : f32 to vector<2x256xf32>
    %56 = arith.addf %55, %54 : vector<2x256xf32>
    %57 = arith.divf %55, %56 : vector<2x256xf32>
    %58 = vector.extract_strided_slice %45 {offsets = [0, 512], sizes = [2, 256], strides = [1, 1]} : vector<2x1024xf32> to vector<2x256xf32>
    %59 = math.tanh %58 : vector<2x256xf32>
    %60 = vector.extract_strided_slice %45 {offsets = [0, 768], sizes = [2, 256], strides = [1, 1]} : vector<2x1024xf32> to vector<2x256xf32>
    %61 = arith.negf %60 : vector<2x256xf32>
    %62 = math.exp %61 : vector<2x256xf32>
    %cst_19 = arith.constant 1.000000e+00 : f32
    %63 = vector.broadcast %cst_19 : f32 to vector<2x256xf32>
    %64 = arith.addf %63, %62 : vector<2x256xf32>
    %65 = arith.divf %63, %64 : vector<2x256xf32>
    %66 = arith.mulf %57, %39 : vector<2x256xf32>
    %67 = arith.mulf %51, %59 : vector<2x256xf32>
    %68 = arith.addf %66, %67 : vector<2x256xf32>
    %69 = math.tanh %68 : vector<2x256xf32>
    %70 = arith.mulf %65, %69 : vector<2x256xf32>
    %71 = vector.extract_strided_slice %9 {offsets = [4, 0], sizes = [2, 1024], strides = [1, 1]} : vector<16x1024xf32> to vector<2x1024xf32>
    %72 = arith.truncf %70 : vector<2x256xf32> to vector<2x256xbf16>
    %cst_20 = arith.constant dense<0.000000e+00> : vector<2x1024xf32>
    %73 = tpu.matmul %72, %10, %cst_20 {dimension_numbers = #tpu.dot_dimension_numbers<[1], [0], [0], [1], [0, 0, 1, 1], [], []>} : vector<2x256xbf16>, vector<256x1024xbf16>, vector<2x1024xf32> -> vector<2x1024xf32>
    %74 = arith.addf %71, %73 : vector<2x1024xf32>
    %75 = vector.extract_strided_slice %74 {offsets = [0, 0], sizes = [2, 256], strides = [1, 1]} : vector<2x1024xf32> to vector<2x256xf32>
    %76 = arith.negf %75 : vector<2x256xf32>
    %77 = math.exp %76 : vector<2x256xf32>
    %cst_21 = arith.constant 1.000000e+00 : f32
    %78 = vector.broadcast %cst_21 : f32 to vector<2x256xf32>
    %79 = arith.addf %78, %77 : vector<2x256xf32>
    %80 = arith.divf %78, %79 : vector<2x256xf32>
    %81 = vector.extract_strided_slice %74 {offsets = [0, 256], sizes = [2, 256], strides = [1, 1]} : vector<2x1024xf32> to vector<2x256xf32>
    %82 = arith.negf %81 : vector<2x256xf32>
    %83 = math.exp %82 : vector<2x256xf32>
    %cst_22 = arith.constant 1.000000e+00 : f32
    %84 = vector.broadcast %cst_22 : f32 to vector<2x256xf32>
    %85 = arith.addf %84, %83 : vector<2x256xf32>
    %86 = arith.divf %84, %85 : vector<2x256xf32>
    %87 = vector.extract_strided_slice %74 {offsets = [0, 512], sizes = [2, 256], strides = [1, 1]} : vector<2x1024xf32> to vector<2x256xf32>
    %88 = math.tanh %87 : vector<2x256xf32>
    %89 = vector.extract_strided_slice %74 {offsets = [0, 768], sizes = [2, 256], strides = [1, 1]} : vector<2x1024xf32> to vector<2x256xf32>
    %90 = arith.negf %89 : vector<2x256xf32>
    %91 = math.exp %90 : vector<2x256xf32>
    %cst_23 = arith.constant 1.000000e+00 : f32
    %92 = vector.broadcast %cst_23 : f32 to vector<2x256xf32>
    %93 = arith.addf %92, %91 : vector<2x256xf32>
    %94 = arith.divf %92, %93 : vector<2x256xf32>
    %95 = arith.mulf %86, %68 : vector<2x256xf32>
    %96 = arith.mulf %80, %88 : vector<2x256xf32>
    %97 = arith.addf %95, %96 : vector<2x256xf32>
    %98 = math.tanh %97 : vector<2x256xf32>
    %99 = arith.mulf %94, %98 : vector<2x256xf32>
    %100 = vector.extract_strided_slice %9 {offsets = [6, 0], sizes = [2, 1024], strides = [1, 1]} : vector<16x1024xf32> to vector<2x1024xf32>
    %101 = arith.truncf %99 : vector<2x256xf32> to vector<2x256xbf16>
    %cst_24 = arith.constant dense<0.000000e+00> : vector<2x1024xf32>
    %102 = tpu.matmul %101, %10, %cst_24 {dimension_numbers = #tpu.dot_dimension_numbers<[1], [0], [0], [1], [0, 0, 1, 1], [], []>} : vector<2x256xbf16>, vector<256x1024xbf16>, vector<2x1024xf32> -> vector<2x1024xf32>
    %103 = arith.addf %100, %102 : vector<2x1024xf32>
    %104 = vector.extract_strided_slice %103 {offsets = [0, 0], sizes = [2, 256], strides = [1, 1]} : vector<2x1024xf32> to vector<2x256xf32>
    %105 = arith.negf %104 : vector<2x256xf32>
    %106 = math.exp %105 : vector<2x256xf32>
    %cst_25 = arith.constant 1.000000e+00 : f32
    %107 = vector.broadcast %cst_25 : f32 to vector<2x256xf32>
    %108 = arith.addf %107, %106 : vector<2x256xf32>
    %109 = arith.divf %107, %108 : vector<2x256xf32>
    %110 = vector.extract_strided_slice %103 {offsets = [0, 256], sizes = [2, 256], strides = [1, 1]} : vector<2x1024xf32> to vector<2x256xf32>
    %111 = arith.negf %110 : vector<2x256xf32>
    %112 = math.exp %111 : vector<2x256xf32>
    %cst_26 = arith.constant 1.000000e+00 : f32
    %113 = vector.broadcast %cst_26 : f32 to vector<2x256xf32>
    %114 = arith.addf %113, %112 : vector<2x256xf32>
    %115 = arith.divf %113, %114 : vector<2x256xf32>
    %116 = vector.extract_strided_slice %103 {offsets = [0, 512], sizes = [2, 256], strides = [1, 1]} : vector<2x1024xf32> to vector<2x256xf32>
    %117 = math.tanh %116 : vector<2x256xf32>
    %118 = vector.extract_strided_slice %103 {offsets = [0, 768], sizes = [2, 256], strides = [1, 1]} : vector<2x1024xf32> to vector<2x256xf32>
    %119 = arith.negf %118 : vector<2x256xf32>
    %120 = math.exp %119 : vector<2x256xf32>
    %cst_27 = arith.constant 1.000000e+00 : f32
    %121 = vector.broadcast %cst_27 : f32 to vector<2x256xf32>
    %122 = arith.addf %121, %120 : vector<2x256xf32>
    %123 = arith.divf %121, %122 : vector<2x256xf32>
    %124 = arith.mulf %115, %97 : vector<2x256xf32>
    %125 = arith.mulf %109, %117 : vector<2x256xf32>
    %126 = arith.addf %124, %125 : vector<2x256xf32>
    %127 = math.tanh %126 : vector<2x256xf32>
    %128 = arith.mulf %123, %127 : vector<2x256xf32>
    %129 = vector.extract_strided_slice %9 {offsets = [8, 0], sizes = [2, 1024], strides = [1, 1]} : vector<16x1024xf32> to vector<2x1024xf32>
    %130 = arith.truncf %128 : vector<2x256xf32> to vector<2x256xbf16>
    %cst_28 = arith.constant dense<0.000000e+00> : vector<2x1024xf32>
    %131 = tpu.matmul %130, %10, %cst_28 {dimension_numbers = #tpu.dot_dimension_numbers<[1], [0], [0], [1], [0, 0, 1, 1], [], []>} : vector<2x256xbf16>, vector<256x1024xbf16>, vector<2x1024xf32> -> vector<2x1024xf32>
    %132 = arith.addf %129, %131 : vector<2x1024xf32>
    %133 = vector.extract_strided_slice %132 {offsets = [0, 0], sizes = [2, 256], strides = [1, 1]} : vector<2x1024xf32> to vector<2x256xf32>
    %134 = arith.negf %133 : vector<2x256xf32>
    %135 = math.exp %134 : vector<2x256xf32>
    %cst_29 = arith.constant 1.000000e+00 : f32
    %136 = vector.broadcast %cst_29 : f32 to vector<2x256xf32>
    %137 = arith.addf %136, %135 : vector<2x256xf32>
    %138 = arith.divf %136, %137 : vector<2x256xf32>
    %139 = vector.extract_strided_slice %132 {offsets = [0, 256], sizes = [2, 256], strides = [1, 1]} : vector<2x1024xf32> to vector<2x256xf32>
    %140 = arith.negf %139 : vector<2x256xf32>
    %141 = math.exp %140 : vector<2x256xf32>
    %cst_30 = arith.constant 1.000000e+00 : f32
    %142 = vector.broadcast %cst_30 : f32 to vector<2x256xf32>
    %143 = arith.addf %142, %141 : vector<2x256xf32>
    %144 = arith.divf %142, %143 : vector<2x256xf32>
    %145 = vector.extract_strided_slice %132 {offsets = [0, 512], sizes = [2, 256], strides = [1, 1]} : vector<2x1024xf32> to vector<2x256xf32>
    %146 = math.tanh %145 : vector<2x256xf32>
    %147 = vector.extract_strided_slice %132 {offsets = [0, 768], sizes = [2, 256], strides = [1, 1]} : vector<2x1024xf32> to vector<2x256xf32>
    %148 = arith.negf %147 : vector<2x256xf32>
    %149 = math.exp %148 : vector<2x256xf32>
    %cst_31 = arith.constant 1.000000e+00 : f32
    %150 = vector.broadcast %cst_31 : f32 to vector<2x256xf32>
    %151 = arith.addf %150, %149 : vector<2x256xf32>
    %152 = arith.divf %150, %151 : vector<2x256xf32>
    %153 = arith.mulf %144, %126 : vector<2x256xf32>
    %154 = arith.mulf %138, %146 : vector<2x256xf32>
    %155 = arith.addf %153, %154 : vector<2x256xf32>
    %156 = math.tanh %155 : vector<2x256xf32>
    %157 = arith.mulf %152, %156 : vector<2x256xf32>
    %158 = vector.extract_strided_slice %9 {offsets = [10, 0], sizes = [2, 1024], strides = [1, 1]} : vector<16x1024xf32> to vector<2x1024xf32>
    %159 = arith.truncf %157 : vector<2x256xf32> to vector<2x256xbf16>
    %cst_32 = arith.constant dense<0.000000e+00> : vector<2x1024xf32>
    %160 = tpu.matmul %159, %10, %cst_32 {dimension_numbers = #tpu.dot_dimension_numbers<[1], [0], [0], [1], [0, 0, 1, 1], [], []>} : vector<2x256xbf16>, vector<256x1024xbf16>, vector<2x1024xf32> -> vector<2x1024xf32>
    %161 = arith.addf %158, %160 : vector<2x1024xf32>
    %162 = vector.extract_strided_slice %161 {offsets = [0, 0], sizes = [2, 256], strides = [1, 1]} : vector<2x1024xf32> to vector<2x256xf32>
    %163 = arith.negf %162 : vector<2x256xf32>
    %164 = math.exp %163 : vector<2x256xf32>
    %cst_33 = arith.constant 1.000000e+00 : f32
    %165 = vector.broadcast %cst_33 : f32 to vector<2x256xf32>
    %166 = arith.addf %165, %164 : vector<2x256xf32>
    %167 = arith.divf %165, %166 : vector<2x256xf32>
    %168 = vector.extract_strided_slice %161 {offsets = [0, 256], sizes = [2, 256], strides = [1, 1]} : vector<2x1024xf32> to vector<2x256xf32>
    %169 = arith.negf %168 : vector<2x256xf32>
    %170 = math.exp %169 : vector<2x256xf32>
    %cst_34 = arith.constant 1.000000e+00 : f32
    %171 = vector.broadcast %cst_34 : f32 to vector<2x256xf32>
    %172 = arith.addf %171, %170 : vector<2x256xf32>
    %173 = arith.divf %171, %172 : vector<2x256xf32>
    %174 = vector.extract_strided_slice %161 {offsets = [0, 512], sizes = [2, 256], strides = [1, 1]} : vector<2x1024xf32> to vector<2x256xf32>
    %175 = math.tanh %174 : vector<2x256xf32>
    %176 = vector.extract_strided_slice %161 {offsets = [0, 768], sizes = [2, 256], strides = [1, 1]} : vector<2x1024xf32> to vector<2x256xf32>
    %177 = arith.negf %176 : vector<2x256xf32>
    %178 = math.exp %177 : vector<2x256xf32>
    %cst_35 = arith.constant 1.000000e+00 : f32
    %179 = vector.broadcast %cst_35 : f32 to vector<2x256xf32>
    %180 = arith.addf %179, %178 : vector<2x256xf32>
    %181 = arith.divf %179, %180 : vector<2x256xf32>
    %182 = arith.mulf %173, %155 : vector<2x256xf32>
    %183 = arith.mulf %167, %175 : vector<2x256xf32>
    %184 = arith.addf %182, %183 : vector<2x256xf32>
    %185 = math.tanh %184 : vector<2x256xf32>
    %186 = arith.mulf %181, %185 : vector<2x256xf32>
    %187 = vector.extract_strided_slice %9 {offsets = [12, 0], sizes = [2, 1024], strides = [1, 1]} : vector<16x1024xf32> to vector<2x1024xf32>
    %188 = arith.truncf %186 : vector<2x256xf32> to vector<2x256xbf16>
    %cst_36 = arith.constant dense<0.000000e+00> : vector<2x1024xf32>
    %189 = tpu.matmul %188, %10, %cst_36 {dimension_numbers = #tpu.dot_dimension_numbers<[1], [0], [0], [1], [0, 0, 1, 1], [], []>} : vector<2x256xbf16>, vector<256x1024xbf16>, vector<2x1024xf32> -> vector<2x1024xf32>
    %190 = arith.addf %187, %189 : vector<2x1024xf32>
    %191 = vector.extract_strided_slice %190 {offsets = [0, 0], sizes = [2, 256], strides = [1, 1]} : vector<2x1024xf32> to vector<2x256xf32>
    %192 = arith.negf %191 : vector<2x256xf32>
    %193 = math.exp %192 : vector<2x256xf32>
    %cst_37 = arith.constant 1.000000e+00 : f32
    %194 = vector.broadcast %cst_37 : f32 to vector<2x256xf32>
    %195 = arith.addf %194, %193 : vector<2x256xf32>
    %196 = arith.divf %194, %195 : vector<2x256xf32>
    %197 = vector.extract_strided_slice %190 {offsets = [0, 256], sizes = [2, 256], strides = [1, 1]} : vector<2x1024xf32> to vector<2x256xf32>
    %198 = arith.negf %197 : vector<2x256xf32>
    %199 = math.exp %198 : vector<2x256xf32>
    %cst_38 = arith.constant 1.000000e+00 : f32
    %200 = vector.broadcast %cst_38 : f32 to vector<2x256xf32>
    %201 = arith.addf %200, %199 : vector<2x256xf32>
    %202 = arith.divf %200, %201 : vector<2x256xf32>
    %203 = vector.extract_strided_slice %190 {offsets = [0, 512], sizes = [2, 256], strides = [1, 1]} : vector<2x1024xf32> to vector<2x256xf32>
    %204 = math.tanh %203 : vector<2x256xf32>
    %205 = vector.extract_strided_slice %190 {offsets = [0, 768], sizes = [2, 256], strides = [1, 1]} : vector<2x1024xf32> to vector<2x256xf32>
    %206 = arith.negf %205 : vector<2x256xf32>
    %207 = math.exp %206 : vector<2x256xf32>
    %cst_39 = arith.constant 1.000000e+00 : f32
    %208 = vector.broadcast %cst_39 : f32 to vector<2x256xf32>
    %209 = arith.addf %208, %207 : vector<2x256xf32>
    %210 = arith.divf %208, %209 : vector<2x256xf32>
    %211 = arith.mulf %202, %184 : vector<2x256xf32>
    %212 = arith.mulf %196, %204 : vector<2x256xf32>
    %213 = arith.addf %211, %212 : vector<2x256xf32>
    %214 = math.tanh %213 : vector<2x256xf32>
    %215 = arith.mulf %210, %214 : vector<2x256xf32>
    %216 = vector.extract_strided_slice %9 {offsets = [14, 0], sizes = [2, 1024], strides = [1, 1]} : vector<16x1024xf32> to vector<2x1024xf32>
    %217 = arith.truncf %215 : vector<2x256xf32> to vector<2x256xbf16>
    %cst_40 = arith.constant dense<0.000000e+00> : vector<2x1024xf32>
    %218 = tpu.matmul %217, %10, %cst_40 {dimension_numbers = #tpu.dot_dimension_numbers<[1], [0], [0], [1], [0, 0, 1, 1], [], []>} : vector<2x256xbf16>, vector<256x1024xbf16>, vector<2x1024xf32> -> vector<2x1024xf32>
    %219 = arith.addf %216, %218 : vector<2x1024xf32>
    %220 = vector.extract_strided_slice %219 {offsets = [0, 0], sizes = [2, 256], strides = [1, 1]} : vector<2x1024xf32> to vector<2x256xf32>
    %221 = arith.negf %220 : vector<2x256xf32>
    %222 = math.exp %221 : vector<2x256xf32>
    %cst_41 = arith.constant 1.000000e+00 : f32
    %223 = vector.broadcast %cst_41 : f32 to vector<2x256xf32>
    %224 = arith.addf %223, %222 : vector<2x256xf32>
    %225 = arith.divf %223, %224 : vector<2x256xf32>
    %226 = vector.extract_strided_slice %219 {offsets = [0, 256], sizes = [2, 256], strides = [1, 1]} : vector<2x1024xf32> to vector<2x256xf32>
    %227 = arith.negf %226 : vector<2x256xf32>
    %228 = math.exp %227 : vector<2x256xf32>
    %cst_42 = arith.constant 1.000000e+00 : f32
    %229 = vector.broadcast %cst_42 : f32 to vector<2x256xf32>
    %230 = arith.addf %229, %228 : vector<2x256xf32>
    %231 = arith.divf %229, %230 : vector<2x256xf32>
    %232 = vector.extract_strided_slice %219 {offsets = [0, 512], sizes = [2, 256], strides = [1, 1]} : vector<2x1024xf32> to vector<2x256xf32>
    %233 = math.tanh %232 : vector<2x256xf32>
    %234 = vector.extract_strided_slice %219 {offsets = [0, 768], sizes = [2, 256], strides = [1, 1]} : vector<2x1024xf32> to vector<2x256xf32>
    %235 = arith.negf %234 : vector<2x256xf32>
    %236 = math.exp %235 : vector<2x256xf32>
    %cst_43 = arith.constant 1.000000e+00 : f32
    %237 = vector.broadcast %cst_43 : f32 to vector<2x256xf32>
    %238 = arith.addf %237, %236 : vector<2x256xf32>
    %239 = arith.divf %237, %238 : vector<2x256xf32>
    %240 = arith.mulf %231, %213 : vector<2x256xf32>
    %241 = arith.mulf %225, %233 : vector<2x256xf32>
    %242 = arith.addf %240, %241 : vector<2x256xf32>
    %243 = math.tanh %242 : vector<2x256xf32>
    %244 = arith.mulf %239, %243 : vector<2x256xf32>
    %c0_44 = arith.constant 0 : index
    %c0_45 = arith.constant 0 : index
    %245 = vector.load %arg12[%c0_44, %c0_45] : memref<2x256xf32, #tpu.memory_space<vmem>>, vector<2x256xf32>
    tpu.vector_store %arg12[%c0_44, %c0_45], %244 {strides = array<i32>} : memref<2x256xf32, #tpu.memory_space<vmem>>, vector<2x256xf32>,
    %c0_46 = arith.constant 0 : index
    %c0_47 = arith.constant 0 : index
    %246 = vector.load %arg13[%c0_46, %c0_47] : memref<2x256xf32, #tpu.memory_space<vmem>>, vector<2x256xf32>
    tpu.vector_store %arg13[%c0_46, %c0_47], %242 {strides = array<i32>} : memref<2x256xf32, #tpu.memory_space<vmem>>, vector<2x256xf32>,
    %c0_48 = arith.constant 0 : index
    %c0_49 = arith.constant 0 : index
    %247 = vector.load %arg10[%c0_48, %c0_49] : memref<2x256xf32, #tpu.memory_space<vmem>>, vector<2x256xf32>
    tpu.vector_store %arg10[%c0_48, %c0_49], %244 {strides = array<i32>} : memref<2x256xf32, #tpu.memory_space<vmem>>, vector<2x256xf32>,
    %c0_50 = arith.constant 0 : index
    %c0_51 = arith.constant 0 : index
    %248 = vector.load %arg11[%c0_50, %c0_51] : memref<2x256xf32, #tpu.memory_space<vmem>>, vector<2x256xf32>
    tpu.vector_store %arg11[%c0_50, %c0_51], %242 {strides = array<i32>} : memref<2x256xf32, #tpu.memory_space<vmem>>, vector<2x256xf32>,
    %249 = tpu.concatenate %41, %70, %99, %128, %157, %186, %215, %244 in 0 : vector<2x256xf32>, vector<2x256xf32>, vector<2x256xf32>, vector<2x256xf32>, vector<2x256xf32>, vector<2x256xf32>, vector<2x256xf32>, vector<2x256xf32> -> vector<16x256xf32>
    %250 = arith.truncf %249 : vector<16x256xf32> to vector<16x256xbf16>
    %c0_52 = arith.constant 0 : index
    %c0_53 = arith.constant 0 : index
    %251 = vector.load %arg7[%c0_52, %c0_53] : memref<256x128xbf16, #tpu.memory_space<vmem>>, vector<256x128xbf16>
    %cst_54 = arith.constant dense<0.000000e+00> : vector<16x128xf32>
    %252 = tpu.matmul %250, %251, %cst_54 {dimension_numbers = #tpu.dot_dimension_numbers<[1], [0], [0], [1], [0, 0, 1, 1], [], []>} : vector<16x256xbf16>, vector<256x128xbf16>, vector<16x128xf32> -> vector<16x128xf32>
    %c0_55 = arith.constant 0 : index
    %c0_56 = arith.constant 0 : index
    %253 = vector.load %arg8[%c0_55, %c0_56] : memref<1x128xf32, #tpu.memory_space<vmem>>, vector<1x128xf32>
    %254 = vector.broadcast %253 : vector<1x128xf32> to vector<16x128xf32>
    %255 = arith.addf %252, %254 : vector<16x128xf32>
    %c0_57 = arith.constant 0 : index
    %c0_58 = arith.constant 0 : index
    %256 = vector.load %arg9[%c0_57, %c0_58] : memref<16x128xf32, #tpu.memory_space<vmem>>, vector<16x128xf32>
    tpu.vector_store %arg9[%c0_57, %c0_58], %255 {strides = array<i32>} : memref<16x128xf32, #tpu.memory_space<vmem>>, vector<16x128xf32>,
    return
  }
  func.func @transform_0(%arg0: i32) -> (i32, i32) {
    %c0_i32 = arith.constant 0 : i32
    %c0_i32_0 = arith.constant 0 : i32
    return %arg0, %c0_i32 : i32, i32
  }
  func.func @transform_1(%arg0: i32) -> (i32, i32) {
    %c0_i32 = arith.constant 0 : i32
    %c0_i32_0 = arith.constant 0 : i32
    %c0_i32_1 = arith.constant 0 : i32
    return %c0_i32, %c0_i32_0 : i32, i32
  }
  func.func @transform_2(%arg0: i32) -> (i32, i32) {
    %c0_i32 = arith.constant 0 : i32
    %c0_i32_0 = arith.constant 0 : i32
    %c0_i32_1 = arith.constant 0 : i32
    return %c0_i32, %c0_i32_0 : i32, i32
  }
  func.func @transform_3(%arg0: i32) -> (i32, i32) {
    %c0_i32 = arith.constant 0 : i32
    %c0_i32_0 = arith.constant 0 : i32
    %c0_i32_1 = arith.constant 0 : i32
    return %c0_i32, %c0_i32_0 : i32, i32
  }
  func.func @transform_4(%arg0: i32) -> (i32, i32) {
    %c0_i32 = arith.constant 0 : i32
    %c0_i32_0 = arith.constant 0 : i32
    %c0_i32_1 = arith.constant 0 : i32
    return %c0_i32, %c0_i32_0 : i32, i32
  }
  func.func @transform_5(%arg0: i32) -> (i32, i32) {
    %c0_i32 = arith.constant 0 : i32
    %c0_i32_0 = arith.constant 0 : i32
    %c0_i32_1 = arith.constant 0 : i32
    return %c0_i32, %c0_i32_0 : i32, i32
  }
  func.func @transform_6(%arg0: i32) -> (i32, i32) {
    %c0_i32 = arith.constant 0 : i32
    %c0_i32_0 = arith.constant 0 : i32
    %c0_i32_1 = arith.constant 0 : i32
    return %c0_i32, %c0_i32_0 : i32, i32
  }
  func.func @transform_7(%arg0: i32) -> (i32, i32) {
    %c0_i32 = arith.constant 0 : i32
    %c0_i32_0 = arith.constant 0 : i32
    %c0_i32_1 = arith.constant 0 : i32
    return %c0_i32, %c0_i32_0 : i32, i32
  }
  func.func @transform_8(%arg0: i32) -> (i32, i32) {
    %c0_i32 = arith.constant 0 : i32
    %c0_i32_0 = arith.constant 0 : i32
    return %arg0, %c0_i32 : i32, i32
  }
  func.func @transform_9(%arg0: i32) -> (i32, i32) {
    %c0_i32 = arith.constant 0 : i32
    %c0_i32_0 = arith.constant 0 : i32
    %c0_i32_1 = arith.constant 0 : i32
    return %c0_i32, %c0_i32_0 : i32, i32
  }
  func.func @transform_10(%arg0: i32) -> (i32, i32) {
    %c0_i32 = arith.constant 0 : i32
    %c0_i32_0 = arith.constant 0 : i32
    %c0_i32_1 = arith.constant 0 : i32
    return %c0_i32, %c0_i32_0 : i32, i32
  }
}

</mosaic_0001>

<llo_original>
// kernel: tpu_custom_call.1
$region0: #{tpu_custom_call.1}
  #allocation0 [shape = 'u32[]', space=smem, size = 0x4, offset = 0x4, fixed_abs, tag = 'smem constant byte address 0x4 - core index']
  #allocation1 [shape = 'u32[144,128]{1,0:T(1,128)}', space=vmem, size = 0x12000, scoped, tag = 'internal scratch']
  #allocation2 [shape = 'f32[2,256]{1,0:T(2,128)}', space=vmem, size = 0x800, scoped, tag = 'scratch operand']
  #allocation3 [shape = 'f32[2,256]{1,0:T(2,128)}', space=vmem, size = 0x800, scoped, tag = 'scratch operand']
  %s0 = inlined_call_operand.hbm [shape: f32[16,16], index: 0, kind: input, shape index: {}]
  %s1 = inlined_call_operand.hbm [shape: f32[2,256], index: 1, kind: input, shape index: {}]
  %s2 = inlined_call_operand.vmem [shape: f32[2,256], index: 2, kind: input, shape index: {}]
  %s3 = inlined_call_operand.hbm [shape: bf16[16,1024], index: 3, kind: input, shape index: {}]
  %s4 = inlined_call_operand.hbm [shape: bf16[256,1024], index: 4, kind: input, shape index: {}]
  %s5 = inlined_call_operand.vmem [shape: f32[1,1024], index: 5, kind: input, shape index: {}]
  %s6 = inlined_call_operand.hbm [shape: bf16[256,128], index: 6, kind: input, shape index: {}]
  %s7 = inlined_call_operand.vmem [shape: f32[1,128], index: 7, kind: input, shape index: {}]
  %s8 = inlined_call_operand.hbm [shape: f32[16,128], index: 8, kind: output, shape index: {0}]
  %s9 = inlined_call_operand.hbm [shape: f32[2,256], index: 9, kind: output, shape index: {1}]
  %s10 = inlined_call_operand.hbm [shape: f32[2,256], index: 10, kind: output, shape index: {2}]
  %11 = xla_tuple %s8, %s9, %s10
  %s12 = sld [smem:[#allocation0]]
  $region82: #{tpu_custom_call.1} parent=0
    _
  %s14 = ssub.s32 1, %s12
  %s15 = scalar_select 0, %s14, %s12
  $region1: #{tpu_custom_call.1} parent=0
    #allocation4 [shape = 'u8[8192]{0}', space=vmem, size = 0x2000, scoped, tag = 'input window, operand 0, single buffered']
    #allocation5 [shape = 's32[1]{0}', space=sflag, size = 0x4, scoped, tag = 'scoped memory for tpu_custom_call.1']
    #allocation6 [shape = 's32[1]{0}', space=sflag, size = 0x4, scoped, tag = 'scoped memory for tpu_custom_call.1']
    #allocation7 [shape = 'u8[2048]{0}', space=vmem, size = 0x800, scoped, tag = 'input window, operand 1, single buffered']
    #allocation8 [shape = 's32[1]{0}', space=sflag, size = 0x4, scoped, tag = 'scoped memory for tpu_custom_call.1']
    #allocation9 [shape = 'u8[32768]{0}', space=vmem, size = 0x8000, scoped, tag = 'input window, operand 3, single buffered']
    #allocation10 [shape = 'u8[524288]{0}', space=vmem, size = 0x80000, scoped, tag = 'input window, operand 4, single buffered']
    #allocation11 [shape = 's32[1]{0}', space=sflag, size = 0x4, scoped, tag = 'scoped memory for tpu_custom_call.1']
    #allocation12 [shape = 'u8[65536]{0}', space=vmem, size = 0x10000, scoped, tag = 'input window, operand 6, single buffered']
    #allocation13 [shape = 'u8[8192]{0}', space=vmem, size = 0x2000, scoped, tag = 'output window, operand 0, single buffered']
    #allocation14 [shape = 'u8[2048]{0}', space=vmem, size = 0x800, scoped, tag = 'output window, operand 1, single buffered']
    #allocation15 [shape = 's32[1]{0}', space=sflag, size = 0x4, scoped, tag = 'scoped memory for tpu_custom_call.1']
    #allocation16 [shape = 'u8[2048]{0}', space=vmem, size = 0x800, scoped, tag = 'output window, operand 2, single buffered']
    %16 = vsyncpa [#allocation5], 0
    %17 = vsyncpa [#allocation8], 0
    %18 = vsyncpa [#allocation11], 0
    %19 = vsyncpa [#allocation6], 0
    %20 = vsyncpa [#allocation15], 0
    // Predicated region
    $region2: #{tpu_custom_call.1} parent=1 // pred_check
      _
    $region3: #{tpu_custom_call.1} parent=1 // pred_check_branch
      %22 = sbr.rel (0) target = $region5
    $region4: #{tpu_custom_call.1} parent=1 // pred_region
      %s24 = ssub.s32 256, 256
      %25 = vsyncadd [#allocation5], %s24
      %s26 = sshll.u32 [#allocation4], 4
      %s27 = int_to_ptr.vmem [resolvable:$true] %s26
      %32 = dma.hbm_to_vmem [thread:$0]  %s0, 256, %s27, [#allocation5], 128, 128, 8
    $region5: #{tpu_custom_call.1} parent=1 // pred_fallthru
      _
    // Predicated region
    $region6: #{tpu_custom_call.1} parent=1 // pred_check
      _
    $region7: #{tpu_custom_call.1} parent=1 // pred_check_branch
      %34 = sbr.rel (0) target = $region9
    $region8: #{tpu_custom_call.1} parent=1 // pred_region
      %s36 = ssub.s32 64, 64
      %37 = vsyncadd [#allocation8], %s36
      %s39 = sshll.u32 [#allocation7], 4
      %s40 = int_to_ptr.vmem [resolvable:$true] %s39
      %42 = dma.hbm_to_vmem [thread:$0]  %s1, 64, %s40, [#allocation8]
    $region9: #{tpu_custom_call.1} parent=1 // pred_fallthru
      _
    // Predicated region
    $region10: #{tpu_custom_call.1} parent=1 // pred_check
      _
    $region11: #{tpu_custom_call.1} parent=1 // pred_check_branch
      %44 = sbr.rel (0) target = $region13
    $region12: #{tpu_custom_call.1} parent=1 // pred_region
      _
    $region13: #{tpu_custom_call.1} parent=1 // pred_fallthru
      _
    // Predicated region
    $region14: #{tpu_custom_call.1} parent=1 // pred_check
      _
    $region15: #{tpu_custom_call.1} parent=1 // pred_check_branch
      %46 = sbr.rel (0) target = $region17
    $region16: #{tpu_custom_call.1} parent=1 // pred_region
      %s48 = ssub.s32 1024, 1024
      %49 = vsyncadd [#allocation8], %s48
      %s50 = sshll.u32 [#allocation9], 4
      %s51 = int_to_ptr.vmem [resolvable:$true] %s50
      %56 = dma.hbm_to_vmem [thread:$0]  %s3, 1024, %s51, [#allocation8], 512, 512, 32
    $region17: #{tpu_custom_call.1} parent=1 // pred_fallthru
      _
    // Predicated region
    $region18: #{tpu_custom_call.1} parent=1 // pred_check
      _
    $region19: #{tpu_custom_call.1} parent=1 // pred_check_branch
      %58 = sbr.rel (0) target = $region21
    $region20: #{tpu_custom_call.1} parent=1 // pred_region
      %s60 = ssub.s32 16384, 16384
      %61 = vsyncadd [#allocation11], %s60
      %s62 = sshll.u32 [#allocation10], 4
      %s63 = int_to_ptr.vmem [resolvable:$true] %s62
      %68 = dma.hbm_to_vmem [thread:$0]  %s4, 16384, %s63, [#allocation11], 512, 512, 32
    $region21: #{tpu_custom_call.1} parent=1 // pred_fallthru
      _
    // Predicated region
    $region22: #{tpu_custom_call.1} parent=1 // pred_check
      _
    $region23: #{tpu_custom_call.1} parent=1 // pred_check_branch
      %70 = sbr.rel (0) target = $region25
    $region24: #{tpu_custom_call.1} parent=1 // pred_region
      _
    $region25: #{tpu_custom_call.1} parent=1 // pred_fallthru
      _
    // Predicated region
    $region26: #{tpu_custom_call.1} parent=1 // pred_check
      _
    $region27: #{tpu_custom_call.1} parent=1 // pred_check_branch
      %72 = sbr.rel (0) target = $region29
    $region28: #{tpu_custom_call.1} parent=1 // pred_region
      %s74 = ssub.s32 2048, 2048
      %75 = vsyncadd [#allocation11], %s74
      %s76 = sshll.u32 [#allocation12], 4
      %s77 = int_to_ptr.vmem [resolvable:$true] %s76
      %82 = dma.hbm_to_vmem [thread:$0]  %s6, 2048, %s77, [#allocation11], 64, 64, 4
    $region29: #{tpu_custom_call.1} parent=1 // pred_fallthru
      _
    // Predicated region
    $region30: #{tpu_custom_call.1} parent=1 // pred_check
      _
    $region31: #{tpu_custom_call.1} parent=1 // pred_check_branch
      %84 = sbr.rel (0) target = $region33
    $region32: #{tpu_custom_call.1} parent=1 // pred_region
      _
    $region33: #{tpu_custom_call.1} parent=1 // pred_fallthru
      _
    // Predicated region
    $region34: #{tpu_custom_call.1} parent=1 // pred_check
      _
    $region35: #{tpu_custom_call.1} parent=1 // pred_check_branch
      %86 = sbr.rel (0) target = $region37
    $region36: #{tpu_custom_call.1} parent=1 // pred_region
      %87 = dma.done [#allocation5], 256
    $region37: #{tpu_custom_call.1} parent=1 // pred_fallthru
      _
    // Predicated region
    $region38: #{tpu_custom_call.1} parent=1 // pred_check
      _
    $region39: #{tpu_custom_call.1} parent=1 // pred_check_branch
      %89 = sbr.rel (0) target = $region41
    $region40: #{tpu_custom_call.1} parent=1 // pred_region
      %90 = dma.done [#allocation8], 64
    $region41: #{tpu_custom_call.1} parent=1 // pred_fallthru
      _
    // Predicated region
    $region42: #{tpu_custom_call.1} parent=1 // pred_check
      _
    $region43: #{tpu_custom_call.1} parent=1 // pred_check_branch
      %92 = sbr.rel (0) target = $region45
    $region44: #{tpu_custom_call.1} parent=1 // pred_region
      %93 = dma.done [#allocation8], 1024
    $region45: #{tpu_custom_call.1} parent=1 // pred_fallthru
      _
    // Predicated region
    $region46: #{tpu_custom_call.1} parent=1 // pred_check
      _
    $region47: #{tpu_custom_call.1} parent=1 // pred_check_branch
      %95 = sbr.rel (0) target = $region49
    $region48: #{tpu_custom_call.1} parent=1 // pred_region
      %96 = dma.done [#allocation11], 16384
    $region49: #{tpu_custom_call.1} parent=1 // pred_fallthru
      _
    // Predicated region
    $region50: #{tpu_custom_call.1} parent=1 // pred_check
      _
    $region51: #{tpu_custom_call.1} parent=1 // pred_check_branch
      %98 = sbr.rel (0) target = $region53
    $region52: #{tpu_custom_call.1} parent=1 // pred_region
      %99 = dma.done [#allocation11], 2048
    $region53: #{tpu_custom_call.1} parent=1 // pred_fallthru
      _
    %p101 = scmp.eq.s32.totalorder 0, 0
    // Predicated region
    $region54: #{tpu_custom_call.1} parent=1 // pred_check
      %p102 = pneg %p101
    $region55: #{tpu_custom_call.1} parent=1 // pred_check_branch
      %104 = sbr.rel (%p102) target = $region57
    $region56: #{tpu_custom_call.1} parent=1 // pred_region
      %v105 = vld [vmem:[#allocation7] sm:$0xf]
      %106 = vst [vmem:[#allocation2] sm:$0xf] %v105
      %v107 = vld [vmem:[%s2] sm:$0xf]
      %108 = vst [vmem:[#allocation3] sm:$0xf] %v107
    $region57: #{tpu_custom_call.1} parent=1 // pred_fallthru
      _
    %v109 = vld [vmem:[#allocation4] sm:$0xff]
    %v110 = vld [vmem:[#allocation4 + $0x8] sm:$0xff]
    %v111 = vpack.c.bf16 %v110, %v109
    %v112 = vld [vmem:[#allocation9] sm:$0xff]
    %v113 = vld [vmem:[#allocation9 + $0x8] sm:$0xff]
    %v114 = vld [vmem:[#allocation9 + $0x10] sm:$0xff]
    %v115 = vld [vmem:[#allocation9 + $0x18] sm:$0xff]
    %v116 = vld [vmem:[#allocation9 + $0x20] sm:$0xff]
    %v117 = vld [vmem:[#allocation9 + $0x28] sm:$0xff]
    %v118 = vld [vmem:[#allocation9 + $0x30] sm:$0xff]
    %v119 = vld [vmem:[#allocation9 + $0x38] sm:$0xff]
    %v120 = vld [vmem:[%s5] sm:$0xff]
    %v122 = vlaneseq
    %v123 = vshrl.u32 %v122, 7
    %v124 = vsub.s32 0, %v123
    %v125 = vrot.slane %v120, %v124
    %v126 = vlaneseq
    %v127 = vshrl.u32 %v126, 7
    %v128 = vsub.s32 1, %v127
    %v129 = vrot.slane %v120, %v128
    %v130 = vlaneseq
    %v131 = vshrl.u32 %v130, 7
    %v132 = vsub.s32 2, %v131
    %v133 = vrot.slane %v120, %v132
    %v134 = vlaneseq
    %v135 = vshrl.u32 %v134, 7
    %v136 = vsub.s32 3, %v135
    %v137 = vrot.slane %v120, %v136
    %v138 = vlaneseq
    %v139 = vshrl.u32 %v138, 7
    %v140 = vsub.s32 4, %v139
    %v141 = vrot.slane %v120, %v140
    %v142 = vlaneseq
    %v143 = vshrl.u32 %v142, 7
    %v144 = vsub.s32 5, %v143
    %v145 = vrot.slane %v120, %v144
    %v146 = vlaneseq
    %v147 = vshrl.u32 %v146, 7
    %v148 = vsub.s32 6, %v147
    %v149 = vrot.slane %v120, %v148
    %v150 = vlaneseq
    %v151 = vshrl.u32 %v150, 7
    %v152 = vsub.s32 7, %v151
    %v153 = vrot.slane %v120, %v152
    %v170 = vunpack.c.l.b16 %v112
    %v171 = vunpack.c.h.b16 %v112
    %v172 = vunpack.c.l.b16 %v113
    %v173 = vunpack.c.h.b16 %v113
    %v174 = vunpack.c.l.b16 %v114
    %v175 = vunpack.c.h.b16 %v114
    %v176 = vunpack.c.l.b16 %v115
    %v177 = vunpack.c.h.b16 %v115
    %v178 = vunpack.c.l.b16 %v116
    %v179 = vunpack.c.h.b16 %v116
    %v180 = vunpack.c.l.b16 %v117
    %v181 = vunpack.c.h.b16 %v117
    %v182 = vunpack.c.l.b16 %v118
    %v183 = vunpack.c.h.b16 %v118
    %v184 = vunpack.c.l.b16 %v119
    %v185 = vunpack.c.h.b16 %v119
    %v186 = vpack.c.b16 %v178, %v170
    %v187 = vpack.c.b16 %v179, %v171
    %v188 = vpack.c.b16 %v180, %v172
    %v189 = vpack.c.b16 %v181, %v173
    %v190 = vpack.c.b16 %v182, %v174
    %v191 = vpack.c.b16 %v183, %v175
    %v192 = vpack.c.b16 %v184, %v176
    %v193 = vpack.c.b16 %v185, %v177
    %vm202 = vcmask 130048
    %v204 = vsel %vm202, %v111, 0
    %206 = vmatprep.subr.bf16.mxu0 %v187
    %207 = vmatpush1.bf16.msra.mxu0 %v186
    %208 = vmatprep.subr.bf16.mxu0 0
    %209 = vmatpush1.bf16.msra.mxu0 0
    %210 = vmatprep.subr.bf16.mxu0 0
    %211 = vmatpush1.bf16.msra.mxu0 0
    %212 = vmatprep.subr.bf16.mxu0 0
    %213 = vmatpush1.bf16.msra.mxu0 0
    %214 = vmatprep.subr.bf16.mxu0 0
    %215 = vmatpush1.bf16.msra.mxu0 0
    %216 = vmatprep.subr.bf16.mxu0 0
    %217 = vmatpush1.bf16.msra.mxu0 0
    %218 = vmatprep.subr.bf16.mxu0 0
    %219 = vmatpush1.bf16.msra.mxu0 0
    %220 = vmatprep.subr.bf16.mxu0 0
    %221 = vmatpush1.bf16.msra.mxu0 0
    %222 = vmatprep.subr.bf16.mxu0 0
    %223 = vmatpush1.bf16.msra.mxu0 0
    %224 = vmatprep.subr.bf16.mxu0 0
    %225 = vmatpush1.bf16.msra.mxu0 0
    %226 = vmatprep.subr.bf16.mxu0 0
    %227 = vmatpush1.bf16.msra.mxu0 0
    %228 = vmatprep.subr.bf16.mxu0 0
    %229 = vmatpush1.bf16.msra.mxu0 0
    %230 = vmatprep.subr.bf16.mxu0 0
    %231 = vmatpush1.bf16.msra.mxu0 0
    %232 = vmatprep.subr.bf16.mxu0 0
    %233 = vmatpush1.bf16.msra.mxu0 0
    %234 = vmatprep.subr.bf16.mxu0 0
    %235 = vmatpush1.bf16.msra.mxu0 0
    %236 = vmatprep.subr.bf16.mxu0 0
    %237 = vmatpush1.bf16.msra.mxu0 0
    %238 = vmatprep.mubr.bf16.mxu0 0
    %239 = vmatmul.mubr.bf16.gmra.mrb[0].mxu0 %v204
    %v240 = vpop.f32.mrb[0].mxu0
    %v241 = vadd.f32 %v125, %v240
    %v242 = vpop.f32.mrb[0].mxu0
    %v243 = vadd.f32 %v129, %v242
    %v244 = vpop.f32.mrb[0].mxu0
    %v245 = vadd.f32 %v125, %v244
    %v246 = vpop.f32.mrb[0].mxu0
    %v247 = vadd.f32 %v129, %v246
    %248 = vdwg.mxu0
    %249 = vmatprep.subr.bf16.mxu0 %v189
    %250 = vmatpush1.bf16.msra.mxu0 %v188
    %251 = vmatprep.subr.bf16.mxu0 0
    %252 = vmatpush1.bf16.msra.mxu0 0
    %253 = vmatprep.subr.bf16.mxu0 0
    %254 = vmatpush1.bf16.msra.mxu0 0
    %255 = vmatprep.subr.bf16.mxu0 0
    %256 = vmatpush1.bf16.msra.mxu0 0
    %257 = vmatprep.subr.bf16.mxu0 0
    %258 = vmatpush1.bf16.msra.mxu0 0
    %259 = vmatprep.subr.bf16.mxu0 0
    %260 = vmatpush1.bf16.msra.mxu0 0
    %261 = vmatprep.subr.bf16.mxu0 0
    %262 = vmatpush1.bf16.msra.mxu0 0
    %263 = vmatprep.subr.bf16.mxu0 0
    %264 = vmatpush1.bf16.msra.mxu0 0
    %265 = vmatprep.subr.bf16.mxu0 0
    %266 = vmatpush1.bf16.msra.mxu0 0
    %267 = vmatprep.subr.bf16.mxu0 0
    %268 = vmatpush1.bf16.msra.mxu0 0
    %269 = vmatprep.subr.bf16.mxu0 0
    %270 = vmatpush1.bf16.msra.mxu0 0
    %271 = vmatprep.subr.bf16.mxu0 0
    %272 = vmatpush1.bf16.msra.mxu0 0
    %273 = vmatprep.subr.bf16.mxu0 0
    %274 = vmatpush1.bf16.msra.mxu0 0
    %275 = vmatprep.subr.bf16.mxu0 0
    %276 = vmatpush1.bf16.msra.mxu0 0
    %277 = vmatprep.subr.bf16.mxu0 0
    %278 = vmatpush1.bf16.msra.mxu0 0
    %279 = vmatprep.subr.bf16.mxu0 0
    %280 = vmatpush1.bf16.msra.mxu0 0
    %281 = vmatprep.mubr.bf16.mxu0 0
    %282 = vmatmul.mubr.bf16.gmra.mrb[0].mxu0 %v204
    %v283 = vpop.f32.mrb[0].mxu0
    %v284 = vadd.f32 %v133, %v283
    %v285 = vpop.f32.mrb[0].mxu0
    %v286 = vadd.f32 %v137, %v285
    %v287 = vpop.f32.mrb[0].mxu0
    %v288 = vadd.f32 %v133, %v287
    %v289 = vpop.f32.mrb[0].mxu0
    %v290 = vadd.f32 %v137, %v289
    %291 = vdwg.mxu0
    %292 = vmatprep.subr.bf16.mxu0 %v191
    %293 = vmatpush1.bf16.msra.mxu0 %v190
    %294 = vmatprep.subr.bf16.mxu0 0
    %295 = vmatpush1.bf16.msra.mxu0 0
    %296 = vmatprep.subr.bf16.mxu0 0
    %297 = vmatpush1.bf16.msra.mxu0 0
    %298 = vmatprep.subr.bf16.mxu0 0
    %299 = vmatpush1.bf16.msra.mxu0 0
    %300 = vmatprep.subr.bf16.mxu0 0
    %301 = vmatpush1.bf16.msra.mxu0 0
    %302 = vmatprep.subr.bf16.mxu0 0
    %303 = vmatpush1.bf16.msra.mxu0 0
    %304 = vmatprep.subr.bf16.mxu0 0
    %305 = vmatpush1.bf16.msra.mxu0 0
    %306 = vmatprep.subr.bf16.mxu0 0
    %307 = vmatpush1.bf16.msra.mxu0 0
    %308 = vmatprep.subr.bf16.mxu0 0
    %309 = vmatpush1.bf16.msra.mxu0 0
    %310 = vmatprep.subr.bf16.mxu0 0
    %311 = vmatpush1.bf16.msra.mxu0 0
    %312 = vmatprep.subr.bf16.mxu0 0
    %313 = vmatpush1.bf16.msra.mxu0 0
    %314 = vmatprep.subr.bf16.mxu0 0
    %315 = vmatpush1.bf16.msra.mxu0 0
    %316 = vmatprep.subr.bf16.mxu0 0
    %317 = vmatpush1.bf16.msra.mxu0 0
    %318 = vmatprep.subr.bf16.mxu0 0
    %319 = vmatpush1.bf16.msra.mxu0 0
    %320 = vmatprep.subr.bf16.mxu0 0
    %321 = vmatpush1.bf16.msra.mxu0 0
    %322 = vmatprep.subr.bf16.mxu0 0
    %323 = vmatpush1.bf16.msra.mxu0 0
    %324 = vmatprep.mubr.bf16.mxu0 0
    %325 = vmatmul.mubr.bf16.gmra.mrb[0].mxu0 %v204
    %v326 = vpop.f32.mrb[0].mxu0
    %v327 = vadd.f32 %v141, %v326
    %v328 = vpop.f32.mrb[0].mxu0
    %v329 = vadd.f32 %v145, %v328
    %v330 = vpop.f32.mrb[0].mxu0
    %v331 = vadd.f32 %v141, %v330
    %v332 = vpop.f32.mrb[0].mxu0
    %v333 = vadd.f32 %v145, %v332
    %334 = vdwg.mxu0
    %335 = vmatprep.subr.bf16.mxu0 %v193
    %336 = vmatpush1.bf16.msra.mxu0 %v192
    %337 = vmatprep.subr.bf16.mxu0 0
    %338 = vmatpush1.bf16.msra.mxu0 0
    %339 = vmatprep.subr.bf16.mxu0 0
    %340 = vmatpush1.bf16.msra.mxu0 0
    %341 = vmatprep.subr.bf16.mxu0 0
    %342 = vmatpush1.bf16.msra.mxu0 0
    %343 = vmatprep.subr.bf16.mxu0 0
    %344 = vmatpush1.bf16.msra.mxu0 0
    %345 = vmatprep.subr.bf16.mxu0 0
    %346 = vmatpush1.bf16.msra.mxu0 0
    %347 = vmatprep.subr.bf16.mxu0 0
    %348 = vmatpush1.bf16.msra.mxu0 0
    %349 = vmatprep.subr.bf16.mxu0 0
    %350 = vmatpush1.bf16.msra.mxu0 0
    %351 = vmatprep.subr.bf16.mxu0 0
    %352 = vmatpush1.bf16.msra.mxu0 0
    %353 = vmatprep.subr.bf16.mxu0 0
    %354 = vmatpush1.bf16.msra.mxu0 0
    %355 = vmatprep.subr.bf16.mxu0 0
    %356 = vmatpush1.bf16.msra.mxu0 0
    %357 = vmatprep.subr.bf16.mxu0 0
    %358 = vmatpush1.bf16.msra.mxu0 0
    %359 = vmatprep.subr.bf16.mxu0 0
    %360 = vmatpush1.bf16.msra.mxu0 0
    %361 = vmatprep.subr.bf16.mxu0 0
    %362 = vmatpush1.bf16.msra.mxu0 0
    %363 = vmatprep.subr.bf16.mxu0 0
    %364 = vmatpush1.bf16.msra.mxu0 0
    %365 = vmatprep.subr.bf16.mxu0 0
    %366 = vmatpush1.bf16.msra.mxu0 0
    %367 = vmatprep.mubr.bf16.mxu0 0
    %368 = vmatmul.mubr.bf16.gmra.mrb[0].mxu0 %v204
    %v369 = vpop.f32.mrb[0].mxu0
    %v370 = vadd.f32 %v149, %v369
    %v371 = vpop.f32.mrb[0].mxu0
    %v372 = vadd.f32 %v153, %v371
    %v373 = vpop.f32.mrb[0].mxu0
    %v374 = vadd.f32 %v149, %v373
    %v375 = vpop.f32.mrb[0].mxu0
    %v376 = vadd.f32 %v153, %v375
    %377 = vdwg.mxu0
    %v378 = vld [vmem:[#allocation10] sm:$0xff]
    %v379 = vld [vmem:[#allocation10 + $0x8] sm:$0xff]
    %v380 = vld [vmem:[#allocation10 + $0x10] sm:$0xff]
    %v381 = vld [vmem:[#allocation10 + $0x18] sm:$0xff]
    %v382 = vld [vmem:[#allocation10 + $0x20] sm:$0xff]
    %v383 = vld [vmem:[#allocation10 + $0x28] sm:$0xff]
    %v384 = vld [vmem:[#allocation10 + $0x30] sm:$0xff]
    %v385 = vld [vmem:[#allocation10 + $0x38] sm:$0xff]
    %v386 = vld [vmem:[#allocation10 + $0x40] sm:$0xff]
    %v387 = vld [vmem:[#allocation10 + $0x48] sm:$0xff]
    %v388 = vld [vmem:[#allocation10 + $0x50] sm:$0xff]
    %v389 = vld [vmem:[#allocation10 + $0x58] sm:$0xff]
    %v390 = vld [vmem:[#allocation10 + $0x60] sm:$0xff]
    %v391 = vld [vmem:[#allocation10 + $0x68] sm:$0xff]
    %v392 = vld [vmem:[#allocation10 + $0x70] sm:$0xff]
    %v393 = vld [vmem:[#allocation10 + $0x78] sm:$0xff]
    %v394 = vld [vmem:[#allocation10 + $0x80] sm:$0xff]
    %v395 = vld [vmem:[#allocation10 + $0x88] sm:$0xff]
    %v396 = vld [vmem:[#allocation10 + $0x90] sm:$0xff]
    %v397 = vld [vmem:[#allocation10 + $0x98] sm:$0xff]
    %v398 = vld [vmem:[#allocation10 + $0xa0] sm:$0xff]
    %v399 = vld [vmem:[#allocation10 + $0xa8] sm:$0xff]
    %v400 = vld [vmem:[#allocation10 + $0xb0] sm:$0xff]
    %v401 = vld [vmem:[#allocation10 + $0xb8] sm:$0xff]
    %v402 = vld [vmem:[#allocation10 + $0xc0] sm:$0xff]
    %v403 = vld [vmem:[#allocation10 + $0xc8] sm:$0xff]
    %v404 = vld [vmem:[#allocation10 + $0xd0] sm:$0xff]
    %v405 = vld [vmem:[#allocation10 + $0xd8] sm:$0xff]
    %v406 = vld [vmem:[#allocation10 + $0xe0] sm:$0xff]
    %v407 = vld [vmem:[#allocation10 + $0xe8] sm:$0xff]
    %v408 = vld [vmem:[#allocation10 + $0xf0] sm:$0xff]
    %v409 = vld [vmem:[#allocation10 + $0xf8] sm:$0xff]
    %v410 = vld [vmem:[#allocation10 + $0x100] sm:$0xff]
    %v411 = vld [vmem:[#allocation10 + $0x108] sm:$0xff]
    %v412 = vld [vmem:[#allocation10 + $0x110] sm:$0xff]
    %v413 = vld [vmem:[#allocation10 + $0x118] sm:$0xff]
    %v414 = vld [vmem:[#allocation10 + $0x120] sm:$0xff]
    %v415 = vld [vmem:[#allocation10 + $0x128] sm:$0xff]
    %v416 = vld [vmem:[#allocation10 + $0x130] sm:$0xff]
    %v417 = vld [vmem:[#allocation10 + $0x138] sm:$0xff]
    %v418 = vld [vmem:[#allocation10 + $0x140] sm:$0xff]
    %v419 = vld [vmem:[#allocation10 + $0x148] sm:$0xff]
    %v420 = vld [vmem:[#allocation10 + $0x150] sm:$0xff]
    %v421 = vld [vmem:[#allocation10 + $0x158] sm:$0xff]
    %v422 = vld [vmem:[#allocation10 + $0x160] sm:$0xff]
    %v423 = vld [vmem:[#allocation10 + $0x168] sm:$0xff]
    %v424 = vld [vmem:[#allocation10 + $0x170] sm:$0xff]
    %v425 = vld [vmem:[#allocation10 + $0x178] sm:$0xff]
    %v426 = vld [vmem:[#allocation10 + $0x180] sm:$0xff]
    %v427 = vld [vmem:[#allocation10 + $0x188] sm:$0xff]
    %v428 = vld [vmem:[#allocation10 + $0x190] sm:$0xff]
    %v429 = vld [vmem:[#allocation10 + $0x198] sm:$0xff]
    %v430 = vld [vmem:[#allocation10 + $0x1a0] sm:$0xff]
    %v431 = vld [vmem:[#allocation10 + $0x1a8] sm:$0xff]
    %v432 = vld [vmem:[#allocation10 + $0x1b0] sm:$0xff]
    %v433 = vld [vmem:[#allocation10 + $0x1b8] sm:$0xff]
    %v434 = vld [vmem:[#allocation10 + $0x1c0] sm:$0xff]
    %v435 = vld [vmem:[#allocation10 + $0x1c8] sm:$0xff]
    %v436 = vld [vmem:[#allocation10 + $0x1d0] sm:$0xff]
    %v437 = vld [vmem:[#allocation10 + $0x1d8] sm:$0xff]
    %v438 = vld [vmem:[#allocation10 + $0x1e0] sm:$0xff]
    %v439 = vld [vmem:[#allocation10 + $0x1e8] sm:$0xff]
    %v440 = vld [vmem:[#allocation10 + $0x1f0] sm:$0xff]
    %v441 = vld [vmem:[#allocation10 + $0x1f8] sm:$0xff]
    %v442 = vld [vmem:[#allocation10 + $0x200] sm:$0xff]
    %v443 = vld [vmem:[#allocation10 + $0x208] sm:$0xff]
    %v444 = vld [vmem:[#allocation10 + $0x210] sm:$0xff]
    %v445 = vld [vmem:[#allocation10 + $0x218] sm:$0xff]
    %v446 = vld [vmem:[#allocation10 + $0x220] sm:$0xff]
    %v447 = vld [vmem:[#allocation10 + $0x228] sm:$0xff]
    %v448 = vld [vmem:[#allocation10 + $0x230] sm:$0xff]
    %v449 = vld [vmem:[#allocation10 + $0x238] sm:$0xff]
    %v450 = vld [vmem:[#allocation10 + $0x240] sm:$0xff]
    %v451 = vld [vmem:[#allocation10 + $0x248] sm:$0xff]
    %v452 = vld [vmem:[#allocation10 + $0x250] sm:$0xff]
    %v453 = vld [vmem:[#allocation10 + $0x258] sm:$0xff]
    %v454 = vld [vmem:[#allocation10 + $0x260] sm:$0xff]
    %v455 = vld [vmem:[#allocation10 + $0x268] sm:$0xff]
    %v456 = vld [vmem:[#allocation10 + $0x270] sm:$0xff]
    %v457 = vld [vmem:[#allocation10 + $0x278] sm:$0xff]
    %v458 = vld [vmem:[#allocation10 + $0x280] sm:$0xff]
    %v459 = vld [vmem:[#allocation10 + $0x288] sm:$0xff]
    %v460 = vld [vmem:[#allocation10 + $0x290] sm:$0xff]
    %v461 = vld [vmem:[#allocation10 + $0x298] sm:$0xff]
    %v462 = vld [vmem:[#allocation10 + $0x2a0] sm:$0xff]
    %v463 = vld [vmem:[#allocation10 + $0x2a8] sm:$0xff]
    %v464 = vld [vmem:[#allocation10 + $0x2b0] sm:$0xff]
    %v465 = vld [vmem:[#allocation10 + $0x2b8] sm:$0xff]
    %v466 = vld [vmem:[#allocation10 + $0x2c0] sm:$0xff]
    %v467 = vld [vmem:[#allocation10 + $0x2c8] sm:$0xff]
    %v468 = vld [vmem:[#allocation10 + $0x2d0] sm:$0xff]
    %v469 = vld [vmem:[#allocation10 + $0x2d8] sm:$0xff]
    %v470 = vld [vmem:[#allocation10 + $0x2e0] sm:$0xff]
    %v471 = vld [vmem:[#allocation10 + $0x2e8] sm:$0xff]
    %v472 = vld [vmem:[#allocation10 + $0x2f0] sm:$0xff]
    %v473 = vld [vmem:[#allocation10 + $0x2f8] sm:$0xff]
    %v474 = vld [vmem:[#allocation10 + $0x300] sm:$0xff]
    %v475 = vld [vmem:[#allocation10 + $0x308] sm:$0xff]
    %v476 = vld [vmem:[#allocation10 + $0x310] sm:$0xff]
    %v477 = vld [vmem:[#allocation10 + $0x318] sm:$0xff]
    %v478 = vld [vmem:[#allocation10 + $0x320] sm:$0xff]
    %v479 = vld [vmem:[#allocation10 + $0x328] sm:$0xff]
    %v480 = vld [vmem:[#allocation10 + $0x330] sm:$0xff]
    %v481 = vld [vmem:[#allocation10 + $0x338] sm:$0xff]
    %v482 = vld [vmem:[#allocation10 + $0x340] sm:$0xff]
    %v483 = vld [vmem:[#allocation10 + $0x348] sm:$0xff]
    %v484 = vld [vmem:[#allocation10 + $0x350] sm:$0xff]
    %v485 = vld [vmem:[#allocation10 + $0x358] sm:$0xff]
    %v486 = vld [vmem:[#allocation10 + $0x360] sm:$0xff]
    %v487 = vld [vmem:[#allocation10 + $0x368] sm:$0xff]
    %v488 = vld [vmem:[#allocation10 + $0x370] sm:$0xff]
    %v489 = vld [vmem:[#allocation10 + $0x378] sm:$0xff]
    %v490 = vld [vmem:[#allocation10 + $0x380] sm:$0xff]
    %v491 = vld [vmem:[#allocation10 + $0x388] sm:$0xff]
    %v492 = vld [vmem:[#allocation10 + $0x390] sm:$0xff]
    %v493 = vld [vmem:[#allocation10 + $0x398] sm:$0xff]
    %v494 = vld [vmem:[#allocation10 + $0x3a0] sm:$0xff]
    %v495 = vld [vmem:[#allocation10 + $0x3a8] sm:$0xff]
    %v496 = vld [vmem:[#allocation10 + $0x3b0] sm:$0xff]
    %v497 = vld [vmem:[#allocation10 + $0x3b8] sm:$0xff]
    %v498 = vld [vmem:[#allocation10 + $0x3c0] sm:$0xff]
    %v499 = vld [vmem:[#allocation10 + $0x3c8] sm:$0xff]
    %v500 = vld [vmem:[#allocation10 + $0x3d0] sm:$0xff]
    %v501 = vld [vmem:[#allocation10 + $0x3d8] sm:$0xff]
    %v502 = vld [vmem:[#allocation10 + $0x3e0] sm:$0xff]
    %v503 = vld [vmem:[#allocation10 + $0x3e8] sm:$0xff]
    %v504 = vld [vmem:[#allocation10 + $0x3f0] sm:$0xff]
    %v505 = vld [vmem:[#allocation10 + $0x3f8] sm:$0xff]
    %v506 = vld [vmem:[#allocation2] sm:$0xf]
    %v507 = vld [vmem:[#allocation3] sm:$0xf]
    %v510 = vunpack.c.l.s4 1983009808
    %v511 = vunpack.c.0.s8 %v510
    %v512 = vlaneseq
    %v513 = vshrl.u32 %v512, 7
    %v514 = vsub.s32 %v511, %v513
    %v515 = vrot.slane %v506, %v514
    %v516 = vcombine.high %v515, %v515
    %v519 = vpack.c.bf16 %v515, %v515
    %v520 = vpack.c.bf16 %v516, %v516
    %v649 = vunpack.c.l.b16 %v378
    %v650 = vunpack.c.h.b16 %v378
    %v651 = vunpack.c.l.b16 %v379
    %v652 = vunpack.c.h.b16 %v379
    %v653 = vunpack.c.l.b16 %v380
    %v654 = vunpack.c.h.b16 %v380
    %v655 = vunpack.c.l.b16 %v381
    %v656 = vunpack.c.h.b16 %v381
    %v657 = vunpack.c.l.b16 %v382
    %v658 = vunpack.c.h.b16 %v382
    %v659 = vunpack.c.l.b16 %v383
    %v660 = vunpack.c.h.b16 %v383
    %v661 = vunpack.c.l.b16 %v384
    %v662 = vunpack.c.h.b16 %v384
    %v663 = vunpack.c.l.b16 %v385
    %v664 = vunpack.c.h.b16 %v385
    %v665 = vunpack.c.l.b16 %v386
    %v666 = vunpack.c.h.b16 %v386
    %v667 = vunpack.c.l.b16 %v387
    %v668 = vunpack.c.h.b16 %v387
    %v669 = vunpack.c.l.b16 %v388
    %v670 = vunpack.c.h.b16 %v388
    %v671 = vunpack.c.l.b16 %v389
    %v672 = vunpack.c.h.b16 %v389
    %v673 = vunpack.c.l.b16 %v390
    %v674 = vunpack.c.h.b16 %v390
    %v675 = vunpack.c.l.b16 %v391
    %v676 = vunpack.c.h.b16 %v391
    %v677 = vunpack.c.l.b16 %v392
    %v678 = vunpack.c.h.b16 %v392
    %v679 = vunpack.c.l.b16 %v393
    %v680 = vunpack.c.h.b16 %v393
    %v681 = vunpack.c.l.b16 %v394
    %v682 = vunpack.c.h.b16 %v394
    %v683 = vunpack.c.l.b16 %v395
    %v684 = vunpack.c.h.b16 %v395
    %v685 = vunpack.c.l.b16 %v396
    %v686 = vunpack.c.h.b16 %v396
    %v687 = vunpack.c.l.b16 %v397
    %v688 = vunpack.c.h.b16 %v397
    %v689 = vunpack.c.l.b16 %v398
    %v690 = vunpack.c.h.b16 %v398
    %v691 = vunpack.c.l.b16 %v399
    %v692 = vunpack.c.h.b16 %v399
    %v693 = vunpack.c.l.b16 %v400
    %v694 = vunpack.c.h.b16 %v400
    %v695 = vunpack.c.l.b16 %v401
    %v696 = vunpack.c.h.b16 %v401
    %v697 = vunpack.c.l.b16 %v402
    %v698 = vunpack.c.h.b16 %v402
    %v699 = vunpack.c.l.b16 %v403
    %v700 = vunpack.c.h.b16 %v403
    %v701 = vunpack.c.l.b16 %v404
    %v702 = vunpack.c.h.b16 %v404
    %v703 = vunpack.c.l.b16 %v405
    %v704 = vunpack.c.h.b16 %v405
    %v705 = vunpack.c.l.b16 %v406
    %v706 = vunpack.c.h.b16 %v406
    %v707 = vunpack.c.l.b16 %v407
    %v708 = vunpack.c.h.b16 %v407
    %v709 = vunpack.c.l.b16 %v408
    %v710 = vunpack.c.h.b16 %v408
    %v711 = vunpack.c.l.b16 %v409
    %v712 = vunpack.c.h.b16 %v409
    %v713 = vunpack.c.l.b16 %v410
    %v714 = vunpack.c.h.b16 %v410
    %v715 = vunpack.c.l.b16 %v411
    %v716 = vunpack.c.h.b16 %v411
    %v717 = vunpack.c.l.b16 %v412
    %v718 = vunpack.c.h.b16 %v412
    %v719 = vunpack.c.l.b16 %v413
    %v720 = vunpack.c.h.b16 %v413
    %v721 = vunpack.c.l.b16 %v414
    %v722 = vunpack.c.h.b16 %v414
    %v723 = vunpack.c.l.b16 %v415
    %v724 = vunpack.c.h.b16 %v415
    %v725 = vunpack.c.l.b16 %v416
    %v726 = vunpack.c.h.b16 %v416
    %v727 = vunpack.c.l.b16 %v417
    %v728 = vunpack.c.h.b16 %v417
    %v729 = vunpack.c.l.b16 %v418
    %v730 = vunpack.c.h.b16 %v418
    %v731 = vunpack.c.l.b16 %v419
    %v732 = vunpack.c.h.b16 %v419
    %v733 = vunpack.c.l.b16 %v420
    %v734 = vunpack.c.h.b16 %v420
    %v735 = vunpack.c.l.b16 %v421
    %v736 = vunpack.c.h.b16 %v421
    %v737 = vunpack.c.l.b16 %v422
    %v738 = vunpack.c.h.b16 %v422
    %v739 = vunpack.c.l.b16 %v423
    %v740 = vunpack.c.h.b16 %v423
    %v741 = vunpack.c.l.b16 %v424
    %v742 = vunpack.c.h.b16 %v424
    %v743 = vunpack.c.l.b16 %v425
    %v744 = vunpack.c.h.b16 %v425
    %v745 = vunpack.c.l.b16 %v426
    %v746 = vunpack.c.h.b16 %v426
    %v747 = vunpack.c.l.b16 %v427
    %v748 = vunpack.c.h.b16 %v427
    %v749 = vunpack.c.l.b16 %v428
    %v750 = vunpack.c.h.b16 %v428
    %v751 = vunpack.c.l.b16 %v429
    %v752 = vunpack.c.h.b16 %v429
    %v753 = vunpack.c.l.b16 %v430
    %v754 = vunpack.c.h.b16 %v430
    %v755 = vunpack.c.l.b16 %v431
    %v756 = vunpack.c.h.b16 %v431
    %v757 = vunpack.c.l.b16 %v432
    %v758 = vunpack.c.h.b16 %v432
    %v759 = vunpack.c.l.b16 %v433
    %v760 = vunpack.c.h.b16 %v433
    %v761 = vunpack.c.l.b16 %v434
    %v762 = vunpack.c.h.b16 %v434
    %v763 = vunpack.c.l.b16 %v435
    %v764 = vunpack.c.h.b16 %v435
    %v765 = vunpack.c.l.b16 %v436
    %v766 = vunpack.c.h.b16 %v436
    %v767 = vunpack.c.l.b16 %v437
    %v768 = vunpack.c.h.b16 %v437
    %v769 = vunpack.c.l.b16 %v438
    %v770 = vunpack.c.h.b16 %v438
    %v771 = vunpack.c.l.b16 %v439
    %v772 = vunpack.c.h.b16 %v439
    %v773 = vunpack.c.l.b16 %v440
    %v774 = vunpack.c.h.b16 %v440
    %v775 = vunpack.c.l.b16 %v441
    %v776 = vunpack.c.h.b16 %v441
    %v777 = vunpack.c.l.b16 %v442
    %v778 = vunpack.c.h.b16 %v442
    %v779 = vunpack.c.l.b16 %v443
    %v780 = vunpack.c.h.b16 %v443
    %v781 = vunpack.c.l.b16 %v444
    %v782 = vunpack.c.h.b16 %v444
    %v783 = vunpack.c.l.b16 %v445
    %v784 = vunpack.c.h.b16 %v445
    %v785 = vunpack.c.l.b16 %v446
    %v786 = vunpack.c.h.b16 %v446
    %v787 = vunpack.c.l.b16 %v447
    %v788 = vunpack.c.h.b16 %v447
    %v789 = vunpack.c.l.b16 %v448
    %v790 = vunpack.c.h.b16 %v448
    %v791 = vunpack.c.l.b16 %v449
    %v792 = vunpack.c.h.b16 %v449
    %v793 = vunpack.c.l.b16 %v450
    %v794 = vunpack.c.h.b16 %v450
    %v795 = vunpack.c.l.b16 %v451
    %v796 = vunpack.c.h.b16 %v451
    %v797 = vunpack.c.l.b16 %v452
    %v798 = vunpack.c.h.b16 %v452
    %v799 = vunpack.c.l.b16 %v453
    %v800 = vunpack.c.h.b16 %v453
    %v801 = vunpack.c.l.b16 %v454
    %v802 = vunpack.c.h.b16 %v454
    %v803 = vunpack.c.l.b16 %v455
    %v804 = vunpack.c.h.b16 %v455
    %v805 = vunpack.c.l.b16 %v456
    %v806 = vunpack.c.h.b16 %v456
    %v807 = vunpack.c.l.b16 %v457
    %v808 = vunpack.c.h.b16 %v457
    %v809 = vunpack.c.l.b16 %v458
    %v810 = vunpack.c.h.b16 %v458
    %v811 = vunpack.c.l.b16 %v459
    %v812 = vunpack.c.h.b16 %v459
    %v813 = vunpack.c.l.b16 %v460
    %v814 = vunpack.c.h.b16 %v460
    %v815 = vunpack.c.l.b16 %v461
    %v816 = vunpack.c.h.b16 %v461
    %v817 = vunpack.c.l.b16 %v462
    %v818 = vunpack.c.h.b16 %v462
    %v819 = vunpack.c.l.b16 %v463
    %v820 = vunpack.c.h.b16 %v463
    %v821 = vunpack.c.l.b16 %v464
    %v822 = vunpack.c.h.b16 %v464
    %v823 = vunpack.c.l.b16 %v465
    %v824 = vunpack.c.h.b16 %v465
    %v825 = vunpack.c.l.b16 %v466
    %v826 = vunpack.c.h.b16 %v466
    %v827 = vunpack.c.l.b16 %v467
    %v828 = vunpack.c.h.b16 %v467
    %v829 = vunpack.c.l.b16 %v468
    %v830 = vunpack.c.h.b16 %v468
    %v831 = vunpack.c.l.b16 %v469
    %v832 = vunpack.c.h.b16 %v469
    %v833 = vunpack.c.l.b16 %v470
    %v834 = vunpack.c.h.b16 %v470
    %v835 = vunpack.c.l.b16 %v471
    %v836 = vunpack.c.h.b16 %v471
    %v837 = vunpack.c.l.b16 %v472
    %v838 = vunpack.c.h.b16 %v472
    %v839 = vunpack.c.l.b16 %v473
    %v840 = vunpack.c.h.b16 %v473
    %v841 = vunpack.c.l.b16 %v474
    %v842 = vunpack.c.h.b16 %v474
    %v843 = vunpack.c.l.b16 %v475
    %v844 = vunpack.c.h.b16 %v475
    %v845 = vunpack.c.l.b16 %v476
    %v846 = vunpack.c.h.b16 %v476
    %v847 = vunpack.c.l.b16 %v477
    %v848 = vunpack.c.h.b16 %v477
    %v849 = vunpack.c.l.b16 %v478
    %v850 = vunpack.c.h.b16 %v478
    %v851 = vunpack.c.l.b16 %v479
    %v852 = vunpack.c.h.b16 %v479
    %v853 = vunpack.c.l.b16 %v480
    %v854 = vunpack.c.h.b16 %v480
    %v855 = vunpack.c.l.b16 %v481
    %v856 = vunpack.c.h.b16 %v481
    %v857 = vunpack.c.l.b16 %v482
    %v858 = vunpack.c.h.b16 %v482
    %v859 = vunpack.c.l.b16 %v483
    %v860 = vunpack.c.h.b16 %v483
    %v861 = vunpack.c.l.b16 %v484
    %v862 = vunpack.c.h.b16 %v484
    %v863 = vunpack.c.l.b16 %v485
    %v864 = vunpack.c.h.b16 %v485
    %v865 = vunpack.c.l.b16 %v486
    %v866 = vunpack.c.h.b16 %v486
    %v867 = vunpack.c.l.b16 %v487
    %v868 = vunpack.c.h.b16 %v487
    %v869 = vunpack.c.l.b16 %v488
    %v870 = vunpack.c.h.b16 %v488
    %v871 = vunpack.c.l.b16 %v489
    %v872 = vunpack.c.h.b16 %v489
    %v873 = vunpack.c.l.b16 %v490
    %v874 = vunpack.c.h.b16 %v490
    %v875 = vunpack.c.l.b16 %v491
    %v876 = vunpack.c.h.b16 %v491
    %v877 = vunpack.c.l.b16 %v492
    %v878 = vunpack.c.h.b16 %v492
    %v879 = vunpack.c.l.b16 %v493
    %v880 = vunpack.c.h.b16 %v493
    %v881 = vunpack.c.l.b16 %v494
    %v882 = vunpack.c.h.b16 %v494
    %v883 = vunpack.c.l.b16 %v495
    %v884 = vunpack.c.h.b16 %v495
    %v885 = vunpack.c.l.b16 %v496
    %v886 = vunpack.c.h.b16 %v496
    %v887 = vunpack.c.l.b16 %v497
    %v888 = vunpack.c.h.b16 %v497
    %v889 = vunpack.c.l.b16 %v498
    %v890 = vunpack.c.h.b16 %v498
    %v891 = vunpack.c.l.b16 %v499
    %v892 = vunpack.c.h.b16 %v499
    %v893 = vunpack.c.l.b16 %v500
    %v894 = vunpack.c.h.b16 %v500
    %v895 = vunpack.c.l.b16 %v501
    %v896 = vunpack.c.h.b16 %v501
    %v897 = vunpack.c.l.b16 %v502
    %v898 = vunpack.c.h.b16 %v502
    %v899 = vunpack.c.l.b16 %v503
    %v900 = vunpack.c.h.b16 %v503
    %v901 = vunpack.c.l.b16 %v504
    %v902 = vunpack.c.h.b16 %v504
    %v903 = vunpack.c.l.b16 %v505
    %v904 = vunpack.c.h.b16 %v505
    %v905 = vpack.c.b16 %v657, %v649
    %v906 = vpack.c.b16 %v658, %v650
    %v907 = vpack.c.b16 %v659, %v651
    %v908 = vpack.c.b16 %v660, %v652
    %v909 = vpack.c.b16 %v661, %v653
    %v910 = vpack.c.b16 %v662, %v654
    %v911 = vpack.c.b16 %v663, %v655
    %v912 = vpack.c.b16 %v664, %v656
    %v913 = vpack.c.b16 %v673, %v665
    %v914 = vpack.c.b16 %v674, %v666
    %v915 = vpack.c.b16 %v675, %v667
    %v916 = vpack.c.b16 %v676, %v668
    %v917 = vpack.c.b16 %v677, %v669
    %v918 = vpack.c.b16 %v678, %v670
    %v919 = vpack.c.b16 %v679, %v671
    %v920 = vpack.c.b16 %v680, %v672
    %v921 = vpack.c.b16 %v689, %v681
    %v922 = vpack.c.b16 %v690, %v682
    %v923 = vpack.c.b16 %v691, %v683
    %v924 = vpack.c.b16 %v692, %v684
    %v925 = vpack.c.b16 %v693, %v685
    %v926 = vpack.c.b16 %v694, %v686
    %v927 = vpack.c.b16 %v695, %v687
    %v928 = vpack.c.b16 %v696, %v688
    %v929 = vpack.c.b16 %v705, %v697
    %v930 = vpack.c.b16 %v706, %v698
    %v931 = vpack.c.b16 %v707, %v699
    %v932 = vpack.c.b16 %v708, %v700
    %v933 = vpack.c.b16 %v709, %v701
    %v934 = vpack.c.b16 %v710, %v702
    %v935 = vpack.c.b16 %v711, %v703
    %v936 = vpack.c.b16 %v712, %v704
    %v937 = vpack.c.b16 %v721, %v713
    %v938 = vpack.c.b16 %v722, %v714
    %v939 = vpack.c.b16 %v723, %v715
    %v940 = vpack.c.b16 %v724, %v716
    %v941 = vpack.c.b16 %v725, %v717
    %v942 = vpack.c.b16 %v726, %v718
    %v943 = vpack.c.b16 %v727, %v719
    %v944 = vpack.c.b16 %v728, %v720
    %v945 = vpack.c.b16 %v737, %v729
    %v946 = vpack.c.b16 %v738, %v730
    %v947 = vpack.c.b16 %v739, %v731
    %v948 = vpack.c.b16 %v740, %v732
    %v949 = vpack.c.b16 %v741, %v733
    %v950 = vpack.c.b16 %v742, %v734
    %v951 = vpack.c.b16 %v743, %v735
    %v952 = vpack.c.b16 %v744, %v736
    %v953 = vpack.c.b16 %v753, %v745
    %v954 = vpack.c.b16 %v754, %v746
    %v955 = vpack.c.b16 %v755, %v747
    %v956 = vpack.c.b16 %v756, %v748
    %v957 = vpack.c.b16 %v757, %v749
    %v958 = vpack.c.b16 %v758, %v750
    %v959 = vpack.c.b16 %v759, %v751
    %v960 = vpack.c.b16 %v760, %v752
    %v961 = vpack.c.b16 %v769, %v761
    %v962 = vpack.c.b16 %v770, %v762
    %v963 = vpack.c.b16 %v771, %v763
    %v964 = vpack.c.b16 %v772, %v764
    %v965 = vpack.c.b16 %v773, %v765
    %v966 = vpack.c.b16 %v774, %v766
    %v967 = vpack.c.b16 %v775, %v767
    %v968 = vpack.c.b16 %v776, %v768
    %v969 = vpack.c.b16 %v785, %v777
    %v970 = vpack.c.b16 %v786, %v778
    %v971 = vpack.c.b16 %v787, %v779
    %v972 = vpack.c.b16 %v788, %v780
    %v973 = vpack.c.b16 %v789, %v781
    %v974 = vpack.c.b16 %v790, %v782
    %v975 = vpack.c.b16 %v791, %v783
    %v976 = vpack.c.b16 %v792, %v784
    %v977 = vpack.c.b16 %v801, %v793
    %v978 = vpack.c.b16 %v802, %v794
    %v979 = vpack.c.b16 %v803, %v795
    %v980 = vpack.c.b16 %v804, %v796
    %v981 = vpack.c.b16 %v805, %v797
    %v982 = vpack.c.b16 %v806, %v798
    %v983 = vpack.c.b16 %v807, %v799
    %v984 = vpack.c.b16 %v808, %v800
    %v985 = vpack.c.b16 %v817, %v809
    %v986 = vpack.c.b16 %v818, %v810
    %v987 = vpack.c.b16 %v819, %v811
    %v988 = vpack.c.b16 %v820, %v812
    %v989 = vpack.c.b16 %v821, %v813
    %v990 = vpack.c.b16 %v822, %v814
    %v991 = vpack.c.b16 %v823, %v815
    %v992 = vpack.c.b16 %v824, %v816
    %v993 = vpack.c.b16 %v833, %v825
    %v994 = vpack.c.b16 %v834, %v826
    %v995 = vpack.c.b16 %v835, %v827
    %v996 = vpack.c.b16 %v836, %v828
    %v997 = vpack.c.b16 %v837, %v829
    %v998 = vpack.c.b16 %v838, %v830
    %v999 = vpack.c.b16 %v839, %v831
    %v1000 = vpack.c.b16 %v840, %v832
    %v1001 = vpack.c.b16 %v849, %v841
    %v1002 = vpack.c.b16 %v850, %v842
    %v1003 = vpack.c.b16 %v851, %v843
    %v1004 = vpack.c.b16 %v852, %v844
    %v1005 = vpack.c.b16 %v853, %v845
    %v1006 = vpack.c.b16 %v854, %v846
    %v1007 = vpack.c.b16 %v855, %v847
    %v1008 = vpack.c.b16 %v856, %v848
    %v1009 = vpack.c.b16 %v865, %v857
    %v1010 = vpack.c.b16 %v866, %v858
    %v1011 = vpack.c.b16 %v867, %v859
    %v1012 = vpack.c.b16 %v868, %v860
    %v1013 = vpack.c.b16 %v869, %v861
    %v1014 = vpack.c.b16 %v870, %v862
    %v1015 = vpack.c.b16 %v871, %v863
    %v1016 = vpack.c.b16 %v872, %v864
    %v1017 = vpack.c.b16 %v881, %v873
    %v1018 = vpack.c.b16 %v882, %v874
    %v1019 = vpack.c.b16 %v883, %v875
    %v1020 = vpack.c.b16 %v884, %v876
    %v1021 = vpack.c.b16 %v885, %v877
    %v1022 = vpack.c.b16 %v886, %v878
    %v1023 = vpack.c.b16 %v887, %v879
    %v1024 = vpack.c.b16 %v888, %v880
    %v1025 = vpack.c.b16 %v897, %v889
    %v1026 = vpack.c.b16 %v898, %v890
    %v1027 = vpack.c.b16 %v899, %v891
    %v1028 = vpack.c.b16 %v900, %v892
    %v1029 = vpack.c.b16 %v901, %v893
    %v1030 = vpack.c.b16 %v902, %v894
    %v1031 = vpack.c.b16 %v903, %v895
    %v1032 = vpack.c.b16 %v904, %v896
    %1161 = vmatprep.subr.bf16.mxu0 %v906
    %1162 = vmatpush1.bf16.msra.mxu0 %v905
    %1163 = vmatprep.subr.bf16.mxu0 %v914
    %1164 = vmatpush1.bf16.msra.mxu0 %v913
    %1165 = vmatprep.subr.bf16.mxu0 %v922
    %1166 = vmatpush1.bf16.msra.mxu0 %v921
    %1167 = vmatprep.subr.bf16.mxu0 %v930
    %1168 = vmatpush1.bf16.msra.mxu0 %v929
    %1169 = vmatprep.subr.bf16.mxu0 %v938
    %1170 = vmatpush1.bf16.msra.mxu0 %v937
    %1171 = vmatprep.subr.bf16.mxu0 %v946
    %1172 = vmatpush1.bf16.msra.mxu0 %v945
    %1173 = vmatprep.subr.bf16.mxu0 %v954
    %1174 = vmatpush1.bf16.msra.mxu0 %v953
    %1175 = vmatprep.subr.bf16.mxu0 %v962
    %1176 = vmatpush1.bf16.msra.mxu0 %v961
    %1177 = vmatprep.subr.bf16.mxu0 %v970
    %1178 = vmatpush1.bf16.msra.mxu0 %v969
    %1179 = vmatprep.subr.bf16.mxu0 %v978
    %1180 = vmatpush1.bf16.msra.mxu0 %v977
    %1181 = vmatprep.subr.bf16.mxu0 %v986
    %1182 = vmatpush1.bf16.msra.mxu0 %v985
    %1183 = vmatprep.subr.bf16.mxu0 %v994
    %1184 = vmatpush1.bf16.msra.mxu0 %v993
    %1185 = vmatprep.subr.bf16.mxu0 %v1002
    %1186 = vmatpush1.bf16.msra.mxu0 %v1001
    %1187 = vmatprep.subr.bf16.mxu0 %v1010
    %1188 = vmatpush1.bf16.msra.mxu0 %v1009
    %1189 = vmatprep.subr.bf16.mxu0 %v1018
    %1190 = vmatpush1.bf16.msra.mxu0 %v1017
    %1191 = vmatprep.subr.bf16.mxu0 %v1026
    %1192 = vmatpush1.bf16.msra.mxu0 %v1025
    %1193 = vmatprep.mubr.bf16.mxu0 %v520
    %1194 = vmatmul.mubr.bf16.gmra.mrb[0].mxu0 %v519
    %v1195 = vpop.f32.mrb[0].mxu0
    %v1196 = vadd.f32 0.0, %v1195
    %v1197 = vpop.f32.mrb[0].mxu0
    %v1198 = vadd.f32 0.0, %v1197
    %v1199 = vpop.f32.mrb[0].mxu0
    %v1200 = vpop.f32.mrb[0].mxu0
    %1201 = vdwg.mxu0
    %1202 = vmatprep.subr.bf16.mxu0 %v908
    %1203 = vmatpush1.bf16.msra.mxu0 %v907
    %1204 = vmatprep.subr.bf16.mxu0 %v916
    %1205 = vmatpush1.bf16.msra.mxu0 %v915
    %1206 = vmatprep.subr.bf16.mxu0 %v924
    %1207 = vmatpush1.bf16.msra.mxu0 %v923
    %1208 = vmatprep.subr.bf16.mxu0 %v932
    %1209 = vmatpush1.bf16.msra.mxu0 %v931
    %1210 = vmatprep.subr.bf16.mxu0 %v940
    %1211 = vmatpush1.bf16.msra.mxu0 %v939
    %1212 = vmatprep.subr.bf16.mxu0 %v948
    %1213 = vmatpush1.bf16.msra.mxu0 %v947
    %1214 = vmatprep.subr.bf16.mxu0 %v956
    %1215 = vmatpush1.bf16.msra.mxu0 %v955
    %1216 = vmatprep.subr.bf16.mxu0 %v964
    %1217 = vmatpush1.bf16.msra.mxu0 %v963
    %1218 = vmatprep.subr.bf16.mxu0 %v972
    %1219 = vmatpush1.bf16.msra.mxu0 %v971
    %1220 = vmatprep.subr.bf16.mxu0 %v980
    %1221 = vmatpush1.bf16.msra.mxu0 %v979
    %1222 = vmatprep.subr.bf16.mxu0 %v988
    %1223 = vmatpush1.bf16.msra.mxu0 %v987
    %1224 = vmatprep.subr.bf16.mxu0 %v996
    %1225 = vmatpush1.bf16.msra.mxu0 %v995
    %1226 = vmatprep.subr.bf16.mxu0 %v1004
    %1227 = vmatpush1.bf16.msra.mxu0 %v1003
    %1228 = vmatprep.subr.bf16.mxu0 %v1012
    %1229 = vmatpush1.bf16.msra.mxu0 %v1011
    %1230 = vmatprep.subr.bf16.mxu0 %v1020
    %1231 = vmatpush1.bf16.msra.mxu0 %v1019
    %1232 = vmatprep.subr.bf16.mxu0 %v1028
    %1233 = vmatpush1.bf16.msra.mxu0 %v1027
    %1234 = vmatprep.mubr.bf16.mxu0 %v520
    %1235 = vmatmul.mubr.bf16.gmra.mrb[0].mxu0 %v519
    %v1236 = vpop.f32.mrb[0].mxu0
    %v1237 = vadd.f32 0.0, %v1236
    %v1238 = vpop.f32.mrb[0].mxu0
    %v1239 = vadd.f32 0.0, %v1238
    %v1240 = vpop.f32.mrb[0].mxu0
    %v1241 = vpop.f32.mrb[0].mxu0
    %1242 = vdwg.mxu0
    %1243 = vmatprep.subr.bf16.mxu0 %v910
    %1244 = vmatpush1.bf16.msra.mxu0 %v909
    %1245 = vmatprep.subr.bf16.mxu0 %v918
    %1246 = vmatpush1.bf16.msra.mxu0 %v917
    %1247 = vmatprep.subr.bf16.mxu0 %v926
    %1248 = vmatpush1.bf16.msra.mxu0 %v925
    %1249 = vmatprep.subr.bf16.mxu0 %v934
    %1250 = vmatpush1.bf16.msra.mxu0 %v933
    %1251 = vmatprep.subr.bf16.mxu0 %v942
    %1252 = vmatpush1.bf16.msra.mxu0 %v941
    %1253 = vmatprep.subr.bf16.mxu0 %v950
    %1254 = vmatpush1.bf16.msra.mxu0 %v949
    %1255 = vmatprep.subr.bf16.mxu0 %v958
    %1256 = vmatpush1.bf16.msra.mxu0 %v957
    %1257 = vmatprep.subr.bf16.mxu0 %v966
    %1258 = vmatpush1.bf16.msra.mxu0 %v965
    %1259 = vmatprep.subr.bf16.mxu0 %v974
    %1260 = vmatpush1.bf16.msra.mxu0 %v973
    %1261 = vmatprep.subr.bf16.mxu0 %v982
    %1262 = vmatpush1.bf16.msra.mxu0 %v981
    %1263 = vmatprep.subr.bf16.mxu0 %v990
    %1264 = vmatpush1.bf16.msra.mxu0 %v989
    %1265 = vmatprep.subr.bf16.mxu0 %v998
    %1266 = vmatpush1.bf16.msra.mxu0 %v997
    %1267 = vmatprep.subr.bf16.mxu0 %v1006
    %1268 = vmatpush1.bf16.msra.mxu0 %v1005
    %1269 = vmatprep.subr.bf16.mxu0 %v1014
    %1270 = vmatpush1.bf16.msra.mxu0 %v1013
    %1271 = vmatprep.subr.bf16.mxu0 %v1022
    %1272 = vmatpush1.bf16.msra.mxu0 %v1021
    %1273 = vmatprep.subr.bf16.mxu0 %v1030
    %1274 = vmatpush1.bf16.msra.mxu0 %v1029
    %1275 = vmatprep.mubr.bf16.mxu0 %v520
    %1276 = vmatmul.mubr.bf16.gmra.mrb[0].mxu0 %v519
    %v1277 = vpop.f32.mrb[0].mxu0
    %v1278 = vadd.f32 0.0, %v1277
    %v1279 = vpop.f32.mrb[0].mxu0
    %v1280 = vadd.f32 0.0, %v1279
    %v1281 = vpop.f32.mrb[0].mxu0
    %v1282 = vpop.f32.mrb[0].mxu0
    %1283 = vdwg.mxu0
    %1284 = vmatprep.subr.bf16.mxu0 %v912
    %1285 = vmatpush1.bf16.msra.mxu0 %v911
    %1286 = vmatprep.subr.bf16.mxu0 %v920
    %1287 = vmatpush1.bf16.msra.mxu0 %v919
    %1288 = vmatprep.subr.bf16.mxu0 %v928
    %1289 = vmatpush1.bf16.msra.mxu0 %v927
    %1290 = vmatprep.subr.bf16.mxu0 %v936
    %1291 = vmatpush1.bf16.msra.mxu0 %v935
    %1292 = vmatprep.subr.bf16.mxu0 %v944
    %1293 = vmatpush1.bf16.msra.mxu0 %v943
    %1294 = vmatprep.subr.bf16.mxu0 %v952
    %1295 = vmatpush1.bf16.msra.mxu0 %v951
    %1296 = vmatprep.subr.bf16.mxu0 %v960
    %1297 = vmatpush1.bf16.msra.mxu0 %v959
    %1298 = vmatprep.subr.bf16.mxu0 %v968
    %1299 = vmatpush1.bf16.msra.mxu0 %v967
    %1300 = vmatprep.subr.bf16.mxu0 %v976
    %1301 = vmatpush1.bf16.msra.mxu0 %v975
    %1302 = vmatprep.subr.bf16.mxu0 %v984
    %1303 = vmatpush1.bf16.msra.mxu0 %v983
    %1304 = vmatprep.subr.bf16.mxu0 %v992
    %1305 = vmatpush1.bf16.msra.mxu0 %v991
    %1306 = vmatprep.subr.bf16.mxu0 %v1000
    %1307 = vmatpush1.bf16.msra.mxu0 %v999
    %1308 = vmatprep.subr.bf16.mxu0 %v1008
    %1309 = vmatpush1.bf16.msra.mxu0 %v1007
    %1310 = vmatprep.subr.bf16.mxu0 %v1016
    %1311 = vmatpush1.bf16.msra.mxu0 %v1015
    %1312 = vmatprep.subr.bf16.mxu0 %v1024
    %1313 = vmatpush1.bf16.msra.mxu0 %v1023
    %1314 = vmatprep.subr.bf16.mxu0 %v1032
    %1315 = vmatpush1.bf16.msra.mxu0 %v1031
    %1316 = vmatprep.mubr.bf16.mxu0 %v520
    %1317 = vmatmul.mubr.bf16.gmra.mrb[0].mxu0 %v519
    %v1318 = vpop.f32.mrb[0].mxu0
    %v1319 = vadd.f32 0.0, %v1318
    %v1320 = vpop.f32.mrb[0].mxu0
    %v1321 = vadd.f32 0.0, %v1320
    %v1322 = vpop.f32.mrb[0].mxu0
    %v1323 = vpop.f32.mrb[0].mxu0
    %1324 = vdwg.mxu0
    %v1325 = vadd.f32 %v241, %v1196
    %v1326 = vadd.f32 %v243, %v1198
    %v1327 = vadd.f32 %v284, %v1237
    %v1328 = vadd.f32 %v286, %v1239
    %v1329 = vadd.f32 %v327, %v1278
    %v1330 = vadd.f32 %v329, %v1280
    %v1331 = vadd.f32 %v370, %v1319
    %v1332 = vadd.f32 %v372, %v1321
    %v1333 = vxor.u32 %v1325, 2147483648
    %v1334 = vxor.u32 %v1326, 2147483648
    %v1335 = vmul.f32 %v1333, 1.442695
    %v1336 = vpow.pop %v1335
    %v1337 = vmul.f32 %v1334, 1.442695
    %v1338 = vpow.pop %v1337
    %v1339 = vadd.f32 %v1336, 1.0
    %v1340 = vadd.f32 %v1338, 1.0
    %v1341 = vrcp.pop %v1339
    %v1342 = vmul.f32 1.0, %v1341
    %v1343 = vrcp.pop %v1340
    %v1344 = vmul.f32 1.0, %v1343
    %v1345 = vxor.u32 %v1327, 2147483648
    %v1346 = vxor.u32 %v1328, 2147483648
    %v1347 = vmul.f32 %v1345, 1.442695
    %v1348 = vpow.pop %v1347
    %v1349 = vmul.f32 %v1346, 1.442695
    %v1350 = vpow.pop %v1349
    %v1351 = vadd.f32 %v1348, 1.0
    %v1352 = vadd.f32 %v1350, 1.0
    %v1353 = vrcp.pop %v1351
    %v1354 = vmul.f32 1.0, %v1353
    %v1355 = vrcp.pop %v1352
    %v1356 = vmul.f32 1.0, %v1355
    %v1357 = vtanh.pop %v1329
    %v1358 = vtanh.pop %v1330
    %v1359 = vxor.u32 %v1331, 2147483648
    %v1360 = vxor.u32 %v1332, 2147483648
    %v1361 = vmul.f32 %v1359, 1.442695
    %v1362 = vpow.pop %v1361
    %v1363 = vmul.f32 %v1360, 1.442695
    %v1364 = vpow.pop %v1363
    %v1365 = vadd.f32 %v1362, 1.0
    %v1366 = vadd.f32 %v1364, 1.0
    %v1367 = vrcp.pop %v1365
    %v1368 = vmul.f32 1.0, %v1367
    %v1369 = vrcp.pop %v1366
    %v1370 = vmul.f32 1.0, %v1369
    %v1373 = vunpack.c.l.s4 1983009808
    %v1374 = vunpack.c.0.s8 %v1373
    %v1375 = vlaneseq
    %v1376 = vshrl.u32 %v1375, 7
    %v1377 = vsub.s32 %v1374, %v1376
    %v1378 = vrot.slane %v507, %v1377
    %v1379 = vcombine.high %v1378, %v1378
    %v1382 = vmul.f32 %v1354, %v1378
    %v1383 = vmul.f32 %v1356, %v1379
    %v1384 = vmul.f32 %v1342, %v1357
    %v1385 = vmul.f32 %v1344, %v1358
    %v1386 = vadd.f32 %v1382, %v1384
    %v1387 = vadd.f32 %v1383, %v1385
    %v1388 = vtanh.pop %v1386
    %v1389 = vtanh.pop %v1387
    %v1390 = vmul.f32 %v1368, %v1388
    %v1391 = vmul.f32 %v1370, %v1389
    %v1392 = vpack.c.bf16 %v1390, %v1390
    %v1393 = vpack.c.bf16 %v1391, %v1391
    %1394 = vmatprep.subr.bf16.mxu0 %v906
    %1395 = vmatpush1.bf16.msra.mxu0 %v905
    %1396 = vmatprep.subr.bf16.mxu0 %v914
    %1397 = vmatpush1.bf16.msra.mxu0 %v913
    %1398 = vmatprep.subr.bf16.mxu0 %v922
    %1399 = vmatpush1.bf16.msra.mxu0 %v921
    %1400 = vmatprep.subr.bf16.mxu0 %v930
    %1401 = vmatpush1.bf16.msra.mxu0 %v929
    %1402 = vmatprep.subr.bf16.mxu0 %v938
    %1403 = vmatpush1.bf16.msra.mxu0 %v937
    %1404 = vmatprep.subr.bf16.mxu0 %v946
    %1405 = vmatpush1.bf16.msra.mxu0 %v945
    %1406 = vmatprep.subr.bf16.mxu0 %v954
    %1407 = vmatpush1.bf16.msra.mxu0 %v953
    %1408 = vmatprep.subr.bf16.mxu0 %v962
    %1409 = vmatpush1.bf16.msra.mxu0 %v961
    %1410 = vmatprep.subr.bf16.mxu0 %v970
    %1411 = vmatpush1.bf16.msra.mxu0 %v969
    %1412 = vmatprep.subr.bf16.mxu0 %v978
    %1413 = vmatpush1.bf16.msra.mxu0 %v977
    %1414 = vmatprep.subr.bf16.mxu0 %v986
    %1415 = vmatpush1.bf16.msra.mxu0 %v985
    %1416 = vmatprep.subr.bf16.mxu0 %v994
    %1417 = vmatpush1.bf16.msra.mxu0 %v993
    %1418 = vmatprep.subr.bf16.mxu0 %v1002
    %1419 = vmatpush1.bf16.msra.mxu0 %v1001
    %1420 = vmatprep.subr.bf16.mxu0 %v1010
    %1421 = vmatpush1.bf16.msra.mxu0 %v1009
    %1422 = vmatprep.subr.bf16.mxu0 %v1018
    %1423 = vmatpush1.bf16.msra.mxu0 %v1017
    %1424 = vmatprep.subr.bf16.mxu0 %v1026
    %1425 = vmatpush1.bf16.msra.mxu0 %v1025
    %1426 = vmatprep.mubr.bf16.mxu0 %v1393
    %1427 = vmatmul.mubr.bf16.gmra.mrb[0].mxu0 %v1392
    %v1428 = vpop.f32.mrb[0].mxu0
    %v1429 = vadd.f32 0.0, %v1428
    %v1430 = vpop.f32.mrb[0].mxu0
    %v1431 = vadd.f32 0.0, %v1430
    %v1432 = vpop.f32.mrb[0].mxu0
    %v1433 = vpop.f32.mrb[0].mxu0
    %1434 = vdwg.mxu0
    %1435 = vmatprep.subr.bf16.mxu0 %v908
    %1436 = vmatpush1.bf16.msra.mxu0 %v907
    %1437 = vmatprep.subr.bf16.mxu0 %v916
    %1438 = vmatpush1.bf16.msra.mxu0 %v915
    %1439 = vmatprep.subr.bf16.mxu0 %v924
    %1440 = vmatpush1.bf16.msra.mxu0 %v923
    %1441 = vmatprep.subr.bf16.mxu0 %v932
    %1442 = vmatpush1.bf16.msra.mxu0 %v931
    %1443 = vmatprep.subr.bf16.mxu0 %v940
    %1444 = vmatpush1.bf16.msra.mxu0 %v939
    %1445 = vmatprep.subr.bf16.mxu0 %v948
    %1446 = vmatpush1.bf16.msra.mxu0 %v947
    %1447 = vmatprep.subr.bf16.mxu0 %v956
    %1448 = vmatpush1.bf16.msra.mxu0 %v955
    %1449 = vmatprep.subr.bf16.mxu0 %v964
    %1450 = vmatpush1.bf16.msra.mxu0 %v963
    %1451 = vmatprep.subr.bf16.mxu0 %v972
    %1452 = vmatpush1.bf16.msra.mxu0 %v971
    %1453 = vmatprep.subr.bf16.mxu0 %v980
    %1454 = vmatpush1.bf16.msra.mxu0 %v979
    %1455 = vmatprep.subr.bf16.mxu0 %v988
    %1456 = vmatpush1.bf16.msra.mxu0 %v987
    %1457 = vmatprep.subr.bf16.mxu0 %v996
    %1458 = vmatpush1.bf16.msra.mxu0 %v995
    %1459 = vmatprep.subr.bf16.mxu0 %v1004
    %1460 = vmatpush1.bf16.msra.mxu0 %v1003
    %1461 = vmatprep.subr.bf16.mxu0 %v1012
    %1462 = vmatpush1.bf16.msra.mxu0 %v1011
    %1463 = vmatprep.subr.bf16.mxu0 %v1020
    %1464 = vmatpush1.bf16.msra.mxu0 %v1019
    %1465 = vmatprep.subr.bf16.mxu0 %v1028
    %1466 = vmatpush1.bf16.msra.mxu0 %v1027
    %1467 = vmatprep.mubr.bf16.mxu0 %v1393
    %1468 = vmatmul.mubr.bf16.gmra.mrb[0].mxu0 %v1392
    %v1469 = vpop.f32.mrb[0].mxu0
    %v1470 = vadd.f32 0.0, %v1469
    %v1471 = vpop.f32.mrb[0].mxu0
    %v1472 = vadd.f32 0.0, %v1471
    %v1473 = vpop.f32.mrb[0].mxu0
    %v1474 = vpop.f32.mrb[0].mxu0
    %1475 = vdwg.mxu0
    %1476 = vmatprep.subr.bf16.mxu0 %v910
    %1477 = vmatpush1.bf16.msra.mxu0 %v909
    %1478 = vmatprep.subr.bf16.mxu0 %v918
    %1479 = vmatpush1.bf16.msra.mxu0 %v917
    %1480 = vmatprep.subr.bf16.mxu0 %v926
    %1481 = vmatpush1.bf16.msra.mxu0 %v925
    %1482 = vmatprep.subr.bf16.mxu0 %v934
    %1483 = vmatpush1.bf16.msra.mxu0 %v933
    %1484 = vmatprep.subr.bf16.mxu0 %v942
    %1485 = vmatpush1.bf16.msra.mxu0 %v941
    %1486 = vmatprep.subr.bf16.mxu0 %v950
    %1487 = vmatpush1.bf16.msra.mxu0 %v949
    %1488 = vmatprep.subr.bf16.mxu0 %v958
    %1489 = vmatpush1.bf16.msra.mxu0 %v957
    %1490 = vmatprep.subr.bf16.mxu0 %v966
    %1491 = vmatpush1.bf16.msra.mxu0 %v965
    %1492 = vmatprep.subr.bf16.mxu0 %v974
    %1493 = vmatpush1.bf16.msra.mxu0 %v973
    %1494 = vmatprep.subr.bf16.mxu0 %v982
    %1495 = vmatpush1.bf16.msra.mxu0 %v981
    %1496 = vmatprep.subr.bf16.mxu0 %v990
    %1497 = vmatpush1.bf16.msra.mxu0 %v989
    %1498 = vmatprep.subr.bf16.mxu0 %v998
    %1499 = vmatpush1.bf16.msra.mxu0 %v997
    %1500 = vmatprep.subr.bf16.mxu0 %v1006
    %1501 = vmatpush1.bf16.msra.mxu0 %v1005
    %1502 = vmatprep.subr.bf16.mxu0 %v1014
    %1503 = vmatpush1.bf16.msra.mxu0 %v1013
    %1504 = vmatprep.subr.bf16.mxu0 %v1022
    %1505 = vmatpush1.bf16.msra.mxu0 %v1021
    %1506 = vmatprep.subr.bf16.mxu0 %v1030
    %1507 = vmatpush1.bf16.msra.mxu0 %v1029
    %1508 = vmatprep.mubr.bf16.mxu0 %v1393
    %1509 = vmatmul.mubr.bf16.gmra.mrb[0].mxu0 %v1392
    %v1510 = vpop.f32.mrb[0].mxu0
    %v1511 = vadd.f32 0.0, %v1510
    %v1512 = vpop.f32.mrb[0].mxu0
    %v1513 = vadd.f32 0.0, %v1512
    %v1514 = vpop.f32.mrb[0].mxu0
    %v1515 = vpop.f32.mrb[0].mxu0
    %1516 = vdwg.mxu0
    %1517 = vmatprep.subr.bf16.mxu0 %v912
    %1518 = vmatpush1.bf16.msra.mxu0 %v911
    %1519 = vmatprep.subr.bf16.mxu0 %v920
    %1520 = vmatpush1.bf16.msra.mxu0 %v919
    %1521 = vmatprep.subr.bf16.mxu0 %v928
    %1522 = vmatpush1.bf16.msra.mxu0 %v927
    %1523 = vmatprep.subr.bf16.mxu0 %v936
    %1524 = vmatpush1.bf16.msra.mxu0 %v935
    %1525 = vmatprep.subr.bf16.mxu0 %v944
    %1526 = vmatpush1.bf16.msra.mxu0 %v943
    %1527 = vmatprep.subr.bf16.mxu0 %v952
    %1528 = vmatpush1.bf16.msra.mxu0 %v951
    %1529 = vmatprep.subr.bf16.mxu0 %v960
    %1530 = vmatpush1.bf16.msra.mxu0 %v959
    %1531 = vmatprep.subr.bf16.mxu0 %v968
    %1532 = vmatpush1.bf16.msra.mxu0 %v967
    %1533 = vmatprep.subr.bf16.mxu0 %v976
    %1534 = vmatpush1.bf16.msra.mxu0 %v975
    %1535 = vmatprep.subr.bf16.mxu0 %v984
    %1536 = vmatpush1.bf16.msra.mxu0 %v983
    %1537 = vmatprep.subr.bf16.mxu0 %v992
    %1538 = vmatpush1.bf16.msra.mxu0 %v991
    %1539 = vmatprep.subr.bf16.mxu0 %v1000
    %1540 = vmatpush1.bf16.msra.mxu0 %v999
    %1541 = vmatprep.subr.bf16.mxu0 %v1008
    %1542 = vmatpush1.bf16.msra.mxu0 %v1007
    %1543 = vmatprep.subr.bf16.mxu0 %v1016
    %1544 = vmatpush1.bf16.msra.mxu0 %v1015
    %1545 = vmatprep.subr.bf16.mxu0 %v1024
    %1546 = vmatpush1.bf16.msra.mxu0 %v1023
    %1547 = vmatprep.subr.bf16.mxu0 %v1032
    %1548 = vmatpush1.bf16.msra.mxu0 %v1031
    %1549 = vmatprep.mubr.bf16.mxu0 %v1393
    %1550 = vmatmul.mubr.bf16.gmra.mrb[0].mxu0 %v1392
    %v1551 = vpop.f32.mrb[0].mxu0
    %v1552 = vadd.f32 0.0, %v1551
    %v1553 = vpop.f32.mrb[0].mxu0
    %v1554 = vadd.f32 0.0, %v1553
    %v1555 = vpop.f32.mrb[0].mxu0
    %v1556 = vpop.f32.mrb[0].mxu0
    %1557 = vdwg.mxu0
    %v1566 = vrot.slane %v1429, 6
    %v1567 = vrot.slane %v1431, 6
    %v1568 = vrot.slane %v1470, 6
    %v1569 = vrot.slane %v1472, 6
    %v1570 = vrot.slane %v1511, 6
    %v1571 = vrot.slane %v1513, 6
    %v1572 = vrot.slane %v1552, 6
    %v1573 = vrot.slane %v1554, 6
    %v1582 = vadd.f32 %v241, %v1566
    %v1583 = vadd.f32 %v243, %v1567
    %v1584 = vadd.f32 %v284, %v1568
    %v1585 = vadd.f32 %v286, %v1569
    %v1586 = vadd.f32 %v327, %v1570
    %v1587 = vadd.f32 %v329, %v1571
    %v1588 = vadd.f32 %v370, %v1572
    %v1589 = vadd.f32 %v372, %v1573
    %v1590 = vxor.u32 %v1582, 2147483648
    %v1591 = vxor.u32 %v1583, 2147483648
    %v1592 = vmul.f32 %v1590, 1.442695
    %v1593 = vpow.pop %v1592
    %v1594 = vmul.f32 %v1591, 1.442695
    %v1595 = vpow.pop %v1594
    %v1596 = vadd.f32 %v1593, 1.0
    %v1597 = vadd.f32 %v1595, 1.0
    %v1598 = vrcp.pop %v1596
    %v1599 = vmul.f32 1.0, %v1598
    %v1600 = vrcp.pop %v1597
    %v1601 = vmul.f32 1.0, %v1600
    %v1602 = vxor.u32 %v1584, 2147483648
    %v1603 = vxor.u32 %v1585, 2147483648
    %v1604 = vmul.f32 %v1602, 1.442695
    %v1605 = vpow.pop %v1604
    %v1606 = vmul.f32 %v1603, 1.442695
    %v1607 = vpow.pop %v1606
    %v1608 = vadd.f32 %v1605, 1.0
    %v1609 = vadd.f32 %v1607, 1.0
    %v1610 = vrcp.pop %v1608
    %v1611 = vmul.f32 1.0, %v1610
    %v1612 = vrcp.pop %v1609
    %v1613 = vmul.f32 1.0, %v1612
    %v1614 = vtanh.pop %v1586
    %v1615 = vtanh.pop %v1587
    %v1616 = vxor.u32 %v1588, 2147483648
    %v1617 = vxor.u32 %v1589, 2147483648
    %v1618 = vmul.f32 %v1616, 1.442695
    %v1619 = vpow.pop %v1618
    %v1620 = vmul.f32 %v1617, 1.442695
    %v1621 = vpow.pop %v1620
    %v1622 = vadd.f32 %v1619, 1.0
    %v1623 = vadd.f32 %v1621, 1.0
    %v1624 = vrcp.pop %v1622
    %v1625 = vmul.f32 1.0, %v1624
    %v1626 = vrcp.pop %v1623
    %v1627 = vmul.f32 1.0, %v1626
    %v1630 = vrot.slane %v1386, 6
    %v1631 = vrot.slane %v1387, 6
    %v1634 = vmul.f32 %v1611, %v1630
    %v1635 = vmul.f32 %v1613, %v1631
    %v1636 = vmul.f32 %v1599, %v1614
    %v1637 = vmul.f32 %v1601, %v1615
    %v1638 = vadd.f32 %v1634, %v1636
    %v1639 = vadd.f32 %v1635, %v1637
    %v1640 = vtanh.pop %v1638
    %v1641 = vtanh.pop %v1639
    %v1642 = vmul.f32 %v1625, %v1640
    %v1643 = vmul.f32 %v1627, %v1641
    %v1644 = vpack.c.bf16 %v1642, %v1642
    %v1645 = vpack.c.bf16 %v1643, %v1643
    %v1648 = vrot.slane %v1644, 1
    %v1649 = vrot.slane %v1645, 1
    %1652 = vmatprep.subr.bf16.mxu0 %v906
    %1653 = vmatpush1.bf16.msra.mxu0 %v905
    %1654 = vmatprep.subr.bf16.mxu0 %v914
    %1655 = vmatpush1.bf16.msra.mxu0 %v913
    %1656 = vmatprep.subr.bf16.mxu0 %v922
    %1657 = vmatpush1.bf16.msra.mxu0 %v921
    %1658 = vmatprep.subr.bf16.mxu0 %v930
    %1659 = vmatpush1.bf16.msra.mxu0 %v929
    %1660 = vmatprep.subr.bf16.mxu0 %v938
    %1661 = vmatpush1.bf16.msra.mxu0 %v937
    %1662 = vmatprep.subr.bf16.mxu0 %v946
    %1663 = vmatpush1.bf16.msra.mxu0 %v945
    %1664 = vmatprep.subr.bf16.mxu0 %v954
    %1665 = vmatpush1.bf16.msra.mxu0 %v953
    %1666 = vmatprep.subr.bf16.mxu0 %v962
    %1667 = vmatpush1.bf16.msra.mxu0 %v961
    %1668 = vmatprep.subr.bf16.mxu0 %v970
    %1669 = vmatpush1.bf16.msra.mxu0 %v969
    %1670 = vmatprep.subr.bf16.mxu0 %v978
    %1671 = vmatpush1.bf16.msra.mxu0 %v977
    %1672 = vmatprep.subr.bf16.mxu0 %v986
    %1673 = vmatpush1.bf16.msra.mxu0 %v985
    %1674 = vmatprep.subr.bf16.mxu0 %v994
    %1675 = vmatpush1.bf16.msra.mxu0 %v993
    %1676 = vmatprep.subr.bf16.mxu0 %v1002
    %1677 = vmatpush1.bf16.msra.mxu0 %v1001
    %1678 = vmatprep.subr.bf16.mxu0 %v1010
    %1679 = vmatpush1.bf16.msra.mxu0 %v1009
    %1680 = vmatprep.subr.bf16.mxu0 %v1018
    %1681 = vmatpush1.bf16.msra.mxu0 %v1017
    %1682 = vmatprep.subr.bf16.mxu0 %v1026
    %1683 = vmatpush1.bf16.msra.mxu0 %v1025
    %1684 = vmatprep.mubr.bf16.mxu0 %v1649
    %1685 = vmatmul.mubr.bf16.gmra.mrb[0].mxu0 %v1648
    %v1686 = vpop.f32.mrb[0].mxu0
    %v1687 = vadd.f32 0.0, %v1686
    %v1688 = vpop.f32.mrb[0].mxu0
    %v1689 = vadd.f32 0.0, %v1688
    %v1690 = vpop.f32.mrb[0].mxu0
    %v1691 = vpop.f32.mrb[0].mxu0
    %1692 = vdwg.mxu0
    %1693 = vmatprep.subr.bf16.mxu0 %v908
    %1694 = vmatpush1.bf16.msra.mxu0 %v907
    %1695 = vmatprep.subr.bf16.mxu0 %v916
    %1696 = vmatpush1.bf16.msra.mxu0 %v915
    %1697 = vmatprep.subr.bf16.mxu0 %v924
    %1698 = vmatpush1.bf16.msra.mxu0 %v923
    %1699 = vmatprep.subr.bf16.mxu0 %v932
    %1700 = vmatpush1.bf16.msra.mxu0 %v931
    %1701 = vmatprep.subr.bf16.mxu0 %v940
    %1702 = vmatpush1.bf16.msra.mxu0 %v939
    %1703 = vmatprep.subr.bf16.mxu0 %v948
    %1704 = vmatpush1.bf16.msra.mxu0 %v947
    %1705 = vmatprep.subr.bf16.mxu0 %v956
    %1706 = vmatpush1.bf16.msra.mxu0 %v955
    %1707 = vmatprep.subr.bf16.mxu0 %v964
    %1708 = vmatpush1.bf16.msra.mxu0 %v963
    %1709 = vmatprep.subr.bf16.mxu0 %v972
    %1710 = vmatpush1.bf16.msra.mxu0 %v971
    %1711 = vmatprep.subr.bf16.mxu0 %v980
    %1712 = vmatpush1.bf16.msra.mxu0 %v979
    %1713 = vmatprep.subr.bf16.mxu0 %v988
    %1714 = vmatpush1.bf16.msra.mxu0 %v987
    %1715 = vmatprep.subr.bf16.mxu0 %v996
    %1716 = vmatpush1.bf16.msra.mxu0 %v995
    %1717 = vmatprep.subr.bf16.mxu0 %v1004
    %1718 = vmatpush1.bf16.msra.mxu0 %v1003
    %1719 = vmatprep.subr.bf16.mxu0 %v1012
    %1720 = vmatpush1.bf16.msra.mxu0 %v1011
    %1721 = vmatprep.subr.bf16.mxu0 %v1020
    %1722 = vmatpush1.bf16.msra.mxu0 %v1019
    %1723 = vmatprep.subr.bf16.mxu0 %v1028
    %1724 = vmatpush1.bf16.msra.mxu0 %v1027
    %1725 = vmatprep.mubr.bf16.mxu0 %v1649
    %1726 = vmatmul.mubr.bf16.gmra.mrb[0].mxu0 %v1648
    %v1727 = vpop.f32.mrb[0].mxu0
    %v1728 = vadd.f32 0.0, %v1727
    %v1729 = vpop.f32.mrb[0].mxu0
    %v1730 = vadd.f32 0.0, %v1729
    %v1731 = vpop.f32.mrb[0].mxu0
    %v1732 = vpop.f32.mrb[0].mxu0
    %1733 = vdwg.mxu0
    %1734 = vmatprep.subr.bf16.mxu0 %v910
    %1735 = vmatpush1.bf16.msra.mxu0 %v909
    %1736 = vmatprep.subr.bf16.mxu0 %v918
    %1737 = vmatpush1.bf16.msra.mxu0 %v917
    %1738 = vmatprep.subr.bf16.mxu0 %v926
    %1739 = vmatpush1.bf16.msra.mxu0 %v925
    %1740 = vmatprep.subr.bf16.mxu0 %v934
    %1741 = vmatpush1.bf16.msra.mxu0 %v933
    %1742 = vmatprep.subr.bf16.mxu0 %v942
    %1743 = vmatpush1.bf16.msra.mxu0 %v941
    %1744 = vmatprep.subr.bf16.mxu0 %v950
    %1745 = vmatpush1.bf16.msra.mxu0 %v949
    %1746 = vmatprep.subr.bf16.mxu0 %v958
    %1747 = vmatpush1.bf16.msra.mxu0 %v957
    %1748 = vmatprep.subr.bf16.mxu0 %v966
    %1749 = vmatpush1.bf16.msra.mxu0 %v965
    %1750 = vmatprep.subr.bf16.mxu0 %v974
    %1751 = vmatpush1.bf16.msra.mxu0 %v973
    %1752 = vmatprep.subr.bf16.mxu0 %v982
    %1753 = vmatpush1.bf16.msra.mxu0 %v981
    %1754 = vmatprep.subr.bf16.mxu0 %v990
    %1755 = vmatpush1.bf16.msra.mxu0 %v989
    %1756 = vmatprep.subr.bf16.mxu0 %v998
    %1757 = vmatpush1.bf16.msra.mxu0 %v997
    %1758 = vmatprep.subr.bf16.mxu0 %v1006
    %1759 = vmatpush1.bf16.msra.mxu0 %v1005
    %1760 = vmatprep.subr.bf16.mxu0 %v1014
    %1761 = vmatpush1.bf16.msra.mxu0 %v1013
    %1762 = vmatprep.subr.bf16.mxu0 %v1022
    %1763 = vmatpush1.bf16.msra.mxu0 %v1021
    %1764 = vmatprep.subr.bf16.mxu0 %v1030
    %1765 = vmatpush1.bf16.msra.mxu0 %v1029
    %1766 = vmatprep.mubr.bf16.mxu0 %v1649
    %1767 = vmatmul.mubr.bf16.gmra.mrb[0].mxu0 %v1648
    %v1768 = vpop.f32.mrb[0].mxu0
    %v1769 = vadd.f32 0.0, %v1768
    %v1770 = vpop.f32.mrb[0].mxu0
    %v1771 = vadd.f32 0.0, %v1770
    %v1772 = vpop.f32.mrb[0].mxu0
    %v1773 = vpop.f32.mrb[0].mxu0
    %1774 = vdwg.mxu0
    %1775 = vmatprep.subr.bf16.mxu0 %v912
    %1776 = vmatpush1.bf16.msra.mxu0 %v911
    %1777 = vmatprep.subr.bf16.mxu0 %v920
    %1778 = vmatpush1.bf16.msra.mxu0 %v919
    %1779 = vmatprep.subr.bf16.mxu0 %v928
    %1780 = vmatpush1.bf16.msra.mxu0 %v927
    %1781 = vmatprep.subr.bf16.mxu0 %v936
    %1782 = vmatpush1.bf16.msra.mxu0 %v935
    %1783 = vmatprep.subr.bf16.mxu0 %v944
    %1784 = vmatpush1.bf16.msra.mxu0 %v943
    %1785 = vmatprep.subr.bf16.mxu0 %v952
    %1786 = vmatpush1.bf16.msra.mxu0 %v951
    %1787 = vmatprep.subr.bf16.mxu0 %v960
    %1788 = vmatpush1.bf16.msra.mxu0 %v959
    %1789 = vmatprep.subr.bf16.mxu0 %v968
    %1790 = vmatpush1.bf16.msra.mxu0 %v967
    %1791 = vmatprep.subr.bf16.mxu0 %v976
    %1792 = vmatpush1.bf16.msra.mxu0 %v975
    %1793 = vmatprep.subr.bf16.mxu0 %v984
    %1794 = vmatpush1.bf16.msra.mxu0 %v983
    %1795 = vmatprep.subr.bf16.mxu0 %v992
    %1796 = vmatpush1.bf16.msra.mxu0 %v991
    %1797 = vmatprep.subr.bf16.mxu0 %v1000
    %1798 = vmatpush1.bf16.msra.mxu0 %v999
    %1799 = vmatprep.subr.bf16.mxu0 %v1008
    %1800 = vmatpush1.bf16.msra.mxu0 %v1007
    %1801 = vmatprep.subr.bf16.mxu0 %v1016
    %1802 = vmatpush1.bf16.msra.mxu0 %v1015
    %1803 = vmatprep.subr.bf16.mxu0 %v1024
    %1804 = vmatpush1.bf16.msra.mxu0 %v1023
    %1805 = vmatprep.subr.bf16.mxu0 %v1032
    %1806 = vmatpush1.bf16.msra.mxu0 %v1031
    %1807 = vmatprep.mubr.bf16.mxu0 %v1649
    %1808 = vmatmul.mubr.bf16.gmra.mrb[0].mxu0 %v1648
    %v1809 = vpop.f32.mrb[0].mxu0
    %v1810 = vadd.f32 0.0, %v1809
    %v1811 = vpop.f32.mrb[0].mxu0
    %v1812 = vadd.f32 0.0, %v1811
    %v1813 = vpop.f32.mrb[0].mxu0
    %v1814 = vpop.f32.mrb[0].mxu0
    %1815 = vdwg.mxu0
    %v1824 = vrot.slane %v1687, 4
    %v1825 = vrot.slane %v1689, 4
    %v1826 = vrot.slane %v1728, 4
    %v1827 = vrot.slane %v1730, 4
    %v1828 = vrot.slane %v1769, 4
    %v1829 = vrot.slane %v1771, 4
    %v1830 = vrot.slane %v1810, 4
    %v1831 = vrot.slane %v1812, 4
    %v1840 = vadd.f32 %v241, %v1824
    %v1841 = vadd.f32 %v243, %v1825
    %v1842 = vadd.f32 %v284, %v1826
    %v1843 = vadd.f32 %v286, %v1827
    %v1844 = vadd.f32 %v327, %v1828
    %v1845 = vadd.f32 %v329, %v1829
    %v1846 = vadd.f32 %v370, %v1830
    %v1847 = vadd.f32 %v372, %v1831
    %v1848 = vxor.u32 %v1840, 2147483648
    %v1849 = vxor.u32 %v1841, 2147483648
    %v1850 = vmul.f32 %v1848, 1.442695
    %v1851 = vpow.pop %v1850
    %v1852 = vmul.f32 %v1849, 1.442695
    %v1853 = vpow.pop %v1852
    %v1854 = vadd.f32 %v1851, 1.0
    %v1855 = vadd.f32 %v1853, 1.0
    %v1856 = vrcp.pop %v1854
    %v1857 = vmul.f32 1.0, %v1856
    %v1858 = vrcp.pop %v1855
    %v1859 = vmul.f32 1.0, %v1858
    %v1860 = vxor.u32 %v1842, 2147483648
    %v1861 = vxor.u32 %v1843, 2147483648
    %v1862 = vmul.f32 %v1860, 1.442695
    %v1863 = vpow.pop %v1862
    %v1864 = vmul.f32 %v1861, 1.442695
    %v1865 = vpow.pop %v1864
    %v1866 = vadd.f32 %v1863, 1.0
    %v1867 = vadd.f32 %v1865, 1.0
    %v1868 = vrcp.pop %v1866
    %v1869 = vmul.f32 1.0, %v1868
    %v1870 = vrcp.pop %v1867
    %v1871 = vmul.f32 1.0, %v1870
    %v1872 = vtanh.pop %v1844
    %v1873 = vtanh.pop %v1845
    %v1874 = vxor.u32 %v1846, 2147483648
    %v1875 = vxor.u32 %v1847, 2147483648
    %v1876 = vmul.f32 %v1874, 1.442695
    %v1877 = vpow.pop %v1876
    %v1878 = vmul.f32 %v1875, 1.442695
    %v1879 = vpow.pop %v1878
    %v1880 = vadd.f32 %v1877, 1.0
    %v1881 = vadd.f32 %v1879, 1.0
    %v1882 = vrcp.pop %v1880
    %v1883 = vmul.f32 1.0, %v1882
    %v1884 = vrcp.pop %v1881
    %v1885 = vmul.f32 1.0, %v1884
    %v1888 = vrot.slane %v1638, 6
    %v1889 = vrot.slane %v1639, 6
    %v1892 = vmul.f32 %v1869, %v1888
    %v1893 = vmul.f32 %v1871, %v1889
    %v1894 = vmul.f32 %v1857, %v1872
    %v1895 = vmul.f32 %v1859, %v1873
    %v1896 = vadd.f32 %v1892, %v1894
    %v1897 = vadd.f32 %v1893, %v1895
    %v1898 = vtanh.pop %v1896
    %v1899 = vtanh.pop %v1897
    %v1900 = vmul.f32 %v1883, %v1898
    %v1901 = vmul.f32 %v1885, %v1899
    %v1902 = vpack.c.bf16 %v1900, %v1900
    %v1903 = vpack.c.bf16 %v1901, %v1901
    %v1906 = vrot.slane %v1902, 2
    %v1907 = vrot.slane %v1903, 2
    %1910 = vmatprep.subr.bf16.mxu0 %v906
    %1911 = vmatpush1.bf16.msra.mxu0 %v905
    %1912 = vmatprep.subr.bf16.mxu0 %v914
    %1913 = vmatpush1.bf16.msra.mxu0 %v913
    %1914 = vmatprep.subr.bf16.mxu0 %v922
    %1915 = vmatpush1.bf16.msra.mxu0 %v921
    %1916 = vmatprep.subr.bf16.mxu0 %v930
    %1917 = vmatpush1.bf16.msra.mxu0 %v929
    %1918 = vmatprep.subr.bf16.mxu0 %v938
    %1919 = vmatpush1.bf16.msra.mxu0 %v937
    %1920 = vmatprep.subr.bf16.mxu0 %v946
    %1921 = vmatpush1.bf16.msra.mxu0 %v945
    %1922 = vmatprep.subr.bf16.mxu0 %v954
    %1923 = vmatpush1.bf16.msra.mxu0 %v953
    %1924 = vmatprep.subr.bf16.mxu0 %v962
    %1925 = vmatpush1.bf16.msra.mxu0 %v961
    %1926 = vmatprep.subr.bf16.mxu0 %v970
    %1927 = vmatpush1.bf16.msra.mxu0 %v969
    %1928 = vmatprep.subr.bf16.mxu0 %v978
    %1929 = vmatpush1.bf16.msra.mxu0 %v977
    %1930 = vmatprep.subr.bf16.mxu0 %v986
    %1931 = vmatpush1.bf16.msra.mxu0 %v985
    %1932 = vmatprep.subr.bf16.mxu0 %v994
    %1933 = vmatpush1.bf16.msra.mxu0 %v993
    %1934 = vmatprep.subr.bf16.mxu0 %v1002
    %1935 = vmatpush1.bf16.msra.mxu0 %v1001
    %1936 = vmatprep.subr.bf16.mxu0 %v1010
    %1937 = vmatpush1.bf16.msra.mxu0 %v1009
    %1938 = vmatprep.subr.bf16.mxu0 %v1018
    %1939 = vmatpush1.bf16.msra.mxu0 %v1017
    %1940 = vmatprep.subr.bf16.mxu0 %v1026
    %1941 = vmatpush1.bf16.msra.mxu0 %v1025
    %1942 = vmatprep.mubr.bf16.mxu0 %v1907
    %1943 = vmatmul.mubr.bf16.gmra.mrb[0].mxu0 %v1906
    %v1944 = vpop.f32.mrb[0].mxu0
    %v1945 = vadd.f32 0.0, %v1944
    %v1946 = vpop.f32.mrb[0].mxu0
    %v1947 = vadd.f32 0.0, %v1946
    %v1948 = vpop.f32.mrb[0].mxu0
    %v1949 = vpop.f32.mrb[0].mxu0
    %1950 = vdwg.mxu0
    %1951 = vmatprep.subr.bf16.mxu0 %v908
    %1952 = vmatpush1.bf16.msra.mxu0 %v907
    %1953 = vmatprep.subr.bf16.mxu0 %v916
    %1954 = vmatpush1.bf16.msra.mxu0 %v915
    %1955 = vmatprep.subr.bf16.mxu0 %v924
    %1956 = vmatpush1.bf16.msra.mxu0 %v923
    %1957 = vmatprep.subr.bf16.mxu0 %v932
    %1958 = vmatpush1.bf16.msra.mxu0 %v931
    %1959 = vmatprep.subr.bf16.mxu0 %v940
    %1960 = vmatpush1.bf16.msra.mxu0 %v939
    %1961 = vmatprep.subr.bf16.mxu0 %v948
    %1962 = vmatpush1.bf16.msra.mxu0 %v947
    %1963 = vmatprep.subr.bf16.mxu0 %v956
    %1964 = vmatpush1.bf16.msra.mxu0 %v955
    %1965 = vmatprep.subr.bf16.mxu0 %v964
    %1966 = vmatpush1.bf16.msra.mxu0 %v963
    %1967 = vmatprep.subr.bf16.mxu0 %v972
    %1968 = vmatpush1.bf16.msra.mxu0 %v971
    %1969 = vmatprep.subr.bf16.mxu0 %v980
    %1970 = vmatpush1.bf16.msra.mxu0 %v979
    %1971 = vmatprep.subr.bf16.mxu0 %v988
    %1972 = vmatpush1.bf16.msra.mxu0 %v987
    %1973 = vmatprep.subr.bf16.mxu0 %v996
    %1974 = vmatpush1.bf16.msra.mxu0 %v995
    %1975 = vmatprep.subr.bf16.mxu0 %v1004
    %1976 = vmatpush1.bf16.msra.mxu0 %v1003
    %1977 = vmatprep.subr.bf16.mxu0 %v1012
    %1978 = vmatpush1.bf16.msra.mxu0 %v1011
    %1979 = vmatprep.subr.bf16.mxu0 %v1020
    %1980 = vmatpush1.bf16.msra.mxu0 %v1019
    %1981 = vmatprep.subr.bf16.mxu0 %v1028
    %1982 = vmatpush1.bf16.msra.mxu0 %v1027
    %1983 = vmatprep.mubr.bf16.mxu0 %v1907
    %1984 = vmatmul.mubr.bf16.gmra.mrb[0].mxu0 %v1906
    %v1985 = vpop.f32.mrb[0].mxu0
    %v1986 = vadd.f32 0.0, %v1985
    %v1987 = vpop.f32.mrb[0].mxu0
    %v1988 = vadd.f32 0.0, %v1987
    %v1989 = vpop.f32.mrb[0].mxu0
    %v1990 = vpop.f32.mrb[0].mxu0
    %1991 = vdwg.mxu0
    %1992 = vmatprep.subr.bf16.mxu0 %v910
    %1993 = vmatpush1.bf16.msra.mxu0 %v909
    %1994 = vmatprep.subr.bf16.mxu0 %v918
    %1995 = vmatpush1.bf16.msra.mxu0 %v917
    %1996 = vmatprep.subr.bf16.mxu0 %v926
    %1997 = vmatpush1.bf16.msra.mxu0 %v925
    %1998 = vmatprep.subr.bf16.mxu0 %v934
    %1999 = vmatpush1.bf16.msra.mxu0 %v933
    %2000 = vmatprep.subr.bf16.mxu0 %v942
    %2001 = vmatpush1.bf16.msra.mxu0 %v941
    %2002 = vmatprep.subr.bf16.mxu0 %v950
    %2003 = vmatpush1.bf16.msra.mxu0 %v949
    %2004 = vmatprep.subr.bf16.mxu0 %v958
    %2005 = vmatpush1.bf16.msra.mxu0 %v957
    %2006 = vmatprep.subr.bf16.mxu0 %v966
    %2007 = vmatpush1.bf16.msra.mxu0 %v965
    %2008 = vmatprep.subr.bf16.mxu0 %v974
    %2009 = vmatpush1.bf16.msra.mxu0 %v973
    %2010 = vmatprep.subr.bf16.mxu0 %v982
    %2011 = vmatpush1.bf16.msra.mxu0 %v981
    %2012 = vmatprep.subr.bf16.mxu0 %v990
    %2013 = vmatpush1.bf16.msra.mxu0 %v989
    %2014 = vmatprep.subr.bf16.mxu0 %v998
    %2015 = vmatpush1.bf16.msra.mxu0 %v997
    %2016 = vmatprep.subr.bf16.mxu0 %v1006
    %2017 = vmatpush1.bf16.msra.mxu0 %v1005
    %2018 = vmatprep.subr.bf16.mxu0 %v1014
    %2019 = vmatpush1.bf16.msra.mxu0 %v1013
    %2020 = vmatprep.subr.bf16.mxu0 %v1022
    %2021 = vmatpush1.bf16.msra.mxu0 %v1021
    %2022 = vmatprep.subr.bf16.mxu0 %v1030
    %2023 = vmatpush1.bf16.msra.mxu0 %v1029
    %2024 = vmatprep.mubr.bf16.mxu0 %v1907
    %2025 = vmatmul.mubr.bf16.gmra.mrb[0].mxu0 %v1906
    %v2026 = vpop.f32.mrb[0].mxu0
    %v2027 = vadd.f32 0.0, %v2026
    %v2028 = vpop.f32.mrb[0].mxu0
    %v2029 = vadd.f32 0.0, %v2028
    %v2030 = vpop.f32.mrb[0].mxu0
    %v2031 = vpop.f32.mrb[0].mxu0
    %2032 = vdwg.mxu0
    %2033 = vmatprep.subr.bf16.mxu0 %v912
    %2034 = vmatpush1.bf16.msra.mxu0 %v911
    %2035 = vmatprep.subr.bf16.mxu0 %v920
    %2036 = vmatpush1.bf16.msra.mxu0 %v919
    %2037 = vmatprep.subr.bf16.mxu0 %v928
    %2038 = vmatpush1.bf16.msra.mxu0 %v927
    %2039 = vmatprep.subr.bf16.mxu0 %v936
    %2040 = vmatpush1.bf16.msra.mxu0 %v935
    %2041 = vmatprep.subr.bf16.mxu0 %v944
    %2042 = vmatpush1.bf16.msra.mxu0 %v943
    %2043 = vmatprep.subr.bf16.mxu0 %v952
    %2044 = vmatpush1.bf16.msra.mxu0 %v951
    %2045 = vmatprep.subr.bf16.mxu0 %v960
    %2046 = vmatpush1.bf16.msra.mxu0 %v959
    %2047 = vmatprep.subr.bf16.mxu0 %v968
    %2048 = vmatpush1.bf16.msra.mxu0 %v967
    %2049 = vmatprep.subr.bf16.mxu0 %v976
    %2050 = vmatpush1.bf16.msra.mxu0 %v975
    %2051 = vmatprep.subr.bf16.mxu0 %v984
    %2052 = vmatpush1.bf16.msra.mxu0 %v983
    %2053 = vmatprep.subr.bf16.mxu0 %v992
    %2054 = vmatpush1.bf16.msra.mxu0 %v991
    %2055 = vmatprep.subr.bf16.mxu0 %v1000
    %2056 = vmatpush1.bf16.msra.mxu0 %v999
    %2057 = vmatprep.subr.bf16.mxu0 %v1008
    %2058 = vmatpush1.bf16.msra.mxu0 %v1007
    %2059 = vmatprep.subr.bf16.mxu0 %v1016
    %2060 = vmatpush1.bf16.msra.mxu0 %v1015
    %2061 = vmatprep.subr.bf16.mxu0 %v1024
    %2062 = vmatpush1.bf16.msra.mxu0 %v1023
    %2063 = vmatprep.subr.bf16.mxu0 %v1032
    %2064 = vmatpush1.bf16.msra.mxu0 %v1031
    %2065 = vmatprep.mubr.bf16.mxu0 %v1907
    %2066 = vmatmul.mubr.bf16.gmra.mrb[0].mxu0 %v1906
    %v2067 = vpop.f32.mrb[0].mxu0
    %v2068 = vadd.f32 0.0, %v2067
    %v2069 = vpop.f32.mrb[0].mxu0
    %v2070 = vadd.f32 0.0, %v2069
    %v2071 = vpop.f32.mrb[0].mxu0
    %v2072 = vpop.f32.mrb[0].mxu0
    %2073 = vdwg.mxu0
    %v2082 = vrot.slane %v1945, 2
    %v2083 = vrot.slane %v1947, 2
    %v2084 = vrot.slane %v1986, 2
    %v2085 = vrot.slane %v1988, 2
    %v2086 = vrot.slane %v2027, 2
    %v2087 = vrot.slane %v2029, 2
    %v2088 = vrot.slane %v2068, 2
    %v2089 = vrot.slane %v2070, 2
    %v2098 = vadd.f32 %v241, %v2082
    %v2099 = vadd.f32 %v243, %v2083
    %v2100 = vadd.f32 %v284, %v2084
    %v2101 = vadd.f32 %v286, %v2085
    %v2102 = vadd.f32 %v327, %v2086
    %v2103 = vadd.f32 %v329, %v2087
    %v2104 = vadd.f32 %v370, %v2088
    %v2105 = vadd.f32 %v372, %v2089
    %v2106 = vxor.u32 %v2098, 2147483648
    %v2107 = vxor.u32 %v2099, 2147483648
    %v2108 = vmul.f32 %v2106, 1.442695
    %v2109 = vpow.pop %v2108
    %v2110 = vmul.f32 %v2107, 1.442695
    %v2111 = vpow.pop %v2110
    %v2112 = vadd.f32 %v2109, 1.0
    %v2113 = vadd.f32 %v2111, 1.0
    %v2114 = vrcp.pop %v2112
    %v2115 = vmul.f32 1.0, %v2114
    %v2116 = vrcp.pop %v2113
    %v2117 = vmul.f32 1.0, %v2116
    %v2118 = vxor.u32 %v2100, 2147483648
    %v2119 = vxor.u32 %v2101, 2147483648
    %v2120 = vmul.f32 %v2118, 1.442695
    %v2121 = vpow.pop %v2120
    %v2122 = vmul.f32 %v2119, 1.442695
    %v2123 = vpow.pop %v2122
    %v2124 = vadd.f32 %v2121, 1.0
    %v2125 = vadd.f32 %v2123, 1.0
    %v2126 = vrcp.pop %v2124
    %v2127 = vmul.f32 1.0, %v2126
    %v2128 = vrcp.pop %v2125
    %v2129 = vmul.f32 1.0, %v2128
    %v2130 = vtanh.pop %v2102
    %v2131 = vtanh.pop %v2103
    %v2132 = vxor.u32 %v2104, 2147483648
    %v2133 = vxor.u32 %v2105, 2147483648
    %v2134 = vmul.f32 %v2132, 1.442695
    %v2135 = vpow.pop %v2134
    %v2136 = vmul.f32 %v2133, 1.442695
    %v2137 = vpow.pop %v2136
    %v2138 = vadd.f32 %v2135, 1.0
    %v2139 = vadd.f32 %v2137, 1.0
    %v2140 = vrcp.pop %v2138
    %v2141 = vmul.f32 1.0, %v2140
    %v2142 = vrcp.pop %v2139
    %v2143 = vmul.f32 1.0, %v2142
    %v2146 = vrot.slane %v1896, 6
    %v2147 = vrot.slane %v1897, 6
    %v2150 = vmul.f32 %v2127, %v2146
    %v2151 = vmul.f32 %v2129, %v2147
    %v2152 = vmul.f32 %v2115, %v2130
    %v2153 = vmul.f32 %v2117, %v2131
    %v2154 = vadd.f32 %v2150, %v2152
    %v2155 = vadd.f32 %v2151, %v2153
    %v2156 = vtanh.pop %v2154
    %v2157 = vtanh.pop %v2155
    %v2158 = vmul.f32 %v2141, %v2156
    %v2159 = vmul.f32 %v2143, %v2157
    %v2160 = vpack.c.bf16 %v2158, %v2158
    %v2161 = vpack.c.bf16 %v2159, %v2159
    %v2164 = vrot.slane %v2160, 3
    %v2165 = vrot.slane %v2161, 3
    %2168 = vmatprep.subr.bf16.mxu0 %v906
    %2169 = vmatpush1.bf16.msra.mxu0 %v905
    %2170 = vmatprep.subr.bf16.mxu0 %v914
    %2171 = vmatpush1.bf16.msra.mxu0 %v913
    %2172 = vmatprep.subr.bf16.mxu0 %v922
    %2173 = vmatpush1.bf16.msra.mxu0 %v921
    %2174 = vmatprep.subr.bf16.mxu0 %v930
    %2175 = vmatpush1.bf16.msra.mxu0 %v929
    %2176 = vmatprep.subr.bf16.mxu0 %v938
    %2177 = vmatpush1.bf16.msra.mxu0 %v937
    %2178 = vmatprep.subr.bf16.mxu0 %v946
    %2179 = vmatpush1.bf16.msra.mxu0 %v945
    %2180 = vmatprep.subr.bf16.mxu0 %v954
    %2181 = vmatpush1.bf16.msra.mxu0 %v953
    %2182 = vmatprep.subr.bf16.mxu0 %v962
    %2183 = vmatpush1.bf16.msra.mxu0 %v961
    %2184 = vmatprep.subr.bf16.mxu0 %v970
    %2185 = vmatpush1.bf16.msra.mxu0 %v969
    %2186 = vmatprep.subr.bf16.mxu0 %v978
    %2187 = vmatpush1.bf16.msra.mxu0 %v977
    %2188 = vmatprep.subr.bf16.mxu0 %v986
    %2189 = vmatpush1.bf16.msra.mxu0 %v985
    %2190 = vmatprep.subr.bf16.mxu0 %v994
    %2191 = vmatpush1.bf16.msra.mxu0 %v993
    %2192 = vmatprep.subr.bf16.mxu0 %v1002
    %2193 = vmatpush1.bf16.msra.mxu0 %v1001
    %2194 = vmatprep.subr.bf16.mxu0 %v1010
    %2195 = vmatpush1.bf16.msra.mxu0 %v1009
    %2196 = vmatprep.subr.bf16.mxu0 %v1018
    %2197 = vmatpush1.bf16.msra.mxu0 %v1017
    %2198 = vmatprep.subr.bf16.mxu0 %v1026
    %2199 = vmatpush1.bf16.msra.mxu0 %v1025
    %2200 = vmatprep.mubr.bf16.mxu0 %v2165
    %2201 = vmatmul.mubr.bf16.gmra.mrb[0].mxu0 %v2164
    %v2202 = vpop.f32.mrb[0].mxu0
    %v2203 = vadd.f32 0.0, %v2202
    %v2204 = vpop.f32.mrb[0].mxu0
    %v2205 = vadd.f32 0.0, %v2204
    %v2206 = vpop.f32.mrb[0].mxu0
    %v2207 = vpop.f32.mrb[0].mxu0
    %2208 = vdwg.mxu0
    %2209 = vmatprep.subr.bf16.mxu0 %v908
    %2210 = vmatpush1.bf16.msra.mxu0 %v907
    %2211 = vmatprep.subr.bf16.mxu0 %v916
    %2212 = vmatpush1.bf16.msra.mxu0 %v915
    %2213 = vmatprep.subr.bf16.mxu0 %v924
    %2214 = vmatpush1.bf16.msra.mxu0 %v923
    %2215 = vmatprep.subr.bf16.mxu0 %v932
    %2216 = vmatpush1.bf16.msra.mxu0 %v931
    %2217 = vmatprep.subr.bf16.mxu0 %v940
    %2218 = vmatpush1.bf16.msra.mxu0 %v939
    %2219 = vmatprep.subr.bf16.mxu0 %v948
    %2220 = vmatpush1.bf16.msra.mxu0 %v947
    %2221 = vmatprep.subr.bf16.mxu0 %v956
    %2222 = vmatpush1.bf16.msra.mxu0 %v955
    %2223 = vmatprep.subr.bf16.mxu0 %v964
    %2224 = vmatpush1.bf16.msra.mxu0 %v963
    %2225 = vmatprep.subr.bf16.mxu0 %v972
    %2226 = vmatpush1.bf16.msra.mxu0 %v971
    %2227 = vmatprep.subr.bf16.mxu0 %v980
    %2228 = vmatpush1.bf16.msra.mxu0 %v979
    %2229 = vmatprep.subr.bf16.mxu0 %v988
    %2230 = vmatpush1.bf16.msra.mxu0 %v987
    %2231 = vmatprep.subr.bf16.mxu0 %v996
    %2232 = vmatpush1.bf16.msra.mxu0 %v995
    %2233 = vmatprep.subr.bf16.mxu0 %v1004
    %2234 = vmatpush1.bf16.msra.mxu0 %v1003
    %2235 = vmatprep.subr.bf16.mxu0 %v1012
    %2236 = vmatpush1.bf16.msra.mxu0 %v1011
    %2237 = vmatprep.subr.bf16.mxu0 %v1020
    %2238 = vmatpush1.bf16.msra.mxu0 %v1019
    %2239 = vmatprep.subr.bf16.mxu0 %v1028
    %2240 = vmatpush1.bf16.msra.mxu0 %v1027
    %2241 = vmatprep.mubr.bf16.mxu0 %v2165
    %2242 = vmatmul.mubr.bf16.gmra.mrb[0].mxu0 %v2164
    %v2243 = vpop.f32.mrb[0].mxu0
    %v2244 = vadd.f32 0.0, %v2243
    %v2245 = vpop.f32.mrb[0].mxu0
    %v2246 = vadd.f32 0.0, %v2245
    %v2247 = vpop.f32.mrb[0].mxu0
    %v2248 = vpop.f32.mrb[0].mxu0
    %2249 = vdwg.mxu0
    %2250 = vmatprep.subr.bf16.mxu0 %v910
    %2251 = vmatpush1.bf16.msra.mxu0 %v909
    %2252 = vmatprep.subr.bf16.mxu0 %v918
    %2253 = vmatpush1.bf16.msra.mxu0 %v917
    %2254 = vmatprep.subr.bf16.mxu0 %v926
    %2255 = vmatpush1.bf16.msra.mxu0 %v925
    %2256 = vmatprep.subr.bf16.mxu0 %v934
    %2257 = vmatpush1.bf16.msra.mxu0 %v933
    %2258 = vmatprep.subr.bf16.mxu0 %v942
    %2259 = vmatpush1.bf16.msra.mxu0 %v941
    %2260 = vmatprep.subr.bf16.mxu0 %v950
    %2261 = vmatpush1.bf16.msra.mxu0 %v949
    %2262 = vmatprep.subr.bf16.mxu0 %v958
    %2263 = vmatpush1.bf16.msra.mxu0 %v957
    %2264 = vmatprep.subr.bf16.mxu0 %v966
    %2265 = vmatpush1.bf16.msra.mxu0 %v965
    %2266 = vmatprep.subr.bf16.mxu0 %v974
    %2267 = vmatpush1.bf16.msra.mxu0 %v973
    %2268 = vmatprep.subr.bf16.mxu0 %v982
    %2269 = vmatpush1.bf16.msra.mxu0 %v981
    %2270 = vmatprep.subr.bf16.mxu0 %v990
    %2271 = vmatpush1.bf16.msra.mxu0 %v989
    %2272 = vmatprep.subr.bf16.mxu0 %v998
    %2273 = vmatpush1.bf16.msra.mxu0 %v997
    %2274 = vmatprep.subr.bf16.mxu0 %v1006
    %2275 = vmatpush1.bf16.msra.mxu0 %v1005
    %2276 = vmatprep.subr.bf16.mxu0 %v1014
    %2277 = vmatpush1.bf16.msra.mxu0 %v1013
    %2278 = vmatprep.subr.bf16.mxu0 %v1022
    %2279 = vmatpush1.bf16.msra.mxu0 %v1021
    %2280 = vmatprep.subr.bf16.mxu0 %v1030
    %2281 = vmatpush1.bf16.msra.mxu0 %v1029
    %2282 = vmatprep.mubr.bf16.mxu0 %v2165
    %2283 = vmatmul.mubr.bf16.gmra.mrb[0].mxu0 %v2164
    %v2284 = vpop.f32.mrb[0].mxu0
    %v2285 = vadd.f32 0.0, %v2284
    %v2286 = vpop.f32.mrb[0].mxu0
    %v2287 = vadd.f32 0.0, %v2286
    %v2288 = vpop.f32.mrb[0].mxu0
    %v2289 = vpop.f32.mrb[0].mxu0
    %2290 = vdwg.mxu0
    %2291 = vmatprep.subr.bf16.mxu0 %v912
    %2292 = vmatpush1.bf16.msra.mxu0 %v911
    %2293 = vmatprep.subr.bf16.mxu0 %v920
    %2294 = vmatpush1.bf16.msra.mxu0 %v919
    %2295 = vmatprep.subr.bf16.mxu0 %v928
    %2296 = vmatpush1.bf16.msra.mxu0 %v927
    %2297 = vmatprep.subr.bf16.mxu0 %v936
    %2298 = vmatpush1.bf16.msra.mxu0 %v935
    %2299 = vmatprep.subr.bf16.mxu0 %v944
    %2300 = vmatpush1.bf16.msra.mxu0 %v943
    %2301 = vmatprep.subr.bf16.mxu0 %v952
    %2302 = vmatpush1.bf16.msra.mxu0 %v951
    %2303 = vmatprep.subr.bf16.mxu0 %v960
    %2304 = vmatpush1.bf16.msra.mxu0 %v959
    %2305 = vmatprep.subr.bf16.mxu0 %v968
    %2306 = vmatpush1.bf16.msra.mxu0 %v967
    %2307 = vmatprep.subr.bf16.mxu0 %v976
    %2308 = vmatpush1.bf16.msra.mxu0 %v975
    %2309 = vmatprep.subr.bf16.mxu0 %v984
    %2310 = vmatpush1.bf16.msra.mxu0 %v983
    %2311 = vmatprep.subr.bf16.mxu0 %v992
    %2312 = vmatpush1.bf16.msra.mxu0 %v991
    %2313 = vmatprep.subr.bf16.mxu0 %v1000
    %2314 = vmatpush1.bf16.msra.mxu0 %v999
    %2315 = vmatprep.subr.bf16.mxu0 %v1008
    %2316 = vmatpush1.bf16.msra.mxu0 %v1007
    %2317 = vmatprep.subr.bf16.mxu0 %v1016
    %2318 = vmatpush1.bf16.msra.mxu0 %v1015
    %2319 = vmatprep.subr.bf16.mxu0 %v1024
    %2320 = vmatpush1.bf16.msra.mxu0 %v1023
    %2321 = vmatprep.subr.bf16.mxu0 %v1032
    %2322 = vmatpush1.bf16.msra.mxu0 %v1031
    %2323 = vmatprep.mubr.bf16.mxu0 %v2165
    %2324 = vmatmul.mubr.bf16.gmra.mrb[0].mxu0 %v2164
    %v2325 = vpop.f32.mrb[0].mxu0
    %v2326 = vadd.f32 0.0, %v2325
    %v2327 = vpop.f32.mrb[0].mxu0
    %v2328 = vadd.f32 0.0, %v2327
    %v2329 = vpop.f32.mrb[0].mxu0
    %v2330 = vpop.f32.mrb[0].mxu0
    %2331 = vdwg.mxu0
    %v2332 = vadd.f32 %v245, %v2203
    %v2333 = vadd.f32 %v247, %v2205
    %v2334 = vadd.f32 %v288, %v2244
    %v2335 = vadd.f32 %v290, %v2246
    %v2336 = vadd.f32 %v331, %v2285
    %v2337 = vadd.f32 %v333, %v2287
    %v2338 = vadd.f32 %v374, %v2326
    %v2339 = vadd.f32 %v376, %v2328
    %v2340 = vxor.u32 %v2332, 2147483648
    %v2341 = vxor.u32 %v2333, 2147483648
    %v2342 = vmul.f32 %v2340, 1.442695
    %v2343 = vpow.pop %v2342
    %v2344 = vmul.f32 %v2341, 1.442695
    %v2345 = vpow.pop %v2344
    %v2346 = vadd.f32 %v2343, 1.0
    %v2347 = vadd.f32 %v2345, 1.0
    %v2348 = vrcp.pop %v2346
    %v2349 = vmul.f32 1.0, %v2348
    %v2350 = vrcp.pop %v2347
    %v2351 = vmul.f32 1.0, %v2350
    %v2352 = vxor.u32 %v2334, 2147483648
    %v2353 = vxor.u32 %v2335, 2147483648
    %v2354 = vmul.f32 %v2352, 1.442695
    %v2355 = vpow.pop %v2354
    %v2356 = vmul.f32 %v2353, 1.442695
    %v2357 = vpow.pop %v2356
    %v2358 = vadd.f32 %v2355, 1.0
    %v2359 = vadd.f32 %v2357, 1.0
    %v2360 = vrcp.pop %v2358
    %v2361 = vmul.f32 1.0, %v2360
    %v2362 = vrcp.pop %v2359
    %v2363 = vmul.f32 1.0, %v2362
    %v2364 = vtanh.pop %v2336
    %v2365 = vtanh.pop %v2337
    %v2366 = vxor.u32 %v2338, 2147483648
    %v2367 = vxor.u32 %v2339, 2147483648
    %v2368 = vmul.f32 %v2366, 1.442695
    %v2369 = vpow.pop %v2368
    %v2370 = vmul.f32 %v2367, 1.442695
    %v2371 = vpow.pop %v2370
    %v2372 = vadd.f32 %v2369, 1.0
    %v2373 = vadd.f32 %v2371, 1.0
    %v2374 = vrcp.pop %v2372
    %v2375 = vmul.f32 1.0, %v2374
    %v2376 = vrcp.pop %v2373
    %v2377 = vmul.f32 1.0, %v2376
    %v2380 = vrot.slane %v2154, 6
    %v2381 = vrot.slane %v2155, 6
    %v2384 = vmul.f32 %v2361, %v2380
    %v2385 = vmul.f32 %v2363, %v2381
    %v2386 = vmul.f32 %v2349, %v2364
    %v2387 = vmul.f32 %v2351, %v2365
    %v2388 = vadd.f32 %v2384, %v2386
    %v2389 = vadd.f32 %v2385, %v2387
    %v2390 = vtanh.pop %v2388
    %v2391 = vtanh.pop %v2389
    %v2392 = vmul.f32 %v2375, %v2390
    %v2393 = vmul.f32 %v2377, %v2391
    %v2394 = vpack.c.bf16 %v2392, %v2392
    %v2395 = vpack.c.bf16 %v2393, %v2393
    %2396 = vmatprep.subr.bf16.mxu0 %v906
    %2397 = vmatpush1.bf16.msra.mxu0 %v905
    %2398 = vmatprep.subr.bf16.mxu0 %v914
    %2399 = vmatpush1.bf16.msra.mxu0 %v913
    %2400 = vmatprep.subr.bf16.mxu0 %v922
    %2401 = vmatpush1.bf16.msra.mxu0 %v921
    %2402 = vmatprep.subr.bf16.mxu0 %v930
    %2403 = vmatpush1.bf16.msra.mxu0 %v929
    %2404 = vmatprep.subr.bf16.mxu0 %v938
    %2405 = vmatpush1.bf16.msra.mxu0 %v937
    %2406 = vmatprep.subr.bf16.mxu0 %v946
    %2407 = vmatpush1.bf16.msra.mxu0 %v945
    %2408 = vmatprep.subr.bf16.mxu0 %v954
    %2409 = vmatpush1.bf16.msra.mxu0 %v953
    %2410 = vmatprep.subr.bf16.mxu0 %v962
    %2411 = vmatpush1.bf16.msra.mxu0 %v961
    %2412 = vmatprep.subr.bf16.mxu0 %v970
    %2413 = vmatpush1.bf16.msra.mxu0 %v969
    %2414 = vmatprep.subr.bf16.mxu0 %v978
    %2415 = vmatpush1.bf16.msra.mxu0 %v977
    %2416 = vmatprep.subr.bf16.mxu0 %v986
    %2417 = vmatpush1.bf16.msra.mxu0 %v985
    %2418 = vmatprep.subr.bf16.mxu0 %v994
    %2419 = vmatpush1.bf16.msra.mxu0 %v993
    %2420 = vmatprep.subr.bf16.mxu0 %v1002
    %2421 = vmatpush1.bf16.msra.mxu0 %v1001
    %2422 = vmatprep.subr.bf16.mxu0 %v1010
    %2423 = vmatpush1.bf16.msra.mxu0 %v1009
    %2424 = vmatprep.subr.bf16.mxu0 %v1018
    %2425 = vmatpush1.bf16.msra.mxu0 %v1017
    %2426 = vmatprep.subr.bf16.mxu0 %v1026
    %2427 = vmatpush1.bf16.msra.mxu0 %v1025
    %2428 = vmatprep.mubr.bf16.mxu0 %v2395
    %2429 = vmatmul.mubr.bf16.gmra.mrb[0].mxu0 %v2394
    %v2430 = vpop.f32.mrb[0].mxu0
    %v2431 = vadd.f32 0.0, %v2430
    %v2432 = vpop.f32.mrb[0].mxu0
    %v2433 = vadd.f32 0.0, %v2432
    %v2434 = vpop.f32.mrb[0].mxu0
    %v2435 = vpop.f32.mrb[0].mxu0
    %2436 = vdwg.mxu0
    %2437 = vmatprep.subr.bf16.mxu0 %v908
    %2438 = vmatpush1.bf16.msra.mxu0 %v907
    %2439 = vmatprep.subr.bf16.mxu0 %v916
    %2440 = vmatpush1.bf16.msra.mxu0 %v915
    %2441 = vmatprep.subr.bf16.mxu0 %v924
    %2442 = vmatpush1.bf16.msra.mxu0 %v923
    %2443 = vmatprep.subr.bf16.mxu0 %v932
    %2444 = vmatpush1.bf16.msra.mxu0 %v931
    %2445 = vmatprep.subr.bf16.mxu0 %v940
    %2446 = vmatpush1.bf16.msra.mxu0 %v939
    %2447 = vmatprep.subr.bf16.mxu0 %v948
    %2448 = vmatpush1.bf16.msra.mxu0 %v947
    %2449 = vmatprep.subr.bf16.mxu0 %v956
    %2450 = vmatpush1.bf16.msra.mxu0 %v955
    %2451 = vmatprep.subr.bf16.mxu0 %v964
    %2452 = vmatpush1.bf16.msra.mxu0 %v963
    %2453 = vmatprep.subr.bf16.mxu0 %v972
    %2454 = vmatpush1.bf16.msra.mxu0 %v971
    %2455 = vmatprep.subr.bf16.mxu0 %v980
    %2456 = vmatpush1.bf16.msra.mxu0 %v979
    %2457 = vmatprep.subr.bf16.mxu0 %v988
    %2458 = vmatpush1.bf16.msra.mxu0 %v987
    %2459 = vmatprep.subr.bf16.mxu0 %v996
    %2460 = vmatpush1.bf16.msra.mxu0 %v995
    %2461 = vmatprep.subr.bf16.mxu0 %v1004
    %2462 = vmatpush1.bf16.msra.mxu0 %v1003
    %2463 = vmatprep.subr.bf16.mxu0 %v1012
    %2464 = vmatpush1.bf16.msra.mxu0 %v1011
    %2465 = vmatprep.subr.bf16.mxu0 %v1020
    %2466 = vmatpush1.bf16.msra.mxu0 %v1019
    %2467 = vmatprep.subr.bf16.mxu0 %v1028
    %2468 = vmatpush1.bf16.msra.mxu0 %v1027
    %2469 = vmatprep.mubr.bf16.mxu0 %v2395
    %2470 = vmatmul.mubr.bf16.gmra.mrb[0].mxu0 %v2394
    %v2471 = vpop.f32.mrb[0].mxu0
    %v2472 = vadd.f32 0.0, %v2471
    %v2473 = vpop.f32.mrb[0].mxu0
    %v2474 = vadd.f32 0.0, %v2473
    %v2475 = vpop.f32.mrb[0].mxu0
    %v2476 = vpop.f32.mrb[0].mxu0
    %2477 = vdwg.mxu0
    %2478 = vmatprep.subr.bf16.mxu0 %v910
    %2479 = vmatpush1.bf16.msra.mxu0 %v909
    %2480 = vmatprep.subr.bf16.mxu0 %v918
    %2481 = vmatpush1.bf16.msra.mxu0 %v917
    %2482 = vmatprep.subr.bf16.mxu0 %v926
    %2483 = vmatpush1.bf16.msra.mxu0 %v925
    %2484 = vmatprep.subr.bf16.mxu0 %v934
    %2485 = vmatpush1.bf16.msra.mxu0 %v933
    %2486 = vmatprep.subr.bf16.mxu0 %v942
    %2487 = vmatpush1.bf16.msra.mxu0 %v941
    %2488 = vmatprep.subr.bf16.mxu0 %v950
    %2489 = vmatpush1.bf16.msra.mxu0 %v949
    %2490 = vmatprep.subr.bf16.mxu0 %v958
    %2491 = vmatpush1.bf16.msra.mxu0 %v957
    %2492 = vmatprep.subr.bf16.mxu0 %v966
    %2493 = vmatpush1.bf16.msra.mxu0 %v965
    %2494 = vmatprep.subr.bf16.mxu0 %v974
    %2495 = vmatpush1.bf16.msra.mxu0 %v973
    %2496 = vmatprep.subr.bf16.mxu0 %v982
    %2497 = vmatpush1.bf16.msra.mxu0 %v981
    %2498 = vmatprep.subr.bf16.mxu0 %v990
    %2499 = vmatpush1.bf16.msra.mxu0 %v989
    %2500 = vmatprep.subr.bf16.mxu0 %v998
    %2501 = vmatpush1.bf16.msra.mxu0 %v997
    %2502 = vmatprep.subr.bf16.mxu0 %v1006
    %2503 = vmatpush1.bf16.msra.mxu0 %v1005
    %2504 = vmatprep.subr.bf16.mxu0 %v1014
    %2505 = vmatpush1.bf16.msra.mxu0 %v1013
    %2506 = vmatprep.subr.bf16.mxu0 %v1022
    %2507 = vmatpush1.bf16.msra.mxu0 %v1021
    %2508 = vmatprep.subr.bf16.mxu0 %v1030
    %2509 = vmatpush1.bf16.msra.mxu0 %v1029
    %2510 = vmatprep.mubr.bf16.mxu0 %v2395
    %2511 = vmatmul.mubr.bf16.gmra.mrb[0].mxu0 %v2394
    %v2512 = vpop.f32.mrb[0].mxu0
    %v2513 = vadd.f32 0.0, %v2512
    %v2514 = vpop.f32.mrb[0].mxu0
    %v2515 = vadd.f32 0.0, %v2514
    %v2516 = vpop.f32.mrb[0].mxu0
    %v2517 = vpop.f32.mrb[0].mxu0
    %2518 = vdwg.mxu0
    %2519 = vmatprep.subr.bf16.mxu0 %v912
    %2520 = vmatpush1.bf16.msra.mxu0 %v911
    %2521 = vmatprep.subr.bf16.mxu0 %v920
    %2522 = vmatpush1.bf16.msra.mxu0 %v919
    %2523 = vmatprep.subr.bf16.mxu0 %v928
    %2524 = vmatpush1.bf16.msra.mxu0 %v927
    %2525 = vmatprep.subr.bf16.mxu0 %v936
    %2526 = vmatpush1.bf16.msra.mxu0 %v935
    %2527 = vmatprep.subr.bf16.mxu0 %v944
    %2528 = vmatpush1.bf16.msra.mxu0 %v943
    %2529 = vmatprep.subr.bf16.mxu0 %v952
    %2530 = vmatpush1.bf16.msra.mxu0 %v951
    %2531 = vmatprep.subr.bf16.mxu0 %v960
    %2532 = vmatpush1.bf16.msra.mxu0 %v959
    %2533 = vmatprep.subr.bf16.mxu0 %v968
    %2534 = vmatpush1.bf16.msra.mxu0 %v967
    %2535 = vmatprep.subr.bf16.mxu0 %v976
    %2536 = vmatpush1.bf16.msra.mxu0 %v975
    %2537 = vmatprep.subr.bf16.mxu0 %v984
    %2538 = vmatpush1.bf16.msra.mxu0 %v983
    %2539 = vmatprep.subr.bf16.mxu0 %v992
    %2540 = vmatpush1.bf16.msra.mxu0 %v991
    %2541 = vmatprep.subr.bf16.mxu0 %v1000
    %2542 = vmatpush1.bf16.msra.mxu0 %v999
    %2543 = vmatprep.subr.bf16.mxu0 %v1008
    %2544 = vmatpush1.bf16.msra.mxu0 %v1007
    %2545 = vmatprep.subr.bf16.mxu0 %v1016
    %2546 = vmatpush1.bf16.msra.mxu0 %v1015
    %2547 = vmatprep.subr.bf16.mxu0 %v1024
    %2548 = vmatpush1.bf16.msra.mxu0 %v1023
    %2549 = vmatprep.subr.bf16.mxu0 %v1032
    %2550 = vmatpush1.bf16.msra.mxu0 %v1031
    %2551 = vmatprep.mubr.bf16.mxu0 %v2395
    %2552 = vmatmul.mubr.bf16.gmra.mrb[0].mxu0 %v2394
    %v2553 = vpop.f32.mrb[0].mxu0
    %v2554 = vadd.f32 0.0, %v2553
    %v2555 = vpop.f32.mrb[0].mxu0
    %v2556 = vadd.f32 0.0, %v2555
    %v2557 = vpop.f32.mrb[0].mxu0
    %v2558 = vpop.f32.mrb[0].mxu0
    %2559 = vdwg.mxu0
    %v2568 = vrot.slane %v2431, 6
    %v2569 = vrot.slane %v2433, 6
    %v2570 = vrot.slane %v2472, 6
    %v2571 = vrot.slane %v2474, 6
    %v2572 = vrot.slane %v2513, 6
    %v2573 = vrot.slane %v2515, 6
    %v2574 = vrot.slane %v2554, 6
    %v2575 = vrot.slane %v2556, 6
    %v2584 = vadd.f32 %v245, %v2568
    %v2585 = vadd.f32 %v247, %v2569
    %v2586 = vadd.f32 %v288, %v2570
    %v2587 = vadd.f32 %v290, %v2571
    %v2588 = vadd.f32 %v331, %v2572
    %v2589 = vadd.f32 %v333, %v2573
    %v2590 = vadd.f32 %v374, %v2574
    %v2591 = vadd.f32 %v376, %v2575
    %v2592 = vxor.u32 %v2584, 2147483648
    %v2593 = vxor.u32 %v2585, 2147483648
    %v2594 = vmul.f32 %v2592, 1.442695
    %v2595 = vpow.pop %v2594
    %v2596 = vmul.f32 %v2593, 1.442695
    %v2597 = vpow.pop %v2596
    %v2598 = vadd.f32 %v2595, 1.0
    %v2599 = vadd.f32 %v2597, 1.0
    %v2600 = vrcp.pop %v2598
    %v2601 = vmul.f32 1.0, %v2600
    %v2602 = vrcp.pop %v2599
    %v2603 = vmul.f32 1.0, %v2602
    %v2604 = vxor.u32 %v2586, 2147483648
    %v2605 = vxor.u32 %v2587, 2147483648
    %v2606 = vmul.f32 %v2604, 1.442695
    %v2607 = vpow.pop %v2606
    %v2608 = vmul.f32 %v2605, 1.442695
    %v2609 = vpow.pop %v2608
    %v2610 = vadd.f32 %v2607, 1.0
    %v2611 = vadd.f32 %v2609, 1.0
    %v2612 = vrcp.pop %v2610
    %v2613 = vmul.f32 1.0, %v2612
    %v2614 = vrcp.pop %v2611
    %v2615 = vmul.f32 1.0, %v2614
    %v2616 = vtanh.pop %v2588
    %v2617 = vtanh.pop %v2589
    %v2618 = vxor.u32 %v2590, 2147483648
    %v2619 = vxor.u32 %v2591, 2147483648
    %v2620 = vmul.f32 %v2618, 1.442695
    %v2621 = vpow.pop %v2620
    %v2622 = vmul.f32 %v2619, 1.442695
    %v2623 = vpow.pop %v2622
    %v2624 = vadd.f32 %v2621, 1.0
    %v2625 = vadd.f32 %v2623, 1.0
    %v2626 = vrcp.pop %v2624
    %v2627 = vmul.f32 1.0, %v2626
    %v2628 = vrcp.pop %v2625
    %v2629 = vmul.f32 1.0, %v2628
    %v2632 = vrot.slane %v2388, 6
    %v2633 = vrot.slane %v2389, 6
    %v2636 = vmul.f32 %v2613, %v2632
    %v2637 = vmul.f32 %v2615, %v2633
    %v2638 = vmul.f32 %v2601, %v2616
    %v2639 = vmul.f32 %v2603, %v2617
    %v2640 = vadd.f32 %v2636, %v2638
    %v2641 = vadd.f32 %v2637, %v2639
    %v2642 = vtanh.pop %v2640
    %v2643 = vtanh.pop %v2641
    %v2644 = vmul.f32 %v2627, %v2642
    %v2645 = vmul.f32 %v2629, %v2643
    %v2646 = vpack.c.bf16 %v2644, %v2644
    %v2647 = vpack.c.bf16 %v2645, %v2645
    %v2650 = vrot.slane %v2646, 1
    %v2651 = vrot.slane %v2647, 1
    %2654 = vmatprep.subr.bf16.mxu0 %v906
    %2655 = vmatpush1.bf16.msra.mxu0 %v905
    %2656 = vmatprep.subr.bf16.mxu0 %v914
    %2657 = vmatpush1.bf16.msra.mxu0 %v913
    %2658 = vmatprep.subr.bf16.mxu0 %v922
    %2659 = vmatpush1.bf16.msra.mxu0 %v921
    %2660 = vmatprep.subr.bf16.mxu0 %v930
    %2661 = vmatpush1.bf16.msra.mxu0 %v929
    %2662 = vmatprep.subr.bf16.mxu0 %v938
    %2663 = vmatpush1.bf16.msra.mxu0 %v937
    %2664 = vmatprep.subr.bf16.mxu0 %v946
    %2665 = vmatpush1.bf16.msra.mxu0 %v945
    %2666 = vmatprep.subr.bf16.mxu0 %v954
    %2667 = vmatpush1.bf16.msra.mxu0 %v953
    %2668 = vmatprep.subr.bf16.mxu0 %v962
    %2669 = vmatpush1.bf16.msra.mxu0 %v961
    %2670 = vmatprep.subr.bf16.mxu0 %v970
    %2671 = vmatpush1.bf16.msra.mxu0 %v969
    %2672 = vmatprep.subr.bf16.mxu0 %v978
    %2673 = vmatpush1.bf16.msra.mxu0 %v977
    %2674 = vmatprep.subr.bf16.mxu0 %v986
    %2675 = vmatpush1.bf16.msra.mxu0 %v985
    %2676 = vmatprep.subr.bf16.mxu0 %v994
    %2677 = vmatpush1.bf16.msra.mxu0 %v993
    %2678 = vmatprep.subr.bf16.mxu0 %v1002
    %2679 = vmatpush1.bf16.msra.mxu0 %v1001
    %2680 = vmatprep.subr.bf16.mxu0 %v1010
    %2681 = vmatpush1.bf16.msra.mxu0 %v1009
    %2682 = vmatprep.subr.bf16.mxu0 %v1018
    %2683 = vmatpush1.bf16.msra.mxu0 %v1017
    %2684 = vmatprep.subr.bf16.mxu0 %v1026
    %2685 = vmatpush1.bf16.msra.mxu0 %v1025
    %2686 = vmatprep.mubr.bf16.mxu0 %v2651
    %2687 = vmatmul.mubr.bf16.gmra.mrb[0].mxu0 %v2650
    %v2688 = vpop.f32.mrb[0].mxu0
    %v2689 = vadd.f32 0.0, %v2688
    %v2690 = vpop.f32.mrb[0].mxu0
    %v2691 = vadd.f32 0.0, %v2690
    %v2692 = vpop.f32.mrb[0].mxu0
    %v2693 = vpop.f32.mrb[0].mxu0
    %2694 = vdwg.mxu0
    %2695 = vmatprep.subr.bf16.mxu0 %v908
    %2696 = vmatpush1.bf16.msra.mxu0 %v907
    %2697 = vmatprep.subr.bf16.mxu0 %v916
    %2698 = vmatpush1.bf16.msra.mxu0 %v915
    %2699 = vmatprep.subr.bf16.mxu0 %v924
    %2700 = vmatpush1.bf16.msra.mxu0 %v923
    %2701 = vmatprep.subr.bf16.mxu0 %v932
    %2702 = vmatpush1.bf16.msra.mxu0 %v931
    %2703 = vmatprep.subr.bf16.mxu0 %v940
    %2704 = vmatpush1.bf16.msra.mxu0 %v939
    %2705 = vmatprep.subr.bf16.mxu0 %v948
    %2706 = vmatpush1.bf16.msra.mxu0 %v947
    %2707 = vmatprep.subr.bf16.mxu0 %v956
    %2708 = vmatpush1.bf16.msra.mxu0 %v955
    %2709 = vmatprep.subr.bf16.mxu0 %v964
    %2710 = vmatpush1.bf16.msra.mxu0 %v963
    %2711 = vmatprep.subr.bf16.mxu0 %v972
    %2712 = vmatpush1.bf16.msra.mxu0 %v971
    %2713 = vmatprep.subr.bf16.mxu0 %v980
    %2714 = vmatpush1.bf16.msra.mxu0 %v979
    %2715 = vmatprep.subr.bf16.mxu0 %v988
    %2716 = vmatpush1.bf16.msra.mxu0 %v987
    %2717 = vmatprep.subr.bf16.mxu0 %v996
    %2718 = vmatpush1.bf16.msra.mxu0 %v995
    %2719 = vmatprep.subr.bf16.mxu0 %v1004
    %2720 = vmatpush1.bf16.msra.mxu0 %v1003
    %2721 = vmatprep.subr.bf16.mxu0 %v1012
    %2722 = vmatpush1.bf16.msra.mxu0 %v1011
    %2723 = vmatprep.subr.bf16.mxu0 %v1020
    %2724 = vmatpush1.bf16.msra.mxu0 %v1019
    %2725 = vmatprep.subr.bf16.mxu0 %v1028
    %2726 = vmatpush1.bf16.msra.mxu0 %v1027
    %2727 = vmatprep.mubr.bf16.mxu0 %v2651
    %2728 = vmatmul.mubr.bf16.gmra.mrb[0].mxu0 %v2650
    %v2729 = vpop.f32.mrb[0].mxu0
    %v2730 = vadd.f32 0.0, %v2729
    %v2731 = vpop.f32.mrb[0].mxu0
    %v2732 = vadd.f32 0.0, %v2731
    %v2733 = vpop.f32.mrb[0].mxu0
    %v2734 = vpop.f32.mrb[0].mxu0
    %2735 = vdwg.mxu0
    %2736 = vmatprep.subr.bf16.mxu0 %v910
    %2737 = vmatpush1.bf16.msra.mxu0 %v909
    %2738 = vmatprep.subr.bf16.mxu0 %v918
    %2739 = vmatpush1.bf16.msra.mxu0 %v917
    %2740 = vmatprep.subr.bf16.mxu0 %v926
    %2741 = vmatpush1.bf16.msra.mxu0 %v925
    %2742 = vmatprep.subr.bf16.mxu0 %v934
    %2743 = vmatpush1.bf16.msra.mxu0 %v933
    %2744 = vmatprep.subr.bf16.mxu0 %v942
    %2745 = vmatpush1.bf16.msra.mxu0 %v941
    %2746 = vmatprep.subr.bf16.mxu0 %v950
    %2747 = vmatpush1.bf16.msra.mxu0 %v949
    %2748 = vmatprep.subr.bf16.mxu0 %v958
    %2749 = vmatpush1.bf16.msra.mxu0 %v957
    %2750 = vmatprep.subr.bf16.mxu0 %v966
    %2751 = vmatpush1.bf16.msra.mxu0 %v965
    %2752 = vmatprep.subr.bf16.mxu0 %v974
    %2753 = vmatpush1.bf16.msra.mxu0 %v973
    %2754 = vmatprep.subr.bf16.mxu0 %v982
    %2755 = vmatpush1.bf16.msra.mxu0 %v981
    %2756 = vmatprep.subr.bf16.mxu0 %v990
    %2757 = vmatpush1.bf16.msra.mxu0 %v989
    %2758 = vmatprep.subr.bf16.mxu0 %v998
    %2759 = vmatpush1.bf16.msra.mxu0 %v997
    %2760 = vmatprep.subr.bf16.mxu0 %v1006
    %2761 = vmatpush1.bf16.msra.mxu0 %v1005
    %2762 = vmatprep.subr.bf16.mxu0 %v1014
    %2763 = vmatpush1.bf16.msra.mxu0 %v1013
    %2764 = vmatprep.subr.bf16.mxu0 %v1022
    %2765 = vmatpush1.bf16.msra.mxu0 %v1021
    %2766 = vmatprep.subr.bf16.mxu0 %v1030
    %2767 = vmatpush1.bf16.msra.mxu0 %v1029
    %2768 = vmatprep.mubr.bf16.mxu0 %v2651
    %2769 = vmatmul.mubr.bf16.gmra.mrb[0].mxu0 %v2650
    %v2770 = vpop.f32.mrb[0].mxu0
    %v2771 = vadd.f32 0.0, %v2770
    %v2772 = vpop.f32.mrb[0].mxu0
    %v2773 = vadd.f32 0.0, %v2772
    %v2774 = vpop.f32.mrb[0].mxu0
    %v2775 = vpop.f32.mrb[0].mxu0
    %2776 = vdwg.mxu0
    %2777 = vmatprep.subr.bf16.mxu0 %v912
    %2778 = vmatpush1.bf16.msra.mxu0 %v911
    %2779 = vmatprep.subr.bf16.mxu0 %v920
    %2780 = vmatpush1.bf16.msra.mxu0 %v919
    %2781 = vmatprep.subr.bf16.mxu0 %v928
    %2782 = vmatpush1.bf16.msra.mxu0 %v927
    %2783 = vmatprep.subr.bf16.mxu0 %v936
    %2784 = vmatpush1.bf16.msra.mxu0 %v935
    %2785 = vmatprep.subr.bf16.mxu0 %v944
    %2786 = vmatpush1.bf16.msra.mxu0 %v943
    %2787 = vmatprep.subr.bf16.mxu0 %v952
    %2788 = vmatpush1.bf16.msra.mxu0 %v951
    %2789 = vmatprep.subr.bf16.mxu0 %v960
    %2790 = vmatpush1.bf16.msra.mxu0 %v959
    %2791 = vmatprep.subr.bf16.mxu0 %v968
    %2792 = vmatpush1.bf16.msra.mxu0 %v967
    %2793 = vmatprep.subr.bf16.mxu0 %v976
    %2794 = vmatpush1.bf16.msra.mxu0 %v975
    %2795 = vmatprep.subr.bf16.mxu0 %v984
    %2796 = vmatpush1.bf16.msra.mxu0 %v983
    %2797 = vmatprep.subr.bf16.mxu0 %v992
    %2798 = vmatpush1.bf16.msra.mxu0 %v991
    %2799 = vmatprep.subr.bf16.mxu0 %v1000
    %2800 = vmatpush1.bf16.msra.mxu0 %v999
    %2801 = vmatprep.subr.bf16.mxu0 %v1008
    %2802 = vmatpush1.bf16.msra.mxu0 %v1007
    %2803 = vmatprep.subr.bf16.mxu0 %v1016
    %2804 = vmatpush1.bf16.msra.mxu0 %v1015
    %2805 = vmatprep.subr.bf16.mxu0 %v1024
    %2806 = vmatpush1.bf16.msra.mxu0 %v1023
    %2807 = vmatprep.subr.bf16.mxu0 %v1032
    %2808 = vmatpush1.bf16.msra.mxu0 %v1031
    %2809 = vmatprep.mubr.bf16.mxu0 %v2651
    %2810 = vmatmul.mubr.bf16.gmra.mrb[0].mxu0 %v2650
    %v2811 = vpop.f32.mrb[0].mxu0
    %v2812 = vadd.f32 0.0, %v2811
    %v2813 = vpop.f32.mrb[0].mxu0
    %v2814 = vadd.f32 0.0, %v2813
    %v2815 = vpop.f32.mrb[0].mxu0
    %v2816 = vpop.f32.mrb[0].mxu0
    %2817 = vdwg.mxu0
    %v2826 = vrot.slane %v2689, 4
    %v2827 = vrot.slane %v2691, 4
    %v2828 = vrot.slane %v2730, 4
    %v2829 = vrot.slane %v2732, 4
    %v2830 = vrot.slane %v2771, 4
    %v2831 = vrot.slane %v2773, 4
    %v2832 = vrot.slane %v2812, 4
    %v2833 = vrot.slane %v2814, 4
    %v2842 = vadd.f32 %v245, %v2826
    %v2843 = vadd.f32 %v247, %v2827
    %v2844 = vadd.f32 %v288, %v2828
    %v2845 = vadd.f32 %v290, %v2829
    %v2846 = vadd.f32 %v331, %v2830
    %v2847 = vadd.f32 %v333, %v2831
    %v2848 = vadd.f32 %v374, %v2832
    %v2849 = vadd.f32 %v376, %v2833
    %v2850 = vxor.u32 %v2842, 2147483648
    %v2851 = vxor.u32 %v2843, 2147483648
    %v2852 = vmul.f32 %v2850, 1.442695
    %v2853 = vpow.pop %v2852
    %v2854 = vmul.f32 %v2851, 1.442695
    %v2855 = vpow.pop %v2854
    %v2856 = vadd.f32 %v2853, 1.0
    %v2857 = vadd.f32 %v2855, 1.0
    %v2858 = vrcp.pop %v2856
    %v2859 = vmul.f32 1.0, %v2858
    %v2860 = vrcp.pop %v2857
    %v2861 = vmul.f32 1.0, %v2860
    %v2862 = vxor.u32 %v2844, 2147483648
    %v2863 = vxor.u32 %v2845, 2147483648
    %v2864 = vmul.f32 %v2862, 1.442695
    %v2865 = vpow.pop %v2864
    %v2866 = vmul.f32 %v2863, 1.442695
    %v2867 = vpow.pop %v2866
    %v2868 = vadd.f32 %v2865, 1.0
    %v2869 = vadd.f32 %v2867, 1.0
    %v2870 = vrcp.pop %v2868
    %v2871 = vmul.f32 1.0, %v2870
    %v2872 = vrcp.pop %v2869
    %v2873 = vmul.f32 1.0, %v2872
    %v2874 = vtanh.pop %v2846
    %v2875 = vtanh.pop %v2847
    %v2876 = vxor.u32 %v2848, 2147483648
    %v2877 = vxor.u32 %v2849, 2147483648
    %v2878 = vmul.f32 %v2876, 1.442695
    %v2879 = vpow.pop %v2878
    %v2880 = vmul.f32 %v2877, 1.442695
    %v2881 = vpow.pop %v2880
    %v2882 = vadd.f32 %v2879, 1.0
    %v2883 = vadd.f32 %v2881, 1.0
    %v2884 = vrcp.pop %v2882
    %v2885 = vmul.f32 1.0, %v2884
    %v2886 = vrcp.pop %v2883
    %v2887 = vmul.f32 1.0, %v2886
    %v2890 = vrot.slane %v2640, 6
    %v2891 = vrot.slane %v2641, 6
    %v2894 = vmul.f32 %v2871, %v2890
    %v2895 = vmul.f32 %v2873, %v2891
    %v2896 = vmul.f32 %v2859, %v2874
    %v2897 = vmul.f32 %v2861, %v2875
    %v2898 = vadd.f32 %v2894, %v2896
    %v2899 = vadd.f32 %v2895, %v2897
    %v2900 = vtanh.pop %v2898
    %v2901 = vtanh.pop %v2899
    %v2902 = vmul.f32 %v2885, %v2900
    %v2903 = vmul.f32 %v2887, %v2901
    %v2904 = vpack.c.bf16 %v2902, %v2902
    %v2905 = vpack.c.bf16 %v2903, %v2903
    %v2908 = vrot.slane %v2904, 2
    %v2909 = vrot.slane %v2905, 2
    %2912 = vmatprep.subr.bf16.mxu0 %v906
    %2913 = vmatpush1.bf16.msra.mxu0 %v905
    %2914 = vmatprep.subr.bf16.mxu0 %v914
    %2915 = vmatpush1.bf16.msra.mxu0 %v913
    %2916 = vmatprep.subr.bf16.mxu0 %v922
    %2917 = vmatpush1.bf16.msra.mxu0 %v921
    %2918 = vmatprep.subr.bf16.mxu0 %v930
    %2919 = vmatpush1.bf16.msra.mxu0 %v929
    %2920 = vmatprep.subr.bf16.mxu0 %v938
    %2921 = vmatpush1.bf16.msra.mxu0 %v937
    %2922 = vmatprep.subr.bf16.mxu0 %v946
    %2923 = vmatpush1.bf16.msra.mxu0 %v945
    %2924 = vmatprep.subr.bf16.mxu0 %v954
    %2925 = vmatpush1.bf16.msra.mxu0 %v953
    %2926 = vmatprep.subr.bf16.mxu0 %v962
    %2927 = vmatpush1.bf16.msra.mxu0 %v961
    %2928 = vmatprep.subr.bf16.mxu0 %v970
    %2929 = vmatpush1.bf16.msra.mxu0 %v969
    %2930 = vmatprep.subr.bf16.mxu0 %v978
    %2931 = vmatpush1.bf16.msra.mxu0 %v977
    %2932 = vmatprep.subr.bf16.mxu0 %v986
    %2933 = vmatpush1.bf16.msra.mxu0 %v985
    %2934 = vmatprep.subr.bf16.mxu0 %v994
    %2935 = vmatpush1.bf16.msra.mxu0 %v993
    %2936 = vmatprep.subr.bf16.mxu0 %v1002
    %2937 = vmatpush1.bf16.msra.mxu0 %v1001
    %2938 = vmatprep.subr.bf16.mxu0 %v1010
    %2939 = vmatpush1.bf16.msra.mxu0 %v1009
    %2940 = vmatprep.subr.bf16.mxu0 %v1018
    %2941 = vmatpush1.bf16.msra.mxu0 %v1017
    %2942 = vmatprep.subr.bf16.mxu0 %v1026
    %2943 = vmatpush1.bf16.msra.mxu0 %v1025
    %2944 = vmatprep.mubr.bf16.mxu0 %v2909
    %2945 = vmatmul.mubr.bf16.gmra.mrb[0].mxu0 %v2908
    %v2946 = vpop.f32.mrb[0].mxu0
    %v2947 = vadd.f32 0.0, %v2946
    %v2948 = vpop.f32.mrb[0].mxu0
    %v2949 = vadd.f32 0.0, %v2948
    %v2950 = vpop.f32.mrb[0].mxu0
    %v2951 = vpop.f32.mrb[0].mxu0
    %2952 = vdwg.mxu0
    %2953 = vmatprep.subr.bf16.mxu0 %v908
    %2954 = vmatpush1.bf16.msra.mxu0 %v907
    %2955 = vmatprep.subr.bf16.mxu0 %v916
    %2956 = vmatpush1.bf16.msra.mxu0 %v915
    %2957 = vmatprep.subr.bf16.mxu0 %v924
    %2958 = vmatpush1.bf16.msra.mxu0 %v923
    %2959 = vmatprep.subr.bf16.mxu0 %v932
    %2960 = vmatpush1.bf16.msra.mxu0 %v931
    %2961 = vmatprep.subr.bf16.mxu0 %v940
    %2962 = vmatpush1.bf16.msra.mxu0 %v939
    %2963 = vmatprep.subr.bf16.mxu0 %v948
    %2964 = vmatpush1.bf16.msra.mxu0 %v947
    %2965 = vmatprep.subr.bf16.mxu0 %v956
    %2966 = vmatpush1.bf16.msra.mxu0 %v955
    %2967 = vmatprep.subr.bf16.mxu0 %v964
    %2968 = vmatpush1.bf16.msra.mxu0 %v963
    %2969 = vmatprep.subr.bf16.mxu0 %v972
    %2970 = vmatpush1.bf16.msra.mxu0 %v971
    %2971 = vmatprep.subr.bf16.mxu0 %v980
    %2972 = vmatpush1.bf16.msra.mxu0 %v979
    %2973 = vmatprep.subr.bf16.mxu0 %v988
    %2974 = vmatpush1.bf16.msra.mxu0 %v987
    %2975 = vmatprep.subr.bf16.mxu0 %v996
    %2976 = vmatpush1.bf16.msra.mxu0 %v995
    %2977 = vmatprep.subr.bf16.mxu0 %v1004
    %2978 = vmatpush1.bf16.msra.mxu0 %v1003
    %2979 = vmatprep.subr.bf16.mxu0 %v1012
    %2980 = vmatpush1.bf16.msra.mxu0 %v1011
    %2981 = vmatprep.subr.bf16.mxu0 %v1020
    %2982 = vmatpush1.bf16.msra.mxu0 %v1019
    %2983 = vmatprep.subr.bf16.mxu0 %v1028
    %2984 = vmatpush1.bf16.msra.mxu0 %v1027
    %2985 = vmatprep.mubr.bf16.mxu0 %v2909
    %2986 = vmatmul.mubr.bf16.gmra.mrb[0].mxu0 %v2908
    %v2987 = vpop.f32.mrb[0].mxu0
    %v2988 = vadd.f32 0.0, %v2987
    %v2989 = vpop.f32.mrb[0].mxu0
    %v2990 = vadd.f32 0.0, %v2989
    %v2991 = vpop.f32.mrb[0].mxu0
    %v2992 = vpop.f32.mrb[0].mxu0
    %2993 = vdwg.mxu0
    %2994 = vmatprep.subr.bf16.mxu0 %v910
    %2995 = vmatpush1.bf16.msra.mxu0 %v909
    %2996 = vmatprep.subr.bf16.mxu0 %v918
    %2997 = vmatpush1.bf16.msra.mxu0 %v917
    %2998 = vmatprep.subr.bf16.mxu0 %v926
    %2999 = vmatpush1.bf16.msra.mxu0 %v925
    %3000 = vmatprep.subr.bf16.mxu0 %v934
    %3001 = vmatpush1.bf16.msra.mxu0 %v933
    %3002 = vmatprep.subr.bf16.mxu0 %v942
    %3003 = vmatpush1.bf16.msra.mxu0 %v941
    %3004 = vmatprep.subr.bf16.mxu0 %v950
    %3005 = vmatpush1.bf16.msra.mxu0 %v949
    %3006 = vmatprep.subr.bf16.mxu0 %v958
    %3007 = vmatpush1.bf16.msra.mxu0 %v957
    %3008 = vmatprep.subr.bf16.mxu0 %v966
    %3009 = vmatpush1.bf16.msra.mxu0 %v965
    %3010 = vmatprep.subr.bf16.mxu0 %v974
    %3011 = vmatpush1.bf16.msra.mxu0 %v973
    %3012 = vmatprep.subr.bf16.mxu0 %v982
    %3013 = vmatpush1.bf16.msra.mxu0 %v981
    %3014 = vmatprep.subr.bf16.mxu0 %v990
    %3015 = vmatpush1.bf16.msra.mxu0 %v989
    %3016 = vmatprep.subr.bf16.mxu0 %v998
    %3017 = vmatpush1.bf16.msra.mxu0 %v997
    %3018 = vmatprep.subr.bf16.mxu0 %v1006
    %3019 = vmatpush1.bf16.msra.mxu0 %v1005
    %3020 = vmatprep.subr.bf16.mxu0 %v1014
    %3021 = vmatpush1.bf16.msra.mxu0 %v1013
    %3022 = vmatprep.subr.bf16.mxu0 %v1022
    %3023 = vmatpush1.bf16.msra.mxu0 %v1021
    %3024 = vmatprep.subr.bf16.mxu0 %v1030
    %3025 = vmatpush1.bf16.msra.mxu0 %v1029
    %3026 = vmatprep.mubr.bf16.mxu0 %v2909
    %3027 = vmatmul.mubr.bf16.gmra.mrb[0].mxu0 %v2908
    %v3028 = vpop.f32.mrb[0].mxu0
    %v3029 = vadd.f32 0.0, %v3028
    %v3030 = vpop.f32.mrb[0].mxu0
    %v3031 = vadd.f32 0.0, %v3030
    %v3032 = vpop.f32.mrb[0].mxu0
    %v3033 = vpop.f32.mrb[0].mxu0
    %3034 = vdwg.mxu0
    %3035 = vmatprep.subr.bf16.mxu0 %v912
    %3036 = vmatpush1.bf16.msra.mxu0 %v911
    %3037 = vmatprep.subr.bf16.mxu0 %v920
    %3038 = vmatpush1.bf16.msra.mxu0 %v919
    %3039 = vmatprep.subr.bf16.mxu0 %v928
    %3040 = vmatpush1.bf16.msra.mxu0 %v927
    %3041 = vmatprep.subr.bf16.mxu0 %v936
    %3042 = vmatpush1.bf16.msra.mxu0 %v935
    %3043 = vmatprep.subr.bf16.mxu0 %v944
    %3044 = vmatpush1.bf16.msra.mxu0 %v943
    %3045 = vmatprep.subr.bf16.mxu0 %v952
    %3046 = vmatpush1.bf16.msra.mxu0 %v951
    %3047 = vmatprep.subr.bf16.mxu0 %v960
    %3048 = vmatpush1.bf16.msra.mxu0 %v959
    %3049 = vmatprep.subr.bf16.mxu0 %v968
    %3050 = vmatpush1.bf16.msra.mxu0 %v967
    %3051 = vmatprep.subr.bf16.mxu0 %v976
    %3052 = vmatpush1.bf16.msra.mxu0 %v975
    %3053 = vmatprep.subr.bf16.mxu0 %v984
    %3054 = vmatpush1.bf16.msra.mxu0 %v983
    %3055 = vmatprep.subr.bf16.mxu0 %v992
    %3056 = vmatpush1.bf16.msra.mxu0 %v991
    %3057 = vmatprep.subr.bf16.mxu0 %v1000
    %3058 = vmatpush1.bf16.msra.mxu0 %v999
    %3059 = vmatprep.subr.bf16.mxu0 %v1008
    %3060 = vmatpush1.bf16.msra.mxu0 %v1007
    %3061 = vmatprep.subr.bf16.mxu0 %v1016
    %3062 = vmatpush1.bf16.msra.mxu0 %v1015
    %3063 = vmatprep.subr.bf16.mxu0 %v1024
    %3064 = vmatpush1.bf16.msra.mxu0 %v1023
    %3065 = vmatprep.subr.bf16.mxu0 %v1032
    %3066 = vmatpush1.bf16.msra.mxu0 %v1031
    %3067 = vmatprep.mubr.bf16.mxu0 %v2909
    %3068 = vmatmul.mubr.bf16.gmra.mrb[0].mxu0 %v2908
    %v3069 = vpop.f32.mrb[0].mxu0
    %v3070 = vadd.f32 0.0, %v3069
    %v3071 = vpop.f32.mrb[0].mxu0
    %v3072 = vadd.f32 0.0, %v3071
    %v3073 = vpop.f32.mrb[0].mxu0
    %v3074 = vpop.f32.mrb[0].mxu0
    %3075 = vdwg.mxu0
    %v3084 = vrot.slane %v2947, 2
    %v3085 = vrot.slane %v2949, 2
    %v3086 = vrot.slane %v2988, 2
    %v3087 = vrot.slane %v2990, 2
    %v3088 = vrot.slane %v3029, 2
    %v3089 = vrot.slane %v3031, 2
    %v3090 = vrot.slane %v3070, 2
    %v3091 = vrot.slane %v3072, 2
    %v3100 = vadd.f32 %v245, %v3084
    %v3101 = vadd.f32 %v247, %v3085
    %v3102 = vadd.f32 %v288, %v3086
    %v3103 = vadd.f32 %v290, %v3087
    %v3104 = vadd.f32 %v331, %v3088
    %v3105 = vadd.f32 %v333, %v3089
    %v3106 = vadd.f32 %v374, %v3090
    %v3107 = vadd.f32 %v376, %v3091
    %v3108 = vxor.u32 %v3100, 2147483648
    %v3109 = vxor.u32 %v3101, 2147483648
    %v3110 = vmul.f32 %v3108, 1.442695
    %v3111 = vpow.pop %v3110
    %v3112 = vmul.f32 %v3109, 1.442695
    %v3113 = vpow.pop %v3112
    %v3114 = vadd.f32 %v3111, 1.0
    %v3115 = vadd.f32 %v3113, 1.0
    %v3116 = vrcp.pop %v3114
    %v3117 = vmul.f32 1.0, %v3116
    %v3118 = vrcp.pop %v3115
    %v3119 = vmul.f32 1.0, %v3118
    %v3120 = vxor.u32 %v3102, 2147483648
    %v3121 = vxor.u32 %v3103, 2147483648
    %v3122 = vmul.f32 %v3120, 1.442695
    %v3123 = vpow.pop %v3122
    %v3124 = vmul.f32 %v3121, 1.442695
    %v3125 = vpow.pop %v3124
    %v3126 = vadd.f32 %v3123, 1.0
    %v3127 = vadd.f32 %v3125, 1.0
    %v3128 = vrcp.pop %v3126
    %v3129 = vmul.f32 1.0, %v3128
    %v3130 = vrcp.pop %v3127
    %v3131 = vmul.f32 1.0, %v3130
    %v3132 = vtanh.pop %v3104
    %v3133 = vtanh.pop %v3105
    %v3134 = vxor.u32 %v3106, 2147483648
    %v3135 = vxor.u32 %v3107, 2147483648
    %v3136 = vmul.f32 %v3134, 1.442695
    %v3137 = vpow.pop %v3136
    %v3138 = vmul.f32 %v3135, 1.442695
    %v3139 = vpow.pop %v3138
    %v3140 = vadd.f32 %v3137, 1.0
    %v3141 = vadd.f32 %v3139, 1.0
    %v3142 = vrcp.pop %v3140
    %v3143 = vmul.f32 1.0, %v3142
    %v3144 = vrcp.pop %v3141
    %v3145 = vmul.f32 1.0, %v3144
    %v3148 = vrot.slane %v2898, 6
    %v3149 = vrot.slane %v2899, 6
    %v3152 = vmul.f32 %v3129, %v3148
    %v3153 = vmul.f32 %v3131, %v3149
    %v3154 = vmul.f32 %v3117, %v3132
    %v3155 = vmul.f32 %v3119, %v3133
    %v3156 = vadd.f32 %v3152, %v3154
    %v3157 = vadd.f32 %v3153, %v3155
    %v3158 = vtanh.pop %v3156
    %v3159 = vtanh.pop %v3157
    %v3160 = vmul.f32 %v3143, %v3158
    %v3161 = vmul.f32 %v3145, %v3159
    %v3164 = vcombine.high %v3160, %v3161
    %v3166 = vunpack.c.l.s4 1983009808
    %v3167 = vunpack.c.0.s8 %v3166
    %v3168 = vlaneseq
    %v3169 = vshrl.u32 %v3168, 7
    %v3170 = vsub.s32 %v3167, %v3169
    %v3171 = vrot.slane %v3164, %v3170
    %v3172 = vcombine.high %v3171, %v3171
    %3174 = vst [vmem:[#allocation2] sm:$0xf] %v3172
    %v3177 = vcombine.high %v3156, %v3157
    %v3179 = vunpack.c.l.s4 1983009808
    %v3180 = vunpack.c.0.s8 %v3179
    %v3181 = vlaneseq
    %v3182 = vshrl.u32 %v3181, 7
    %v3183 = vsub.s32 %v3180, %v3182
    %v3184 = vrot.slane %v3177, %v3183
    %v3185 = vcombine.high %v3184, %v3184
    %3187 = vst [vmem:[#allocation3] sm:$0xf] %v3185
    %3188 = vst [vmem:[#allocation14] sm:$0xf] %v3172
    %3189 = vst [vmem:[#allocation16] sm:$0xf] %v3185
    %vm3190 = vcmask 1041408
    %v3191 = vsel %vm3190, %v1390, %v1642
    %v3192 = vsel %vm3190, %v1391, %v1643
    %vm3193 = vcmask 1043456
    %v3194 = vsel %vm3193, %v3191, %v1900
    %v3195 = vsel %vm3193, %v3192, %v1901
    %vm3196 = vcmask 1045504
    %v3197 = vsel %vm3196, %v3194, %v2158
    %v3198 = vsel %vm3196, %v3195, %v2159
    %v3199 = vsel %vm3190, %v2392, %v2644
    %v3200 = vsel %vm3190, %v2393, %v2645
    %v3201 = vsel %vm3193, %v3199, %v2902
    %v3202 = vsel %vm3193, %v3200, %v2903
    %v3203 = vsel %vm3196, %v3201, %v3160
    %v3204 = vsel %vm3196, %v3202, %v3161
    %v3205 = vpack.c.bf16 %v3203, %v3197
    %v3206 = vpack.c.bf16 %v3204, %v3198
    %v3207 = vld [vmem:[#allocation12] sm:$0xf]
    %v3208 = vld [vmem:[#allocation12 + $0x4] sm:$0xf]
    %v3209 = vld [vmem:[#allocation12 + $0x8] sm:$0xf]
    %v3210 = vld [vmem:[#allocation12 + $0xc] sm:$0xf]
    %v3211 = vld [vmem:[#allocation12 + $0x10] sm:$0xf]
    %v3212 = vld [vmem:[#allocation12 + $0x14] sm:$0xf]
    %v3213 = vld [vmem:[#allocation12 + $0x18] sm:$0xf]
    %v3214 = vld [vmem:[#allocation12 + $0x1c] sm:$0xf]
    %v3215 = vld [vmem:[#allocation12 + $0x20] sm:$0xf]
    %v3216 = vld [vmem:[#allocation12 + $0x24] sm:$0xf]
    %v3217 = vld [vmem:[#allocation12 + $0x28] sm:$0xf]
    %v3218 = vld [vmem:[#allocation12 + $0x2c] sm:$0xf]
    %v3219 = vld [vmem:[#allocation12 + $0x30] sm:$0xf]
    %v3220 = vld [vmem:[#allocation12 + $0x34] sm:$0xf]
    %v3221 = vld [vmem:[#allocation12 + $0x38] sm:$0xf]
    %v3222 = vld [vmem:[#allocation12 + $0x3c] sm:$0xf]
    %v3223 = vld [vmem:[#allocation12 + $0x40] sm:$0xf]
    %v3224 = vld [vmem:[#allocation12 + $0x44] sm:$0xf]
    %v3225 = vld [vmem:[#allocation12 + $0x48] sm:$0xf]
    %v3226 = vld [vmem:[#allocation12 + $0x4c] sm:$0xf]
    %v3227 = vld [vmem:[#allocation12 + $0x50] sm:$0xf]
    %v3228 = vld [vmem:[#allocation12 + $0x54] sm:$0xf]
    %v3229 = vld [vmem:[#allocation12 + $0x58] sm:$0xf]
    %v3230 = vld [vmem:[#allocation12 + $0x5c] sm:$0xf]
    %v3231 = vld [vmem:[#allocation12 + $0x60] sm:$0xf]
    %v3232 = vld [vmem:[#allocation12 + $0x64] sm:$0xf]
    %v3233 = vld [vmem:[#allocation12 + $0x68] sm:$0xf]
    %v3234 = vld [vmem:[#allocation12 + $0x6c] sm:$0xf]
    %v3235 = vld [vmem:[#allocation12 + $0x70] sm:$0xf]
    %v3236 = vld [vmem:[#allocation12 + $0x74] sm:$0xf]
    %v3237 = vld [vmem:[#allocation12 + $0x78] sm:$0xf]
    %v3238 = vld [vmem:[#allocation12 + $0x7c] sm:$0xf]
    %v3239 = vld [vmem:[%s7] sm:$0x1]
    %v3241 = vlaneseq
    %v3242 = vshrl.u32 %v3241, 7
    %v3243 = vsub.s32 0, %v3242
    %v3244 = vrot.slane %v3239, %v3243
    %v3278 = vunpack.c.l.b16 %v3207
    %v3279 = vunpack.c.l.b16 %v3208
    %v3280 = vunpack.c.l.b16 %v3209
    %v3281 = vunpack.c.l.b16 %v3210
    %v3282 = vunpack.c.l.b16 %v3211
    %v3283 = vunpack.c.l.b16 %v3212
    %v3284 = vunpack.c.l.b16 %v3213
    %v3285 = vunpack.c.l.b16 %v3214
    %v3286 = vunpack.c.l.b16 %v3215
    %v3287 = vunpack.c.l.b16 %v3216
    %v3288 = vunpack.c.l.b16 %v3217
    %v3289 = vunpack.c.l.b16 %v3218
    %v3290 = vunpack.c.l.b16 %v3219
    %v3291 = vunpack.c.l.b16 %v3220
    %v3292 = vunpack.c.l.b16 %v3221
    %v3293 = vunpack.c.l.b16 %v3222
    %v3294 = vunpack.c.l.b16 %v3223
    %v3295 = vunpack.c.l.b16 %v3224
    %v3296 = vunpack.c.l.b16 %v3225
    %v3297 = vunpack.c.l.b16 %v3226
    %v3298 = vunpack.c.l.b16 %v3227
    %v3299 = vunpack.c.l.b16 %v3228
    %v3300 = vunpack.c.l.b16 %v3229
    %v3301 = vunpack.c.l.b16 %v3230
    %v3302 = vunpack.c.l.b16 %v3231
    %v3303 = vunpack.c.l.b16 %v3232
    %v3304 = vunpack.c.l.b16 %v3233
    %v3305 = vunpack.c.l.b16 %v3234
    %v3306 = vunpack.c.l.b16 %v3235
    %v3307 = vunpack.c.l.b16 %v3236
    %v3308 = vunpack.c.l.b16 %v3237
    %v3309 = vunpack.c.l.b16 %v3238
    %v3310 = vpack.c.b16 %v3279, %v3278
    %v3311 = vpack.c.b16 %v3281, %v3280
    %v3312 = vpack.c.b16 %v3283, %v3282
    %v3313 = vpack.c.b16 %v3285, %v3284
    %v3314 = vpack.c.b16 %v3287, %v3286
    %v3315 = vpack.c.b16 %v3289, %v3288
    %v3316 = vpack.c.b16 %v3291, %v3290
    %v3317 = vpack.c.b16 %v3293, %v3292
    %v3318 = vpack.c.b16 %v3295, %v3294
    %v3319 = vpack.c.b16 %v3297, %v3296
    %v3320 = vpack.c.b16 %v3299, %v3298
    %v3321 = vpack.c.b16 %v3301, %v3300
    %v3322 = vpack.c.b16 %v3303, %v3302
    %v3323 = vpack.c.b16 %v3305, %v3304
    %v3324 = vpack.c.b16 %v3307, %v3306
    %v3325 = vpack.c.b16 %v3309, %v3308
    %3342 = vmatprep.subr.bf16.mxu0 0
    %3343 = vmatpush1.bf16.msra.mxu0 %v3310
    %3344 = vmatprep.subr.bf16.mxu0 0
    %3345 = vmatpush1.bf16.msra.mxu0 %v3311
    %3346 = vmatprep.subr.bf16.mxu0 0
    %3347 = vmatpush1.bf16.msra.mxu0 %v3312
    %3348 = vmatprep.subr.bf16.mxu0 0
    %3349 = vmatpush1.bf16.msra.mxu0 %v3313
    %3350 = vmatprep.subr.bf16.mxu0 0
    %3351 = vmatpush1.bf16.msra.mxu0 %v3314
    %3352 = vmatprep.subr.bf16.mxu0 0
    %3353 = vmatpush1.bf16.msra.mxu0 %v3315
    %3354 = vmatprep.subr.bf16.mxu0 0
    %3355 = vmatpush1.bf16.msra.mxu0 %v3316
    %3356 = vmatprep.subr.bf16.mxu0 0
    %3357 = vmatpush1.bf16.msra.mxu0 %v3317
    %3358 = vmatprep.subr.bf16.mxu0 0
    %3359 = vmatpush1.bf16.msra.mxu0 %v3318
    %3360 = vmatprep.subr.bf16.mxu0 0
    %3361 = vmatpush1.bf16.msra.mxu0 %v3319
    %3362 = vmatprep.subr.bf16.mxu0 0
    %3363 = vmatpush1.bf16.msra.mxu0 %v3320
    %3364 = vmatprep.subr.bf16.mxu0 0
    %3365 = vmatpush1.bf16.msra.mxu0 %v3321
    %3366 = vmatprep.subr.bf16.mxu0 0
    %3367 = vmatpush1.bf16.msra.mxu0 %v3322
    %3368 = vmatprep.subr.bf16.mxu0 0
    %3369 = vmatpush1.bf16.msra.mxu0 %v3323
    %3370 = vmatprep.subr.bf16.mxu0 0
    %3371 = vmatpush1.bf16.msra.mxu0 %v3324
    %3372 = vmatprep.subr.bf16.mxu0 0
    %3373 = vmatpush1.bf16.msra.mxu0 %v3325
    %3374 = vmatprep.mubr.bf16.mxu0 %v3206
    %3375 = vmatmul.mubr.bf16.gmra.mrb[0].mxu0 %v3205
    %v3376 = vpop.f32.mrb[0].mxu0
    %v3377 = vadd.f32 %v3244, %v3376
    %v3378 = vpop.f32.mrb[0].mxu0
    %v3379 = vpop.f32.mrb[0].mxu0
    %v3380 = vadd.f32 %v3244, %v3379
    %v3381 = vpop.f32.mrb[0].mxu0
    %3382 = vdwg.mxu0
    %3383 = vst [vmem:[#allocation13] sm:$0xff] %v3377
    %3384 = vst [vmem:[#allocation13 + $0x8] sm:$0xff] %v3380
    // Predicated region
    $region58: #{tpu_custom_call.1} parent=1 // pred_check
      _
    $region59: #{tpu_custom_call.1} parent=1 // pred_check_branch
      %3386 = sbr.rel (0) target = $region61
    $region60: #{tpu_custom_call.1} parent=1 // pred_region
      %s3388 = ssub.s32 256, 256
      %3389 = vsyncadd [#allocation6], %s3388
      %s3390 = sshll.u32 [#allocation13], 4
      %s3391 = int_to_ptr.vmem [resolvable:$true] %s3390
      %3396 = dma.vmem_to_hbm [thread:$0]  %s3391, 256, %s8, [#allocation6], 128, 128, 8
    $region61: #{tpu_custom_call.1} parent=1 // pred_fallthru
      _
    // Predicated region
    $region62: #{tpu_custom_call.1} parent=1 // pred_check
      _
    $region63: #{tpu_custom_call.1} parent=1 // pred_check_branch
      %3398 = sbr.rel (0) target = $region65
    $region64: #{tpu_custom_call.1} parent=1 // pred_region
      %s3400 = ssub.s32 64, 64
      %3401 = vsyncadd [#allocation15], %s3400
      %s3403 = sshll.u32 [#allocation14], 4
      %s3404 = int_to_ptr.vmem [resolvable:$true] %s3403
      %3406 = dma.vmem_to_hbm [thread:$0]  %s3404, 64, %s9, [#allocation15]
    $region65: #{tpu_custom_call.1} parent=1 // pred_fallthru
      _
    // Predicated region
    $region66: #{tpu_custom_call.1} parent=1 // pred_check
      _
    $region67: #{tpu_custom_call.1} parent=1 // pred_check_branch
      %3408 = sbr.rel (0) target = $region69
    $region68: #{tpu_custom_call.1} parent=1 // pred_region
      %s3410 = ssub.s32 64, 64
      %3411 = vsyncadd [#allocation15], %s3410
      %s3413 = sshll.u32 [#allocation16], 4
      %s3414 = int_to_ptr.vmem [resolvable:$true] %s3413
      %3416 = dma.vmem_to_hbm [thread:$0]  %s3414, 64, %s10, [#allocation15]
    $region69: #{tpu_custom_call.1} parent=1 // pred_fallthru
      _
    // Predicated region
    $region70: #{tpu_custom_call.1} parent=1 // pred_check
      _
    $region71: #{tpu_custom_call.1} parent=1 // pred_check_branch
      %3418 = sbr.rel (0) target = $region73
    $region72: #{tpu_custom_call.1} parent=1 // pred_region
      %3419 = dma.done [#allocation6], 256
    $region73: #{tpu_custom_call.1} parent=1 // pred_fallthru
      _
    // Predicated region
    $region74: #{tpu_custom_call.1} parent=1 // pred_check
      _
    $region75: #{tpu_custom_call.1} parent=1 // pred_check_branch
      %3421 = sbr.rel (0) target = $region77
    $region76: #{tpu_custom_call.1} parent=1 // pred_region
      %3422 = dma.done [#allocation15], 64
    $region77: #{tpu_custom_call.1} parent=1 // pred_fallthru
      _
    // Predicated region
    $region78: #{tpu_custom_call.1} parent=1 // pred_check
      _
    $region79: #{tpu_custom_call.1} parent=1 // pred_check_branch
      %3424 = sbr.rel (0) target = $region81
    $region80: #{tpu_custom_call.1} parent=1 // pred_region
      %3425 = dma.done [#allocation15], 64
    $region81: #{tpu_custom_call.1} parent=1 // pred_fallthru
      _
    %3426 = vsyncpa [#allocation5], 1
    %3427 = vsyncpa [#allocation8], 1
    %3428 = vsyncpa [#allocation11], 1
    %3429 = vsyncpa [#allocation6], 1
    %3430 = vsyncpa [#allocation15], 1

</llo_original>
